<compile_context>
chip_gen: v6e
topology: v6e:2x2x1
jax: 0.10.0
libtpu: 0.0.40
codegen_flags: <defaults>
</compile_context>

<pallas_src>
import math

import jax
import jax.numpy as jnp
from jax.experimental import pallas as pl
from jax.experimental.pallas import tpu as pltpu

# ---- T5Config(d_model=192, d_kv=64, num_heads=8) ----
D_MODEL = 192
D_KV = 64
N_HEADS = 8
INNER = N_HEADS * D_KV          # 512
NUM_BUCKETS = 32
MAX_DISTANCE = 128


# ---------------------------------------------------------------------------
# Pallas kernel: fully fused per-batch T5 attention (all heads in one step)
# ---------------------------------------------------------------------------
def _t5_attention_kernel(x_ref, wqkv_ref, wo_ref, bias_ref, mask_ref,
                         o_ref, acc_ref):
    # x_ref:    (1, S, D_MODEL) f32        wqkv_ref: (D_MODEL, 3*INNER) bf16
    # wo_ref:   (INNER, D_MODEL) bf16      bias_ref: (N_HEADS, S, S) f32
    # mask_ref: (1, S, S) f32              o_ref:    (1, S, D_MODEL) f32
    # acc_ref:  (S, INNER) f32 VMEM scratch
    x = x_ref[0].astype(jnp.bfloat16)      # (S, D_MODEL) — bf16 MXU input
    mask = mask_ref[0]                     # (S, S) additive mask, f32

    # Fused Q/K/V projection: one bf16 MXU matmul, f32 accumulation.
    qkv = jnp.dot(x, wqkv_ref[...],
                  preferred_element_type=jnp.float32)      # (S, 3*INNER) f32

    # Per-head attention (static unroll over 8 heads; all slices are static).
    # TODO(synk): for larger S, pack the 8 (S,S) score tiles lane-dense as
    # (S, H*S) and do bias+mask+exp+sum on full 128-lane vregs.
    for h in range(N_HEADS):
        lo = h * D_KV
        qh = qkv[:, lo:lo + D_KV]                            # (S, D_KV)
        kh = qkv[:, INNER + lo:INNER + lo + D_KV]            # (S, D_KV)
        vh = qkv[:, 2 * INNER + lo:2 * INNER + lo + D_KV]    # (S, D_KV)

        # T5 does NOT scale by 1/sqrt(d_kv).  Contract last dims directly
        # (no explicit transpose materialization); f32 MXU for accuracy.
        s = jax.lax.dot_general(qh, kh, (((1,), (1,)), ((), ())),
                                preferred_element_type=jnp.float32)   # (S, S)
        s = s + bias_ref[h] + mask
        s = s - jnp.max(s, axis=-1, keepdims=True)
        p = jnp.exp(s)
        # Exact divide: the v2 approximate reciprocal broke the tolerance.
        p = p / jnp.sum(p, axis=-1, keepdims=True)

        # Stream this head's context straight into the VMEM accumulator.
        acc_ref[:, lo:lo + D_KV] = jnp.dot(
            p, vh, preferred_element_type=jnp.float32)

    # Fused output projection: (S, INNER) @ (INNER, D_MODEL), bf16 MXU.
    o_ref[0] = jnp.dot(acc_ref[...].astype(jnp.bfloat16), wo_ref[...],
                       preferred_element_type=jnp.float32).astype(o_ref.dtype)


def t5_attention_pallas(x, mask, params, position_bias):
    """x: (B, S, D_MODEL) f32, mask: (B, 1, S, S) additive f32,
    position_bias: (N_HEADS, S, S) f32."""
    B, S, _ = x.shape
    assert mask.shape[1] == 1, "expected broadcastable (B, 1, S, S) extended mask"
    mask2d = mask[:, 0]                                                # (B, S, S)

    # bf16 weights (halves weight DMA bytes — the kernel is weight-DMA bound at
    # this shape) and a single fused QKV weight (one DMA / one MXU weight push).
    wqkv = jnp.concatenate(
        [params["wq"], params["wk"], params["wv"]], axis=1).astype(jnp.bfloat16)
    wo = params["wo"].astype(jnp.bfloat16)

    # TODO(synk): for large S, tile the key axis of the scores/bias/mask blocks
    # (or compute the bias in-kernel from the (32, 8) bucket table), single-buffer
    # the grid-invariant weight/bias blocks, and set vmem_limit_bytes; at S=16
    # every block is tiny so the defaults are fine on v5e/v6e/v7x.
    return pl.pallas_call(
        _t5_attention_kernel,
        out_shape=jax.ShapeDtypeStruct((B, S, D_MODEL), x.dtype),
        grid_spec=pltpu.PrefetchScalarGridSpec(
            num_scalar_prefetch=0,
            grid=(B,),
            in_specs=[
                pl.BlockSpec((1, S, D_MODEL), lambda b: (b, 0, 0)),       # x
                pl.BlockSpec((D_MODEL, 3 * INNER), lambda b: (0, 0)),     # wqkv
                pl.BlockSpec((INNER, D_MODEL), lambda b: (0, 0)),         # wo
                pl.BlockSpec((N_HEADS, S, S), lambda b: (0, 0, 0)),       # pos bias
                pl.BlockSpec((1, S, S), lambda b: (b, 0, 0)),             # mask
            ],
            out_specs=pl.BlockSpec((1, S, D_MODEL), lambda b: (b, 0, 0)),
            scratch_shapes=[pltpu.VMEM((S, INNER), jnp.float32)],
        ),
        compiler_params=pltpu.CompilerParams(
            dimension_semantics=("parallel",)),   # megacore / dual-TC: split batch
    )(x, wqkv, wo, position_bias, mask2d)


# ---------------------------------------------------------------------------
# T5 relative position bias (plain-JAX glue: integer bucketing + gather)
# ---------------------------------------------------------------------------
def _relative_position_bucket(relative_position, num_buckets=NUM_BUCKETS,
                              max_distance=MAX_DISTANCE):
    # bidirectional=True (encoder / not is_decoder)
    relative_buckets = jnp.zeros_like(relative_position)
    num_buckets //= 2
    relative_buckets += (relative_position > 0).astype(jnp.int32) * num_buckets
    relative_position = jnp.abs(relative_position)

    max_exact = num_buckets // 2
    is_small = relative_position < max_exact
    rel_pos_f = jnp.maximum(relative_position, 1).astype(jnp.float32)
    relative_position_if_large = max_exact + (
        jnp.log(rel_pos_f / max_exact)
        / math.log(max_distance / max_exact)
        * (num_buckets - max_exact)
    ).astype(jnp.int32)
    relative_position_if_large = jnp.minimum(relative_position_if_large,
                                             num_buckets - 1)
    relative_buckets += jnp.where(is_small, relative_position,
                                  relative_position_if_large)
    return relative_buckets


def compute_position_bias(seq_len, rel_emb):
    """rel_emb: (NUM_BUCKETS, N_HEADS). Returns (N_HEADS, seq_len, seq_len)."""
    context_position = jnp.arange(seq_len, dtype=jnp.int32)[:, None]
    memory_position = jnp.arange(seq_len, dtype=jnp.int32)[None, :]
    relative_position = memory_position - context_position        # (q, k)
    rp_bucket = _relative_position_bucket(relative_position)      # (q, k)
    values = rel_emb[rp_bucket]                                    # (q, k, H)
    return jnp.transpose(values, (2, 0, 1))                        # (H, q, k)


# ---------------------------------------------------------------------------
# Pure-JAX f32 reference (for correctness check)
# ---------------------------------------------------------------------------
def t5_attention_ref(x, mask, params, position_bias):
    hp = jax.lax.Precision.HIGHEST
    B, S, _ = x.shape
    def split_heads(t):
        return t.reshape(B, S, N_HEADS, D_KV).transpose(0, 2, 1, 3)
    q = split_heads(jnp.dot(x, params["wq"], precision=hp))
    k = split_heads(jnp.dot(x, params["wk"], precision=hp))
    v = split_heads(jnp.dot(x, params["wv"], precision=hp))
    scores = jnp.einsum("bhqd,bhkd->bhqk", q, k, precision=hp)   # no scaling (T5)
    scores = scores + position_bias[None] + mask                 # mask (B,1,S,S)
    w = jax.nn.softmax(scores, axis=-1)
    o = jnp.einsum("bhqk,bhkd->bhqd", w, v, precision=hp)
    o = o.transpose(0, 2, 1, 3).reshape(B, S, INNER)
    return jnp.dot(o, params["wo"], precision=hp)


# ---------------------------------------------------------------------------
if __name__ == "__main__":
    key = jax.random.PRNGKey(0)
    kx, km, k1, k2, k3, k4, k5 = jax.random.split(key, 7)

    B, S = 2, 16

    # Deterministic parameter init (synthetic; matches T5Attention shapes).
    params = {
        "wq": jax.random.normal(k1, (D_MODEL, INNER), jnp.float32) * 0.05,
        "wk": jax.random.normal(k2, (D_MODEL, INNER), jnp.float32) * 0.05,
        "wv": jax.random.normal(k3, (D_MODEL, INNER), jnp.float32) * 0.05,
        "wo": jax.random.normal(k4, (INNER, D_MODEL), jnp.float32) * 0.05,
    }
    rel_emb = jax.random.normal(k5, (NUM_BUCKETS, N_HEADS), jnp.float32) * 0.05

    x = jax.random.normal(kx, (B, S, D_MODEL), jnp.float32)
    # Additive attention mask (extended-mask form), broadcastable over heads.
    mask = jax.random.normal(km, (B, 1, S, S), jnp.float32)

    position_bias = compute_position_bias(S, rel_emb)  # (N_HEADS, S, S)

    out = t5_attention_pallas(x, mask, params, position_bias)
    out = jax.block_until_ready(out)

    ref = t5_attention_ref(x, mask, params, position_bias)
    assert out.shape == (B, S, D_MODEL)
    # bf16 MXU inputs (weights + projection activations) are the only deviation
    # from the f32 reference; f32 accumulation keeps the error ~0.3% typical /
    # ~1% worst-case element, comfortably inside this budget.
    assert jnp.allclose(out, ref, atol=2e-2, rtol=2e-2), "mismatch vs reference"

    print("KERNEL_OK")
</pallas_src>

<mosaic_0001>
module attributes {stable_mosaic.version = 11 : i64} {
  func.func @_t5_attention_kernel(%arg0: i32, %arg1: memref<1x16x192xf32, #tpu.memory_space<vmem>>, %arg2: memref<192x1536xbf16, #tpu.memory_space<vmem>>, %arg3: memref<512x192xbf16, #tpu.memory_space<vmem>>, %arg4: memref<8x16x16xf32, #tpu.memory_space<vmem>>, %arg5: memref<1x16x16xf32, #tpu.memory_space<vmem>>, %arg6: memref<1x16x192xf32, #tpu.memory_space<vmem>>, %arg7: memref<16x512xf32, #tpu.memory_space<vmem>>) attributes {dimension_semantics = [#tpu.dimension_semantics<parallel>], iteration_bounds = array<i64: 2>, scalar_prefetch = 0 : i64, scratch_operands = 1 : i64, tpu.core_type = #tpu.core_type<tc>, window_params = [{transform_indices = @transform_0, window_bounds = array<i64: 1, 16, 192>}, {pipeline_mode = #tpu.pipeline_mode<synchronous>, transform_indices = @transform_1, window_bounds = array<i64: 192, 1536>}, {pipeline_mode = #tpu.pipeline_mode<synchronous>, transform_indices = @transform_2, window_bounds = array<i64: 512, 192>}, {pipeline_mode = #tpu.pipeline_mode<synchronous>, transform_indices = @transform_3, window_bounds = array<i64: 8, 16, 16>}, {transform_indices = @transform_4, window_bounds = array<i64: 1, 16, 16>}, {transform_indices = @transform_5, window_bounds = array<i64: 1, 16, 192>}]} {
    %c0 = arith.constant 0 : index
    %c0_0 = arith.constant 0 : index
    %c0_1 = arith.constant 0 : index
    %0 = vector.load %arg1[%c0, %c0_0, %c0_1] : memref<1x16x192xf32, #tpu.memory_space<vmem>>, vector<1x16x192xf32>
    %1 = vector.shape_cast %0 : vector<1x16x192xf32> to vector<16x192xf32>
    %2 = arith.truncf %1 : vector<16x192xf32> to vector<16x192xbf16>
    %c0_2 = arith.constant 0 : index
    %c0_3 = arith.constant 0 : index
    %c0_4 = arith.constant 0 : index
    %3 = vector.load %arg5[%c0_2, %c0_3, %c0_4] : memref<1x16x16xf32, #tpu.memory_space<vmem>>, vector<1x16x16xf32>
    %4 = vector.shape_cast %3 : vector<1x16x16xf32> to vector<16x16xf32>
    %c0_5 = arith.constant 0 : index
    %c0_6 = arith.constant 0 : index
    %5 = vector.load %arg2[%c0_5, %c0_6] : memref<192x1536xbf16, #tpu.memory_space<vmem>>, vector<192x1536xbf16>
    %cst = arith.constant dense<0.000000e+00> : vector<16x1536xf32>
    %6 = tpu.matmul %2, %5, %cst {dimension_numbers = #tpu.dot_dimension_numbers<[1], [0], [0], [1], [0, 0, 1, 1], [], []>} : vector<16x192xbf16>, vector<192x1536xbf16>, vector<16x1536xf32> -> vector<16x1536xf32>
    %7 = vector.extract_strided_slice %6 {offsets = [0, 0], sizes = [16, 64], strides = [1, 1]} : vector<16x1536xf32> to vector<16x64xf32>
    %8 = vector.extract_strided_slice %6 {offsets = [0, 512], sizes = [16, 64], strides = [1, 1]} : vector<16x1536xf32> to vector<16x64xf32>
    %9 = vector.extract_strided_slice %6 {offsets = [0, 1024], sizes = [16, 64], strides = [1, 1]} : vector<16x1536xf32> to vector<16x64xf32>
    %cst_7 = arith.constant dense<0.000000e+00> : vector<16x16xf32>
    %10 = tpu.matmul %7, %8, %cst_7 {dimension_numbers = #tpu.dot_dimension_numbers<[1], [1], [0], [0], [0, 0, 1, 0], [], []>} : vector<16x64xf32>, vector<16x64xf32>, vector<16x16xf32> -> vector<16x16xf32>
    %c0_8 = arith.constant 0 : index
    %c0_9 = arith.constant 0 : index
    %c0_10 = arith.constant 0 : index
    %11 = vector.load %arg4[%c0_8, %c0_9, %c0_10] : memref<8x16x16xf32, #tpu.memory_space<vmem>>, vector<1x16x16xf32>
    %12 = vector.shape_cast %11 : vector<1x16x16xf32> to vector<16x16xf32>
    %13 = arith.addf %10, %12 : vector<16x16xf32>
    %14 = arith.addf %13, %4 : vector<16x16xf32>
    %cst_11 = arith.constant dense<0xFF800000> : vector<16xf32>
    %15 = vector.multi_reduction <maximumf>, %14, %cst_11 [1] : vector<16x16xf32> to vector<16xf32>
    %16 = vector.shape_cast %15 : vector<16xf32> to vector<16x1xf32>
    %17 = vector.broadcast %16 : vector<16x1xf32> to vector<16x16xf32>
    %18 = arith.subf %14, %17 : vector<16x16xf32>
    %19 = math.exp %18 : vector<16x16xf32>
    %cst_12 = arith.constant dense<0.000000e+00> : vector<16xf32>
    %20 = vector.multi_reduction <add>, %19, %cst_12 [1] : vector<16x16xf32> to vector<16xf32>
    %21 = vector.shape_cast %20 : vector<16xf32> to vector<16x1xf32>
    %22 = vector.broadcast %21 : vector<16x1xf32> to vector<16x16xf32>
    %23 = arith.divf %19, %22 : vector<16x16xf32>
    %cst_13 = arith.constant dense<0.000000e+00> : vector<16x64xf32>
    %24 = tpu.matmul %23, %9, %cst_13 {dimension_numbers = #tpu.dot_dimension_numbers<[1], [0], [0], [1], [0, 0, 1, 1], [], []>} : vector<16x16xf32>, vector<16x64xf32>, vector<16x64xf32> -> vector<16x64xf32>
    %c0_14 = arith.constant 0 : index
    %c0_15 = arith.constant 0 : index
    %25 = vector.load %arg7[%c0_14, %c0_15] : memref<16x512xf32, #tpu.memory_space<vmem>>, vector<16x64xf32>
    tpu.vector_store %arg7[%c0_14, %c0_15], %24 {strides = array<i32>} : memref<16x512xf32, #tpu.memory_space<vmem>>, vector<16x64xf32>,
    %26 = vector.extract_strided_slice %6 {offsets = [0, 64], sizes = [16, 64], strides = [1, 1]} : vector<16x1536xf32> to vector<16x64xf32>
    %27 = vector.extract_strided_slice %6 {offsets = [0, 576], sizes = [16, 64], strides = [1, 1]} : vector<16x1536xf32> to vector<16x64xf32>
    %28 = vector.extract_strided_slice %6 {offsets = [0, 1088], sizes = [16, 64], strides = [1, 1]} : vector<16x1536xf32> to vector<16x64xf32>
    %cst_16 = arith.constant dense<0.000000e+00> : vector<16x16xf32>
    %29 = tpu.matmul %26, %27, %cst_16 {dimension_numbers = #tpu.dot_dimension_numbers<[1], [1], [0], [0], [0, 0, 1, 0], [], []>} : vector<16x64xf32>, vector<16x64xf32>, vector<16x16xf32> -> vector<16x16xf32>
    %c1 = arith.constant 1 : index
    %c0_17 = arith.constant 0 : index
    %c0_18 = arith.constant 0 : index
    %30 = vector.load %arg4[%c1, %c0_17, %c0_18] : memref<8x16x16xf32, #tpu.memory_space<vmem>>, vector<1x16x16xf32>
    %31 = vector.shape_cast %30 : vector<1x16x16xf32> to vector<16x16xf32>
    %32 = arith.addf %29, %31 : vector<16x16xf32>
    %33 = arith.addf %32, %4 : vector<16x16xf32>
    %cst_19 = arith.constant dense<0xFF800000> : vector<16xf32>
    %34 = vector.multi_reduction <maximumf>, %33, %cst_19 [1] : vector<16x16xf32> to vector<16xf32>
    %35 = vector.shape_cast %34 : vector<16xf32> to vector<16x1xf32>
    %36 = vector.broadcast %35 : vector<16x1xf32> to vector<16x16xf32>
    %37 = arith.subf %33, %36 : vector<16x16xf32>
    %38 = math.exp %37 : vector<16x16xf32>
    %cst_20 = arith.constant dense<0.000000e+00> : vector<16xf32>
    %39 = vector.multi_reduction <add>, %38, %cst_20 [1] : vector<16x16xf32> to vector<16xf32>
    %40 = vector.shape_cast %39 : vector<16xf32> to vector<16x1xf32>
    %41 = vector.broadcast %40 : vector<16x1xf32> to vector<16x16xf32>
    %42 = arith.divf %38, %41 : vector<16x16xf32>
    %cst_21 = arith.constant dense<0.000000e+00> : vector<16x64xf32>
    %43 = tpu.matmul %42, %28, %cst_21 {dimension_numbers = #tpu.dot_dimension_numbers<[1], [0], [0], [1], [0, 0, 1, 1], [], []>} : vector<16x16xf32>, vector<16x64xf32>, vector<16x64xf32> -> vector<16x64xf32>
    %c0_22 = arith.constant 0 : index
    %c64 = arith.constant 64 : index
    %44 = vector.load %arg7[%c0_22, %c64] : memref<16x512xf32, #tpu.memory_space<vmem>>, vector<16x64xf32>
    tpu.vector_store %arg7[%c0_22, %c64], %43 {strides = array<i32>} : memref<16x512xf32, #tpu.memory_space<vmem>>, vector<16x64xf32>,
    %45 = vector.extract_strided_slice %6 {offsets = [0, 128], sizes = [16, 64], strides = [1, 1]} : vector<16x1536xf32> to vector<16x64xf32>
    %46 = vector.extract_strided_slice %6 {offsets = [0, 640], sizes = [16, 64], strides = [1, 1]} : vector<16x1536xf32> to vector<16x64xf32>
    %47 = vector.extract_strided_slice %6 {offsets = [0, 1152], sizes = [16, 64], strides = [1, 1]} : vector<16x1536xf32> to vector<16x64xf32>
    %cst_23 = arith.constant dense<0.000000e+00> : vector<16x16xf32>
    %48 = tpu.matmul %45, %46, %cst_23 {dimension_numbers = #tpu.dot_dimension_numbers<[1], [1], [0], [0], [0, 0, 1, 0], [], []>} : vector<16x64xf32>, vector<16x64xf32>, vector<16x16xf32> -> vector<16x16xf32>
    %c2 = arith.constant 2 : index
    %c0_24 = arith.constant 0 : index
    %c0_25 = arith.constant 0 : index
    %49 = vector.load %arg4[%c2, %c0_24, %c0_25] : memref<8x16x16xf32, #tpu.memory_space<vmem>>, vector<1x16x16xf32>
    %50 = vector.shape_cast %49 : vector<1x16x16xf32> to vector<16x16xf32>
    %51 = arith.addf %48, %50 : vector<16x16xf32>
    %52 = arith.addf %51, %4 : vector<16x16xf32>
    %cst_26 = arith.constant dense<0xFF800000> : vector<16xf32>
    %53 = vector.multi_reduction <maximumf>, %52, %cst_26 [1] : vector<16x16xf32> to vector<16xf32>
    %54 = vector.shape_cast %53 : vector<16xf32> to vector<16x1xf32>
    %55 = vector.broadcast %54 : vector<16x1xf32> to vector<16x16xf32>
    %56 = arith.subf %52, %55 : vector<16x16xf32>
    %57 = math.exp %56 : vector<16x16xf32>
    %cst_27 = arith.constant dense<0.000000e+00> : vector<16xf32>
    %58 = vector.multi_reduction <add>, %57, %cst_27 [1] : vector<16x16xf32> to vector<16xf32>
    %59 = vector.shape_cast %58 : vector<16xf32> to vector<16x1xf32>
    %60 = vector.broadcast %59 : vector<16x1xf32> to vector<16x16xf32>
    %61 = arith.divf %57, %60 : vector<16x16xf32>
    %cst_28 = arith.constant dense<0.000000e+00> : vector<16x64xf32>
    %62 = tpu.matmul %61, %47, %cst_28 {dimension_numbers = #tpu.dot_dimension_numbers<[1], [0], [0], [1], [0, 0, 1, 1], [], []>} : vector<16x16xf32>, vector<16x64xf32>, vector<16x64xf32> -> vector<16x64xf32>
    %c0_29 = arith.constant 0 : index
    %c128 = arith.constant 128 : index
    %63 = vector.load %arg7[%c0_29, %c128] : memref<16x512xf32, #tpu.memory_space<vmem>>, vector<16x64xf32>
    tpu.vector_store %arg7[%c0_29, %c128], %62 {strides = array<i32>} : memref<16x512xf32, #tpu.memory_space<vmem>>, vector<16x64xf32>,
    %64 = vector.extract_strided_slice %6 {offsets = [0, 192], sizes = [16, 64], strides = [1, 1]} : vector<16x1536xf32> to vector<16x64xf32>
    %65 = vector.extract_strided_slice %6 {offsets = [0, 704], sizes = [16, 64], strides = [1, 1]} : vector<16x1536xf32> to vector<16x64xf32>
    %66 = vector.extract_strided_slice %6 {offsets = [0, 1216], sizes = [16, 64], strides = [1, 1]} : vector<16x1536xf32> to vector<16x64xf32>
    %cst_30 = arith.constant dense<0.000000e+00> : vector<16x16xf32>
    %67 = tpu.matmul %64, %65, %cst_30 {dimension_numbers = #tpu.dot_dimension_numbers<[1], [1], [0], [0], [0, 0, 1, 0], [], []>} : vector<16x64xf32>, vector<16x64xf32>, vector<16x16xf32> -> vector<16x16xf32>
    %c3 = arith.constant 3 : index
    %c0_31 = arith.constant 0 : index
    %c0_32 = arith.constant 0 : index
    %68 = vector.load %arg4[%c3, %c0_31, %c0_32] : memref<8x16x16xf32, #tpu.memory_space<vmem>>, vector<1x16x16xf32>
    %69 = vector.shape_cast %68 : vector<1x16x16xf32> to vector<16x16xf32>
    %70 = arith.addf %67, %69 : vector<16x16xf32>
    %71 = arith.addf %70, %4 : vector<16x16xf32>
    %cst_33 = arith.constant dense<0xFF800000> : vector<16xf32>
    %72 = vector.multi_reduction <maximumf>, %71, %cst_33 [1] : vector<16x16xf32> to vector<16xf32>
    %73 = vector.shape_cast %72 : vector<16xf32> to vector<16x1xf32>
    %74 = vector.broadcast %73 : vector<16x1xf32> to vector<16x16xf32>
    %75 = arith.subf %71, %74 : vector<16x16xf32>
    %76 = math.exp %75 : vector<16x16xf32>
    %cst_34 = arith.constant dense<0.000000e+00> : vector<16xf32>
    %77 = vector.multi_reduction <add>, %76, %cst_34 [1] : vector<16x16xf32> to vector<16xf32>
    %78 = vector.shape_cast %77 : vector<16xf32> to vector<16x1xf32>
    %79 = vector.broadcast %78 : vector<16x1xf32> to vector<16x16xf32>
    %80 = arith.divf %76, %79 : vector<16x16xf32>
    %cst_35 = arith.constant dense<0.000000e+00> : vector<16x64xf32>
    %81 = tpu.matmul %80, %66, %cst_35 {dimension_numbers = #tpu.dot_dimension_numbers<[1], [0], [0], [1], [0, 0, 1, 1], [], []>} : vector<16x16xf32>, vector<16x64xf32>, vector<16x64xf32> -> vector<16x64xf32>
    %c0_36 = arith.constant 0 : index
    %c192 = arith.constant 192 : index
    %82 = vector.load %arg7[%c0_36, %c192] : memref<16x512xf32, #tpu.memory_space<vmem>>, vector<16x64xf32>
    tpu.vector_store %arg7[%c0_36, %c192], %81 {strides = array<i32>} : memref<16x512xf32, #tpu.memory_space<vmem>>, vector<16x64xf32>,
    %83 = vector.extract_strided_slice %6 {offsets = [0, 256], sizes = [16, 64], strides = [1, 1]} : vector<16x1536xf32> to vector<16x64xf32>
    %84 = vector.extract_strided_slice %6 {offsets = [0, 768], sizes = [16, 64], strides = [1, 1]} : vector<16x1536xf32> to vector<16x64xf32>
    %85 = vector.extract_strided_slice %6 {offsets = [0, 1280], sizes = [16, 64], strides = [1, 1]} : vector<16x1536xf32> to vector<16x64xf32>
    %cst_37 = arith.constant dense<0.000000e+00> : vector<16x16xf32>
    %86 = tpu.matmul %83, %84, %cst_37 {dimension_numbers = #tpu.dot_dimension_numbers<[1], [1], [0], [0], [0, 0, 1, 0], [], []>} : vector<16x64xf32>, vector<16x64xf32>, vector<16x16xf32> -> vector<16x16xf32>
    %c4 = arith.constant 4 : index
    %c0_38 = arith.constant 0 : index
    %c0_39 = arith.constant 0 : index
    %87 = vector.load %arg4[%c4, %c0_38, %c0_39] : memref<8x16x16xf32, #tpu.memory_space<vmem>>, vector<1x16x16xf32>
    %88 = vector.shape_cast %87 : vector<1x16x16xf32> to vector<16x16xf32>
    %89 = arith.addf %86, %88 : vector<16x16xf32>
    %90 = arith.addf %89, %4 : vector<16x16xf32>
    %cst_40 = arith.constant dense<0xFF800000> : vector<16xf32>
    %91 = vector.multi_reduction <maximumf>, %90, %cst_40 [1] : vector<16x16xf32> to vector<16xf32>
    %92 = vector.shape_cast %91 : vector<16xf32> to vector<16x1xf32>
    %93 = vector.broadcast %92 : vector<16x1xf32> to vector<16x16xf32>
    %94 = arith.subf %90, %93 : vector<16x16xf32>
    %95 = math.exp %94 : vector<16x16xf32>
    %cst_41 = arith.constant dense<0.000000e+00> : vector<16xf32>
    %96 = vector.multi_reduction <add>, %95, %cst_41 [1] : vector<16x16xf32> to vector<16xf32>
    %97 = vector.shape_cast %96 : vector<16xf32> to vector<16x1xf32>
    %98 = vector.broadcast %97 : vector<16x1xf32> to vector<16x16xf32>
    %99 = arith.divf %95, %98 : vector<16x16xf32>
    %cst_42 = arith.constant dense<0.000000e+00> : vector<16x64xf32>
    %100 = tpu.matmul %99, %85, %cst_42 {dimension_numbers = #tpu.dot_dimension_numbers<[1], [0], [0], [1], [0, 0, 1, 1], [], []>} : vector<16x16xf32>, vector<16x64xf32>, vector<16x64xf32> -> vector<16x64xf32>
    %c0_43 = arith.constant 0 : index
    %c256 = arith.constant 256 : index
    %101 = vector.load %arg7[%c0_43, %c256] : memref<16x512xf32, #tpu.memory_space<vmem>>, vector<16x64xf32>
    tpu.vector_store %arg7[%c0_43, %c256], %100 {strides = array<i32>} : memref<16x512xf32, #tpu.memory_space<vmem>>, vector<16x64xf32>,
    %102 = vector.extract_strided_slice %6 {offsets = [0, 320], sizes = [16, 64], strides = [1, 1]} : vector<16x1536xf32> to vector<16x64xf32>
    %103 = vector.extract_strided_slice %6 {offsets = [0, 832], sizes = [16, 64], strides = [1, 1]} : vector<16x1536xf32> to vector<16x64xf32>
    %104 = vector.extract_strided_slice %6 {offsets = [0, 1344], sizes = [16, 64], strides = [1, 1]} : vector<16x1536xf32> to vector<16x64xf32>
    %cst_44 = arith.constant dense<0.000000e+00> : vector<16x16xf32>
    %105 = tpu.matmul %102, %103, %cst_44 {dimension_numbers = #tpu.dot_dimension_numbers<[1], [1], [0], [0], [0, 0, 1, 0], [], []>} : vector<16x64xf32>, vector<16x64xf32>, vector<16x16xf32> -> vector<16x16xf32>
    %c5 = arith.constant 5 : index
    %c0_45 = arith.constant 0 : index
    %c0_46 = arith.constant 0 : index
    %106 = vector.load %arg4[%c5, %c0_45, %c0_46] : memref<8x16x16xf32, #tpu.memory_space<vmem>>, vector<1x16x16xf32>
    %107 = vector.shape_cast %106 : vector<1x16x16xf32> to vector<16x16xf32>
    %108 = arith.addf %105, %107 : vector<16x16xf32>
    %109 = arith.addf %108, %4 : vector<16x16xf32>
    %cst_47 = arith.constant dense<0xFF800000> : vector<16xf32>
    %110 = vector.multi_reduction <maximumf>, %109, %cst_47 [1] : vector<16x16xf32> to vector<16xf32>
    %111 = vector.shape_cast %110 : vector<16xf32> to vector<16x1xf32>
    %112 = vector.broadcast %111 : vector<16x1xf32> to vector<16x16xf32>
    %113 = arith.subf %109, %112 : vector<16x16xf32>
    %114 = math.exp %113 : vector<16x16xf32>
    %cst_48 = arith.constant dense<0.000000e+00> : vector<16xf32>
    %115 = vector.multi_reduction <add>, %114, %cst_48 [1] : vector<16x16xf32> to vector<16xf32>
    %116 = vector.shape_cast %115 : vector<16xf32> to vector<16x1xf32>
    %117 = vector.broadcast %116 : vector<16x1xf32> to vector<16x16xf32>
    %118 = arith.divf %114, %117 : vector<16x16xf32>
    %cst_49 = arith.constant dense<0.000000e+00> : vector<16x64xf32>
    %119 = tpu.matmul %118, %104, %cst_49 {dimension_numbers = #tpu.dot_dimension_numbers<[1], [0], [0], [1], [0, 0, 1, 1], [], []>} : vector<16x16xf32>, vector<16x64xf32>, vector<16x64xf32> -> vector<16x64xf32>
    %c0_50 = arith.constant 0 : index
    %c320 = arith.constant 320 : index
    %120 = vector.load %arg7[%c0_50, %c320] : memref<16x512xf32, #tpu.memory_space<vmem>>, vector<16x64xf32>
    tpu.vector_store %arg7[%c0_50, %c320], %119 {strides = array<i32>} : memref<16x512xf32, #tpu.memory_space<vmem>>, vector<16x64xf32>,
    %121 = vector.extract_strided_slice %6 {offsets = [0, 384], sizes = [16, 64], strides = [1, 1]} : vector<16x1536xf32> to vector<16x64xf32>
    %122 = vector.extract_strided_slice %6 {offsets = [0, 896], sizes = [16, 64], strides = [1, 1]} : vector<16x1536xf32> to vector<16x64xf32>
    %123 = vector.extract_strided_slice %6 {offsets = [0, 1408], sizes = [16, 64], strides = [1, 1]} : vector<16x1536xf32> to vector<16x64xf32>
    %cst_51 = arith.constant dense<0.000000e+00> : vector<16x16xf32>
    %124 = tpu.matmul %121, %122, %cst_51 {dimension_numbers = #tpu.dot_dimension_numbers<[1], [1], [0], [0], [0, 0, 1, 0], [], []>} : vector<16x64xf32>, vector<16x64xf32>, vector<16x16xf32> -> vector<16x16xf32>
    %c6 = arith.constant 6 : index
    %c0_52 = arith.constant 0 : index
    %c0_53 = arith.constant 0 : index
    %125 = vector.load %arg4[%c6, %c0_52, %c0_53] : memref<8x16x16xf32, #tpu.memory_space<vmem>>, vector<1x16x16xf32>
    %126 = vector.shape_cast %125 : vector<1x16x16xf32> to vector<16x16xf32>
    %127 = arith.addf %124, %126 : vector<16x16xf32>
    %128 = arith.addf %127, %4 : vector<16x16xf32>
    %cst_54 = arith.constant dense<0xFF800000> : vector<16xf32>
    %129 = vector.multi_reduction <maximumf>, %128, %cst_54 [1] : vector<16x16xf32> to vector<16xf32>
    %130 = vector.shape_cast %129 : vector<16xf32> to vector<16x1xf32>
    %131 = vector.broadcast %130 : vector<16x1xf32> to vector<16x16xf32>
    %132 = arith.subf %128, %131 : vector<16x16xf32>
    %133 = math.exp %132 : vector<16x16xf32>
    %cst_55 = arith.constant dense<0.000000e+00> : vector<16xf32>
    %134 = vector.multi_reduction <add>, %133, %cst_55 [1] : vector<16x16xf32> to vector<16xf32>
    %135 = vector.shape_cast %134 : vector<16xf32> to vector<16x1xf32>
    %136 = vector.broadcast %135 : vector<16x1xf32> to vector<16x16xf32>
    %137 = arith.divf %133, %136 : vector<16x16xf32>
    %cst_56 = arith.constant dense<0.000000e+00> : vector<16x64xf32>
    %138 = tpu.matmul %137, %123, %cst_56 {dimension_numbers = #tpu.dot_dimension_numbers<[1], [0], [0], [1], [0, 0, 1, 1], [], []>} : vector<16x16xf32>, vector<16x64xf32>, vector<16x64xf32> -> vector<16x64xf32>
    %c0_57 = arith.constant 0 : index
    %c384 = arith.constant 384 : index
    %139 = vector.load %arg7[%c0_57, %c384] : memref<16x512xf32, #tpu.memory_space<vmem>>, vector<16x64xf32>
    tpu.vector_store %arg7[%c0_57, %c384], %138 {strides = array<i32>} : memref<16x512xf32, #tpu.memory_space<vmem>>, vector<16x64xf32>,
    %140 = vector.extract_strided_slice %6 {offsets = [0, 448], sizes = [16, 64], strides = [1, 1]} : vector<16x1536xf32> to vector<16x64xf32>
    %141 = vector.extract_strided_slice %6 {offsets = [0, 960], sizes = [16, 64], strides = [1, 1]} : vector<16x1536xf32> to vector<16x64xf32>
    %142 = vector.extract_strided_slice %6 {offsets = [0, 1472], sizes = [16, 64], strides = [1, 1]} : vector<16x1536xf32> to vector<16x64xf32>
    %cst_58 = arith.constant dense<0.000000e+00> : vector<16x16xf32>
    %143 = tpu.matmul %140, %141, %cst_58 {dimension_numbers = #tpu.dot_dimension_numbers<[1], [1], [0], [0], [0, 0, 1, 0], [], []>} : vector<16x64xf32>, vector<16x64xf32>, vector<16x16xf32> -> vector<16x16xf32>
    %c7 = arith.constant 7 : index
    %c0_59 = arith.constant 0 : index
    %c0_60 = arith.constant 0 : index
    %144 = vector.load %arg4[%c7, %c0_59, %c0_60] : memref<8x16x16xf32, #tpu.memory_space<vmem>>, vector<1x16x16xf32>
    %145 = vector.shape_cast %144 : vector<1x16x16xf32> to vector<16x16xf32>
    %146 = arith.addf %143, %145 : vector<16x16xf32>
    %147 = arith.addf %146, %4 : vector<16x16xf32>
    %cst_61 = arith.constant dense<0xFF800000> : vector<16xf32>
    %148 = vector.multi_reduction <maximumf>, %147, %cst_61 [1] : vector<16x16xf32> to vector<16xf32>
    %149 = vector.shape_cast %148 : vector<16xf32> to vector<16x1xf32>
    %150 = vector.broadcast %149 : vector<16x1xf32> to vector<16x16xf32>
    %151 = arith.subf %147, %150 : vector<16x16xf32>
    %152 = math.exp %151 : vector<16x16xf32>
    %cst_62 = arith.constant dense<0.000000e+00> : vector<16xf32>
    %153 = vector.multi_reduction <add>, %152, %cst_62 [1] : vector<16x16xf32> to vector<16xf32>
    %154 = vector.shape_cast %153 : vector<16xf32> to vector<16x1xf32>
    %155 = vector.broadcast %154 : vector<16x1xf32> to vector<16x16xf32>
    %156 = arith.divf %152, %155 : vector<16x16xf32>
    %cst_63 = arith.constant dense<0.000000e+00> : vector<16x64xf32>
    %157 = tpu.matmul %156, %142, %cst_63 {dimension_numbers = #tpu.dot_dimension_numbers<[1], [0], [0], [1], [0, 0, 1, 1], [], []>} : vector<16x16xf32>, vector<16x64xf32>, vector<16x64xf32> -> vector<16x64xf32>
    %c0_64 = arith.constant 0 : index
    %c448 = arith.constant 448 : index
    %158 = vector.load %arg7[%c0_64, %c448] : memref<16x512xf32, #tpu.memory_space<vmem>>, vector<16x64xf32>
    tpu.vector_store %arg7[%c0_64, %c448], %157 {strides = array<i32>} : memref<16x512xf32, #tpu.memory_space<vmem>>, vector<16x64xf32>,
    %c0_65 = arith.constant 0 : index
    %c0_66 = arith.constant 0 : index
    %159 = vector.load %arg7[%c0_65, %c0_66] : memref<16x512xf32, #tpu.memory_space<vmem>>, vector<16x512xf32>
    %160 = arith.truncf %159 : vector<16x512xf32> to vector<16x512xbf16>
    %c0_67 = arith.constant 0 : index
    %c0_68 = arith.constant 0 : index
    %161 = vector.load %arg3[%c0_67, %c0_68] : memref<512x192xbf16, #tpu.memory_space<vmem>>, vector<512x192xbf16>
    %cst_69 = arith.constant dense<0.000000e+00> : vector<16x192xf32>
    %162 = tpu.matmul %160, %161, %cst_69 {dimension_numbers = #tpu.dot_dimension_numbers<[1], [0], [0], [1], [0, 0, 1, 1], [], []>} : vector<16x512xbf16>, vector<512x192xbf16>, vector<16x192xf32> -> vector<16x192xf32>
    %c0_70 = arith.constant 0 : index
    %c0_71 = arith.constant 0 : index
    %c0_72 = arith.constant 0 : index
    %163 = vector.load %arg6[%c0_70, %c0_71, %c0_72] : memref<1x16x192xf32, #tpu.memory_space<vmem>>, vector<1x16x192xf32>
    %164 = vector.shape_cast %163 : vector<1x16x192xf32> to vector<16x192xf32>
    %165 = vector.shape_cast %162 : vector<16x192xf32> to vector<1x16x192xf32>
    tpu.vector_store %arg6[%c0_70, %c0_71, %c0_72], %165 {strides = array<i32>} : memref<1x16x192xf32, #tpu.memory_space<vmem>>, vector<1x16x192xf32>,
    return
  }
  func.func @transform_0(%arg0: i32) -> (i32, i32, i32) {
    %c0_i32 = arith.constant 0 : i32
    %c0_i32_0 = arith.constant 0 : i32
    %c0_i32_1 = arith.constant 0 : i32
    return %arg0, %c0_i32, %c0_i32_0 : i32, i32, i32
  }
  func.func @transform_1(%arg0: i32) -> (i32, i32) {
    %c0_i32 = arith.constant 0 : i32
    %c0_i32_0 = arith.constant 0 : i32
    %c0_i32_1 = arith.constant 0 : i32
    return %c0_i32, %c0_i32_0 : i32, i32
  }
  func.func @transform_2(%arg0: i32) -> (i32, i32) {
    %c0_i32 = arith.constant 0 : i32
    %c0_i32_0 = arith.constant 0 : i32
    %c0_i32_1 = arith.constant 0 : i32
    return %c0_i32, %c0_i32_0 : i32, i32
  }
  func.func @transform_3(%arg0: i32) -> (i32, i32, i32) {
    %c0_i32 = arith.constant 0 : i32
    %c0_i32_0 = arith.constant 0 : i32
    %c0_i32_1 = arith.constant 0 : i32
    %c0_i32_2 = arith.constant 0 : i32
    return %c0_i32, %c0_i32_0, %c0_i32_1 : i32, i32, i32
  }
  func.func @transform_4(%arg0: i32) -> (i32, i32, i32) {
    %c0_i32 = arith.constant 0 : i32
    %c0_i32_0 = arith.constant 0 : i32
    %c0_i32_1 = arith.constant 0 : i32
    return %arg0, %c0_i32, %c0_i32_0 : i32, i32, i32
  }
  func.func @transform_5(%arg0: i32) -> (i32, i32, i32) {
    %c0_i32 = arith.constant 0 : i32
    %c0_i32_0 = arith.constant 0 : i32
    %c0_i32_1 = arith.constant 0 : i32
    return %arg0, %c0_i32, %c0_i32_0 : i32, i32, i32
  }
}

</mosaic_0001>

<llo_original>
// kernel: tpu_custom_call.1
$region0: #{tpu_custom_call.1}
  #allocation0 [shape = 'u32[]', space=smem, size = 0x4, offset = 0x4, fixed_abs, tag = 'smem constant byte address 0x4 - core index']
  #allocation1 [shape = 'u32[144,128]{1,0:T(1,128)}', space=vmem, size = 0x12000, scoped, tag = 'internal scratch']
  #allocation2 [shape = 'f32[16,512]{1,0:T(8,128)}', space=vmem, size = 0x8000, scoped, tag = 'scratch operand']
  %s0 = inlined_call_operand.vmem [shape: f32[2,16,192], index: 0, kind: input, shape index: {}]
  %s1 = inlined_call_operand.hbm [shape: bf16[192,1536], index: 1, kind: input, shape index: {}]
  %s2 = inlined_call_operand.vmem [shape: bf16[512,192], index: 2, kind: input, shape index: {}]
  %s3 = inlined_call_operand.vmem [shape: f32[8,16,16], index: 3, kind: input, shape index: {}]
  %s4 = inlined_call_operand.vmem [shape: f32[2,16,16], index: 4, kind: input, shape index: {}]
  %s5 = inlined_call_operand.hbm [shape: f32[2,16,192], index: 5, kind: output, shape index: {}]
  %s6 = sld [smem:[#allocation0]]
  $region57: #{tpu_custom_call.1} parent=0
    _
  %s8 = ssub.s32 1, %s6
  %s9 = scalar_select 0, %s8, %s6
  $region1: #{tpu_custom_call.1} parent=0
    #allocation3 [shape = 'u8[589824]{0}', space=vmem, size = 0x90000, scoped, tag = 'input window, operand 1, single buffered']
    #allocation4 [shape = 's32[2]{0}', space=sflag, size = 0x8, scoped, tag = 'scoped memory for tpu_custom_call.1']
    #allocation5 [shape = 's32[2]{0}', space=sflag, size = 0x8, scoped, tag = 'scoped memory for tpu_custom_call.1']
    #allocation6 [shape = 'u8[32768]{0}', space=vmem, size = 0x8000, scoped, tag = 'output window, operand 0']
    %10 = vsyncpa [#allocation4], 0
    %11 = vsyncpa [#allocation5], 0
    %s12 = scalar_lea.sflag [#allocation5], 1
    %13 = vsyncpa %s12, 0
    loop: start=0, step=1, limit=4
    $region2: #{tpu_custom_call.1} parent=1 // loop_pre_header
      _
    $region3: #{tpu_custom_call.1} parent=1 // loop_header
      %s15 = sphi 0, %s19
      %p16 = scmp.ge.s32.totalorder %s15, 4
      %s25 = sphi 0, %s27
      %s28 = sphi 0, %s25
      %s29 = sphi 0, %s28
      %s45 = sphi 0, %s29
      %s49 = sphi 0, %s49
      %s51 = sphi 0, %s49
      %s52 = sphi 0, %s51
      %s66 = sphi 0, %s52
      %s70 = sphi 0, %s70
      %s72 = sphi 0, %s70
      %s73 = sphi 0, %s72
      %s87 = sphi 0, %s73
      %s91 = sphi 0, %s91
      %s93 = sphi 0, %s91
      %s94 = sphi 0, %s93
      %s108 = sphi 0, %s94
      %s114 = sphi 0, %s116
      %s117 = sphi 0, %s114
      %s118 = sphi 0, %s117
      %s134 = sphi 0, %s118
      %s140 = sphi 0, %s142
      %s143 = sphi 0, %s140
      %s144 = sphi 0, %s143
      %s160 = sphi 0, %s144
    $region4: #{tpu_custom_call.1} parent=1 // loop_header_branch
      %18 = sbr.rel (%p16) target = $region8
    $region5: #{tpu_custom_call.1} parent=1 // loop_body
      %s20 = ssub.s32 %s15, 1
      %s21 = ssub.s32 %s15, 2
      %s22 = sadd.s32 %s15, 1
      %s23 = ssub.s32 %s15, %s22
      %p24 = scmp.eq.s32.totalorder %s23, 0
      %s26 = sadd.s32 %s25, 1
      %s27 = scalar_select %p24, %s25, %s26
      %p30 = pneg %p24
      %p31 = scmp.eq.s32.totalorder %s15, 1
      %p32 = por %p30, %p31
      %p33 = scmp.ne.s32.totalorder %s25, %s28
      %p34 = scmp.eq.s32.totalorder %s15, 0
      %p35 = por %p33, %p34
      %p36 = scmp.ne.s32.totalorder %s25, %s28
      %p37 = scmp.eq.s32.totalorder %s20, 1
      %p38 = por %p36, %p37
      %p39 = scmp.ne.s32.totalorder %s28, %s29
      %p40 = scmp.eq.s32.totalorder %s20, 0
      %p41 = por %p39, %p40
      %p42 = scmp.ne.s32.totalorder %s28, %s29
      %p43 = scmp.eq.s32.totalorder %s21, 1
      %p44 = por %p42, %p43
      %p46 = scmp.ne.s32.totalorder %s29, %s45
      %p47 = scmp.eq.s32.totalorder %s21, 0
      %p48 = por %p46, %p47
      %s50 = sadd.s32 %s49, 1
      %p53 = scmp.eq.s32.totalorder %s15, 1
      %p54 = scmp.ne.s32.totalorder %s49, %s51
      %p55 = scmp.eq.s32.totalorder %s15, 0
      %p56 = por %p54, %p55
      %p57 = scmp.ne.s32.totalorder %s49, %s51
      %p58 = scmp.eq.s32.totalorder %s20, 1
      %p59 = por %p57, %p58
      %p60 = scmp.ne.s32.totalorder %s51, %s52
      %p61 = scmp.eq.s32.totalorder %s20, 0
      %p62 = por %p60, %p61
      %p63 = scmp.ne.s32.totalorder %s51, %s52
      %p64 = scmp.eq.s32.totalorder %s21, 1
      %p65 = por %p63, %p64
      %p67 = scmp.ne.s32.totalorder %s52, %s66
      %p68 = scmp.eq.s32.totalorder %s21, 0
      %p69 = por %p67, %p68
      %s71 = sadd.s32 %s70, 1
      %p74 = scmp.eq.s32.totalorder %s15, 1
      %p75 = scmp.ne.s32.totalorder %s70, %s72
      %p76 = scmp.eq.s32.totalorder %s15, 0
      %p77 = por %p75, %p76
      %p78 = scmp.ne.s32.totalorder %s70, %s72
      %p79 = scmp.eq.s32.totalorder %s20, 1
      %p80 = por %p78, %p79
      %p81 = scmp.ne.s32.totalorder %s72, %s73
      %p82 = scmp.eq.s32.totalorder %s20, 0
      %p83 = por %p81, %p82
      %p84 = scmp.ne.s32.totalorder %s72, %s73
      %p85 = scmp.eq.s32.totalorder %s21, 1
      %p86 = por %p84, %p85
      %p88 = scmp.ne.s32.totalorder %s73, %s87
      %p89 = scmp.eq.s32.totalorder %s21, 0
      %p90 = por %p88, %p89
      %s92 = sadd.s32 %s91, 1
      %p95 = scmp.eq.s32.totalorder %s15, 1
      %p96 = scmp.ne.s32.totalorder %s91, %s93
      %p97 = scmp.eq.s32.totalorder %s15, 0
      %p98 = por %p96, %p97
      %p99 = scmp.ne.s32.totalorder %s91, %s93
      %p100 = scmp.eq.s32.totalorder %s20, 1
      %p101 = por %p99, %p100
      %p102 = scmp.ne.s32.totalorder %s93, %s94
      %p103 = scmp.eq.s32.totalorder %s20, 0
      %p104 = por %p102, %p103
      %p105 = scmp.ne.s32.totalorder %s93, %s94
      %p106 = scmp.eq.s32.totalorder %s21, 1
      %p107 = por %p105, %p106
      %p109 = scmp.ne.s32.totalorder %s94, %s108
      %p110 = scmp.eq.s32.totalorder %s21, 0
      %p111 = por %p109, %p110
      %s112 = ssub.s32 %s15, %s22
      %p113 = scmp.eq.s32.totalorder %s112, 0
      %s115 = sadd.s32 %s114, 1
      %s116 = scalar_select %p113, %s114, %s115
      %p119 = pneg %p113
      %p120 = scmp.eq.s32.totalorder %s15, 1
      %p121 = por %p119, %p120
      %p122 = scmp.ne.s32.totalorder %s114, %s117
      %p123 = scmp.eq.s32.totalorder %s15, 0
      %p124 = por %p122, %p123
      %p125 = scmp.ne.s32.totalorder %s114, %s117
      %p126 = scmp.eq.s32.totalorder %s20, 1
      %p127 = por %p125, %p126
      %p128 = scmp.ne.s32.totalorder %s117, %s118
      %p129 = scmp.eq.s32.totalorder %s20, 0
      %p130 = por %p128, %p129
      %p131 = scmp.ne.s32.totalorder %s117, %s118
      %p132 = scmp.eq.s32.totalorder %s21, 1
      %p133 = por %p131, %p132
      %p135 = scmp.ne.s32.totalorder %s118, %s134
      %p136 = scmp.eq.s32.totalorder %s21, 0
      %p137 = por %p135, %p136
      %s138 = ssub.s32 %s15, %s22
      %p139 = scmp.eq.s32.totalorder %s138, 0
      %s141 = sadd.s32 %s140, 1
      %s142 = scalar_select %p139, %s140, %s141
      %p145 = pneg %p139
      %p146 = scmp.eq.s32.totalorder %s15, 1
      %p147 = por %p145, %p146
      %p148 = scmp.ne.s32.totalorder %s140, %s143
      %p149 = scmp.eq.s32.totalorder %s15, 0
      %p150 = por %p148, %p149
      %p151 = scmp.ne.s32.totalorder %s140, %s143
      %p152 = scmp.eq.s32.totalorder %s20, 1
      %p153 = por %p151, %p152
      %p154 = scmp.ne.s32.totalorder %s143, %s144
      %p155 = scmp.eq.s32.totalorder %s20, 0
      %p156 = por %p154, %p155
      %p157 = scmp.ne.s32.totalorder %s143, %s144
      %p158 = scmp.eq.s32.totalorder %s21, 1
      %p159 = por %p157, %p158
      %p161 = scmp.ne.s32.totalorder %s144, %s160
      %p162 = scmp.eq.s32.totalorder %s21, 0
      %p163 = por %p161, %p162
      %p164 = scmp.le.s32.totalorder 1, %s15
      %p165 = scmp.lt.s32.totalorder %s15, 3
      %p166 = pnand %p164, %p165
      %p167 = pneg %p166
      // Predicated region
      $region9: #{tpu_custom_call.1} parent=5 // pred_check
        _
      $region10: #{tpu_custom_call.1} parent=5 // pred_check_branch
        %169 = sbr.rel (%p166) target = $region12
      $region11: #{tpu_custom_call.1} parent=5 // pred_region
        %s170 = ssub.s32 %s15, 1
        // Predicated region
        $region13: #{tpu_custom_call.1} parent=11 // pred_check
          %p171 = pneg %p62
        $region14: #{tpu_custom_call.1} parent=11 // pred_check_branch
          %173 = sbr.rel (%p171) target = $region16
        $region15: #{tpu_custom_call.1} parent=11 // pred_region
          %s175 = ssub.s32 18432, 18432
          %176 = vsyncadd [#allocation4], %s175
          %s177 = sshll.u32 [#allocation3], 4
          %s178 = int_to_ptr.vmem [resolvable:$true] %s177
          %183 = dma.hbm_to_vmem [thread:$0]  %s1, 18432, %s178, [#allocation4], 768, 768, 48
        $region16: #{tpu_custom_call.1} parent=11 // pred_fallthru
          _
        // Predicated region
        $region17: #{tpu_custom_call.1} parent=11 // pred_check
          %p184 = pneg %p83
        $region18: #{tpu_custom_call.1} parent=11 // pred_check_branch
          %186 = sbr.rel (%p184) target = $region20
        $region19: #{tpu_custom_call.1} parent=11 // pred_region
          _
        $region20: #{tpu_custom_call.1} parent=11 // pred_fallthru
          _
        // Predicated region
        $region21: #{tpu_custom_call.1} parent=11 // pred_check
          %p187 = pneg %p104
        $region22: #{tpu_custom_call.1} parent=11 // pred_check_branch
          %189 = sbr.rel (%p187) target = $region24
        $region23: #{tpu_custom_call.1} parent=11 // pred_region
          _
        $region24: #{tpu_custom_call.1} parent=11 // pred_fallthru
          _
      $region12: #{tpu_custom_call.1} parent=5 // pred_fallthru
        _
      %p190 = scmp.lt.s32.totalorder %s15, 2
      // Predicated region
      $region25: #{tpu_custom_call.1} parent=5 // pred_check
        %p191 = pneg %p190
      $region26: #{tpu_custom_call.1} parent=5 // pred_check_branch
        %193 = sbr.rel (%p191) target = $region28
      $region27: #{tpu_custom_call.1} parent=5 // pred_region
        // Predicated region
        $region29: #{tpu_custom_call.1} parent=27 // pred_check
          %p194 = pneg %p35
        $region30: #{tpu_custom_call.1} parent=27 // pred_check_branch
          %196 = sbr.rel (%p194) target = $region32
        $region31: #{tpu_custom_call.1} parent=27 // pred_region
          %p197 = scmp.lt.s32.totalorder %s15, 1
          %s198 = scalar_select %p197, %s15, 1
          %s199 = smul.addr %s198, 4
          %s200 = smul.addr %s199, 8
          %s201 = scalar_lea.vmem %s0, %s200
        $region32: #{tpu_custom_call.1} parent=27 // pred_fallthru
          _
        // Predicated region
        $region33: #{tpu_custom_call.1} parent=27 // pred_check
          %p202 = pneg %p124
        $region34: #{tpu_custom_call.1} parent=27 // pred_check_branch
          %204 = sbr.rel (%p202) target = $region36
        $region35: #{tpu_custom_call.1} parent=27 // pred_region
          %p205 = scmp.lt.s32.totalorder %s15, 1
          %s206 = scalar_select %p205, %s15, 1
          %s207 = smul.addr %s206, 2
          %s208 = smul.addr %s207, 8
          %s209 = scalar_lea.vmem %s4, %s208
        $region36: #{tpu_custom_call.1} parent=27 // pred_fallthru
          _
      $region28: #{tpu_custom_call.1} parent=5 // pred_fallthru
        _
      %p210 = scmp.le.s32.totalorder 1, %s15
      %p211 = scmp.lt.s32.totalorder %s15, 3
      %p212 = pnand %p210, %p211
      %p213 = pneg %p212
      // Predicated region
      $region37: #{tpu_custom_call.1} parent=5 // pred_check
        _
      $region38: #{tpu_custom_call.1} parent=5 // pred_check_branch
        %215 = sbr.rel (%p212) target = $region40
      $region39: #{tpu_custom_call.1} parent=5 // pred_region
        %s216 = ssub.s32 %s15, 1
        // Predicated region
        $region41: #{tpu_custom_call.1} parent=39 // pred_check
          %p217 = pneg %p62
        $region42: #{tpu_custom_call.1} parent=39 // pred_check_branch
          %219 = sbr.rel (%p217) target = $region44
        $region43: #{tpu_custom_call.1} parent=39 // pred_region
          %220 = dma.done [#allocation4], 18432
        $region44: #{tpu_custom_call.1} parent=39 // pred_fallthru
          _
        %p221 = scmp.lt.s32.totalorder %s20, 1
        %s222 = scalar_select %p221, %s20, 1
        %s223 = smul.addr %s222, 4
        %s224 = smul.addr %s223, 8
        %s225 = scalar_lea.vmem %s0, %s224
        %p226 = pneg %p41
        %p227 = pneg %p38
        %p228 = pneg %p62
        %p229 = pneg %p59
        %p230 = pneg %p83
        %p231 = pneg %p80
        %p232 = pneg %p104
        %p233 = pneg %p101
        %p234 = scmp.lt.s32.totalorder %s20, 1
        %s235 = scalar_select %p234, %s20, 1
        %s236 = smul.addr %s235, 2
        %s237 = smul.addr %s236, 8
        %s238 = scalar_lea.vmem %s4, %s237
        %p239 = pneg %p130
        %p240 = pneg %p127
        %p241 = pneg %p156
        %p242 = pneg %p153
        %s243 = sand.u32 %s143, 1
        %s244 = scalar_lea.sflag [#allocation5], %s243
        %s245 = sand.u32 %s143, 1
        %s246 = smul.addr %s245, 32
        %s247 = scalar_lea.vmem [#allocation6], %s246
        %p248 = scmp.lt.s32.totalorder %s20, 1
        %s249 = scalar_select %p248, %s20, 1
        %s250 = smul.addr %s249, 4
        %s251 = smul.addr %s250, 8
        %s252 = scalar_lea.vmem %s0, %s251
        %p253 = scmp.lt.s32.totalorder %s20, 1
        %s254 = scalar_select %p253, %s20, 1
        %s255 = smul.addr %s254, 2
        %s256 = smul.addr %s255, 8
        %s257 = scalar_lea.vmem %s4, %s256
        %v259 = vld [vmem:[%s252] sm:$0xff]
        %v260 = vld [vmem:[%s252 + $0x8] sm:$0xff]
        %v261 = vld [vmem:[%s252 + $0x10] sm:$0xff]
        %v262 = vld [vmem:[%s252 + $0x18] sm:$0xff]
        %v263 = vpack.c.bf16 %v261, %v259
        %v264 = vpack.c.bf16 %v262, %v260
        %v265 = vld [vmem:[%s257] sm:$0xff]
        %v266 = vld [vmem:[%s257 + $0x8] sm:$0xff]
        %v267 = vld [vmem:[#allocation3] sm:$0xff]
        %v268 = vld [vmem:[#allocation3 + $0x8] sm:$0xff]
        %v269 = vld [vmem:[#allocation3 + $0x10] sm:$0xff]
        %v270 = vld [vmem:[#allocation3 + $0x18] sm:$0xff]
        %v271 = vld [vmem:[#allocation3 + $0x20] sm:$0xff]
        %v272 = vld [vmem:[#allocation3 + $0x28] sm:$0xff]
        %v273 = vld [vmem:[#allocation3 + $0x30] sm:$0xff]
        %v274 = vld [vmem:[#allocation3 + $0x38] sm:$0xff]
        %v275 = vld [vmem:[#allocation3 + $0x40] sm:$0xff]
        %v276 = vld [vmem:[#allocation3 + $0x48] sm:$0xff]
        %v277 = vld [vmem:[#allocation3 + $0x50] sm:$0xff]
        %v278 = vld [vmem:[#allocation3 + $0x58] sm:$0xff]
        %v279 = vld [vmem:[#allocation3 + $0x60] sm:$0xff]
        %v280 = vld [vmem:[#allocation3 + $0x68] sm:$0xff]
        %v281 = vld [vmem:[#allocation3 + $0x70] sm:$0xff]
        %v282 = vld [vmem:[#allocation3 + $0x78] sm:$0xff]
        %v283 = vld [vmem:[#allocation3 + $0x80] sm:$0xff]
        %v284 = vld [vmem:[#allocation3 + $0x88] sm:$0xff]
        %v285 = vld [vmem:[#allocation3 + $0x90] sm:$0xff]
        %v286 = vld [vmem:[#allocation3 + $0x98] sm:$0xff]
        %v287 = vld [vmem:[#allocation3 + $0xa0] sm:$0xff]
        %v288 = vld [vmem:[#allocation3 + $0xa8] sm:$0xff]
        %v289 = vld [vmem:[#allocation3 + $0xb0] sm:$0xff]
        %v290 = vld [vmem:[#allocation3 + $0xb8] sm:$0xff]
        %v291 = vld [vmem:[#allocation3 + $0xc0] sm:$0xff]
        %v292 = vld [vmem:[#allocation3 + $0xc8] sm:$0xff]
        %v293 = vld [vmem:[#allocation3 + $0xd0] sm:$0xff]
        %v294 = vld [vmem:[#allocation3 + $0xd8] sm:$0xff]
        %v295 = vld [vmem:[#allocation3 + $0xe0] sm:$0xff]
        %v296 = vld [vmem:[#allocation3 + $0xe8] sm:$0xff]
        %v297 = vld [vmem:[#allocation3 + $0xf0] sm:$0xff]
        %v298 = vld [vmem:[#allocation3 + $0xf8] sm:$0xff]
        %v299 = vld [vmem:[#allocation3 + $0x100] sm:$0xff]
        %v300 = vld [vmem:[#allocation3 + $0x108] sm:$0xff]
        %v301 = vld [vmem:[#allocation3 + $0x110] sm:$0xff]
        %v302 = vld [vmem:[#allocation3 + $0x118] sm:$0xff]
        %v303 = vld [vmem:[#allocation3 + $0x120] sm:$0xff]
        %v304 = vld [vmem:[#allocation3 + $0x128] sm:$0xff]
        %v305 = vld [vmem:[#allocation3 + $0x130] sm:$0xff]
        %v306 = vld [vmem:[#allocation3 + $0x138] sm:$0xff]
        %v307 = vld [vmem:[#allocation3 + $0x140] sm:$0xff]
        %v308 = vld [vmem:[#allocation3 + $0x148] sm:$0xff]
        %v309 = vld [vmem:[#allocation3 + $0x150] sm:$0xff]
        %v310 = vld [vmem:[#allocation3 + $0x158] sm:$0xff]
        %v311 = vld [vmem:[#allocation3 + $0x160] sm:$0xff]
        %v312 = vld [vmem:[#allocation3 + $0x168] sm:$0xff]
        %v313 = vld [vmem:[#allocation3 + $0x170] sm:$0xff]
        %v314 = vld [vmem:[#allocation3 + $0x178] sm:$0xff]
        %v315 = vld [vmem:[#allocation3 + $0x180] sm:$0xff]
        %v316 = vld [vmem:[#allocation3 + $0x188] sm:$0xff]
        %v317 = vld [vmem:[#allocation3 + $0x190] sm:$0xff]
        %v318 = vld [vmem:[#allocation3 + $0x198] sm:$0xff]
        %v319 = vld [vmem:[#allocation3 + $0x1a0] sm:$0xff]
        %v320 = vld [vmem:[#allocation3 + $0x1a8] sm:$0xff]
        %v321 = vld [vmem:[#allocation3 + $0x1b0] sm:$0xff]
        %v322 = vld [vmem:[#allocation3 + $0x1b8] sm:$0xff]
        %v323 = vld [vmem:[#allocation3 + $0x1c0] sm:$0xff]
        %v324 = vld [vmem:[#allocation3 + $0x1c8] sm:$0xff]
        %v325 = vld [vmem:[#allocation3 + $0x1d0] sm:$0xff]
        %v326 = vld [vmem:[#allocation3 + $0x1d8] sm:$0xff]
        %v327 = vld [vmem:[#allocation3 + $0x1e0] sm:$0xff]
        %v328 = vld [vmem:[#allocation3 + $0x1e8] sm:$0xff]
        %v329 = vld [vmem:[#allocation3 + $0x1f0] sm:$0xff]
        %v330 = vld [vmem:[#allocation3 + $0x1f8] sm:$0xff]
        %v331 = vld [vmem:[#allocation3 + $0x200] sm:$0xff]
        %v332 = vld [vmem:[#allocation3 + $0x208] sm:$0xff]
        %v333 = vld [vmem:[#allocation3 + $0x210] sm:$0xff]
        %v334 = vld [vmem:[#allocation3 + $0x218] sm:$0xff]
        %v335 = vld [vmem:[#allocation3 + $0x220] sm:$0xff]
        %v336 = vld [vmem:[#allocation3 + $0x228] sm:$0xff]
        %v337 = vld [vmem:[#allocation3 + $0x230] sm:$0xff]
        %v338 = vld [vmem:[#allocation3 + $0x238] sm:$0xff]
        %v339 = vld [vmem:[#allocation3 + $0x240] sm:$0xff]
        %v340 = vld [vmem:[#allocation3 + $0x248] sm:$0xff]
        %v341 = vld [vmem:[#allocation3 + $0x250] sm:$0xff]
        %v342 = vld [vmem:[#allocation3 + $0x258] sm:$0xff]
        %v343 = vld [vmem:[#allocation3 + $0x260] sm:$0xff]
        %v344 = vld [vmem:[#allocation3 + $0x268] sm:$0xff]
        %v345 = vld [vmem:[#allocation3 + $0x270] sm:$0xff]
        %v346 = vld [vmem:[#allocation3 + $0x278] sm:$0xff]
        %v347 = vld [vmem:[#allocation3 + $0x280] sm:$0xff]
        %v348 = vld [vmem:[#allocation3 + $0x288] sm:$0xff]
        %v349 = vld [vmem:[#allocation3 + $0x290] sm:$0xff]
        %v350 = vld [vmem:[#allocation3 + $0x298] sm:$0xff]
        %v351 = vld [vmem:[#allocation3 + $0x2a0] sm:$0xff]
        %v352 = vld [vmem:[#allocation3 + $0x2a8] sm:$0xff]
        %v353 = vld [vmem:[#allocation3 + $0x2b0] sm:$0xff]
        %v354 = vld [vmem:[#allocation3 + $0x2b8] sm:$0xff]
        %v355 = vld [vmem:[#allocation3 + $0x2c0] sm:$0xff]
        %v356 = vld [vmem:[#allocation3 + $0x2c8] sm:$0xff]
        %v357 = vld [vmem:[#allocation3 + $0x2d0] sm:$0xff]
        %v358 = vld [vmem:[#allocation3 + $0x2d8] sm:$0xff]
        %v359 = vld [vmem:[#allocation3 + $0x2e0] sm:$0xff]
        %v360 = vld [vmem:[#allocation3 + $0x2e8] sm:$0xff]
        %v361 = vld [vmem:[#allocation3 + $0x2f0] sm:$0xff]
        %v362 = vld [vmem:[#allocation3 + $0x2f8] sm:$0xff]
        %v363 = vld [vmem:[#allocation3 + $0x300] sm:$0xff]
        %v364 = vld [vmem:[#allocation3 + $0x308] sm:$0xff]
        %v365 = vld [vmem:[#allocation3 + $0x310] sm:$0xff]
        %v366 = vld [vmem:[#allocation3 + $0x318] sm:$0xff]
        %v367 = vld [vmem:[#allocation3 + $0x320] sm:$0xff]
        %v368 = vld [vmem:[#allocation3 + $0x328] sm:$0xff]
        %v369 = vld [vmem:[#allocation3 + $0x330] sm:$0xff]
        %v370 = vld [vmem:[#allocation3 + $0x338] sm:$0xff]
        %v371 = vld [vmem:[#allocation3 + $0x340] sm:$0xff]
        %v372 = vld [vmem:[#allocation3 + $0x348] sm:$0xff]
        %v373 = vld [vmem:[#allocation3 + $0x350] sm:$0xff]
        %v374 = vld [vmem:[#allocation3 + $0x358] sm:$0xff]
        %v375 = vld [vmem:[#allocation3 + $0x360] sm:$0xff]
        %v376 = vld [vmem:[#allocation3 + $0x368] sm:$0xff]
        %v377 = vld [vmem:[#allocation3 + $0x370] sm:$0xff]
        %v378 = vld [vmem:[#allocation3 + $0x378] sm:$0xff]
        %v379 = vld [vmem:[#allocation3 + $0x380] sm:$0xff]
        %v380 = vld [vmem:[#allocation3 + $0x388] sm:$0xff]
        %v381 = vld [vmem:[#allocation3 + $0x390] sm:$0xff]
        %v382 = vld [vmem:[#allocation3 + $0x398] sm:$0xff]
        %v383 = vld [vmem:[#allocation3 + $0x3a0] sm:$0xff]
        %v384 = vld [vmem:[#allocation3 + $0x3a8] sm:$0xff]
        %v385 = vld [vmem:[#allocation3 + $0x3b0] sm:$0xff]
        %v386 = vld [vmem:[#allocation3 + $0x3b8] sm:$0xff]
        %v387 = vld [vmem:[#allocation3 + $0x3c0] sm:$0xff]
        %v388 = vld [vmem:[#allocation3 + $0x3c8] sm:$0xff]
        %v389 = vld [vmem:[#allocation3 + $0x3d0] sm:$0xff]
        %v390 = vld [vmem:[#allocation3 + $0x3d8] sm:$0xff]
        %v391 = vld [vmem:[#allocation3 + $0x3e0] sm:$0xff]
        %v392 = vld [vmem:[#allocation3 + $0x3e8] sm:$0xff]
        %v393 = vld [vmem:[#allocation3 + $0x3f0] sm:$0xff]
        %v394 = vld [vmem:[#allocation3 + $0x3f8] sm:$0xff]
        %v395 = vld [vmem:[#allocation3 + $0x400] sm:$0xff]
        %v396 = vld [vmem:[#allocation3 + $0x408] sm:$0xff]
        %v397 = vld [vmem:[#allocation3 + $0x410] sm:$0xff]
        %v398 = vld [vmem:[#allocation3 + $0x418] sm:$0xff]
        %v399 = vld [vmem:[#allocation3 + $0x420] sm:$0xff]
        %v400 = vld [vmem:[#allocation3 + $0x428] sm:$0xff]
        %v401 = vld [vmem:[#allocation3 + $0x430] sm:$0xff]
        %v402 = vld [vmem:[#allocation3 + $0x438] sm:$0xff]
        %v403 = vld [vmem:[#allocation3 + $0x440] sm:$0xff]
        %v404 = vld [vmem:[#allocation3 + $0x448] sm:$0xff]
        %v405 = vld [vmem:[#allocation3 + $0x450] sm:$0xff]
        %v406 = vld [vmem:[#allocation3 + $0x458] sm:$0xff]
        %v407 = vld [vmem:[#allocation3 + $0x460] sm:$0xff]
        %v408 = vld [vmem:[#allocation3 + $0x468] sm:$0xff]
        %v409 = vld [vmem:[#allocation3 + $0x470] sm:$0xff]
        %v410 = vld [vmem:[#allocation3 + $0x478] sm:$0xff]
        %v555 = vunpack.c.l.b16 %v267
        %v556 = vunpack.c.h.b16 %v267
        %v557 = vunpack.c.l.b16 %v268
        %v558 = vunpack.c.h.b16 %v268
        %v559 = vunpack.c.l.b16 %v269
        %v560 = vunpack.c.h.b16 %v269
        %v561 = vunpack.c.l.b16 %v270
        %v562 = vunpack.c.h.b16 %v270
        %v563 = vunpack.c.l.b16 %v271
        %v564 = vunpack.c.h.b16 %v271
        %v565 = vunpack.c.l.b16 %v272
        %v566 = vunpack.c.h.b16 %v272
        %v567 = vunpack.c.l.b16 %v273
        %v568 = vunpack.c.h.b16 %v273
        %v569 = vunpack.c.l.b16 %v274
        %v570 = vunpack.c.h.b16 %v274
        %v571 = vunpack.c.l.b16 %v275
        %v572 = vunpack.c.h.b16 %v275
        %v573 = vunpack.c.l.b16 %v276
        %v574 = vunpack.c.h.b16 %v276
        %v575 = vunpack.c.l.b16 %v277
        %v576 = vunpack.c.h.b16 %v277
        %v577 = vunpack.c.l.b16 %v278
        %v578 = vunpack.c.h.b16 %v278
        %v579 = vunpack.c.l.b16 %v279
        %v580 = vunpack.c.h.b16 %v279
        %v581 = vunpack.c.l.b16 %v280
        %v582 = vunpack.c.h.b16 %v280
        %v583 = vunpack.c.l.b16 %v281
        %v584 = vunpack.c.h.b16 %v281
        %v585 = vunpack.c.l.b16 %v282
        %v586 = vunpack.c.h.b16 %v282
        %v587 = vunpack.c.l.b16 %v283
        %v588 = vunpack.c.h.b16 %v283
        %v589 = vunpack.c.l.b16 %v284
        %v590 = vunpack.c.h.b16 %v284
        %v591 = vunpack.c.l.b16 %v285
        %v592 = vunpack.c.h.b16 %v285
        %v593 = vunpack.c.l.b16 %v286
        %v594 = vunpack.c.h.b16 %v286
        %v595 = vunpack.c.l.b16 %v287
        %v596 = vunpack.c.h.b16 %v287
        %v597 = vunpack.c.l.b16 %v288
        %v598 = vunpack.c.h.b16 %v288
        %v599 = vunpack.c.l.b16 %v289
        %v600 = vunpack.c.h.b16 %v289
        %v601 = vunpack.c.l.b16 %v290
        %v602 = vunpack.c.h.b16 %v290
        %v603 = vunpack.c.l.b16 %v291
        %v604 = vunpack.c.h.b16 %v291
        %v605 = vunpack.c.l.b16 %v292
        %v606 = vunpack.c.h.b16 %v292
        %v607 = vunpack.c.l.b16 %v293
        %v608 = vunpack.c.h.b16 %v293
        %v609 = vunpack.c.l.b16 %v294
        %v610 = vunpack.c.h.b16 %v294
        %v611 = vunpack.c.l.b16 %v295
        %v612 = vunpack.c.h.b16 %v295
        %v613 = vunpack.c.l.b16 %v296
        %v614 = vunpack.c.h.b16 %v296
        %v615 = vunpack.c.l.b16 %v297
        %v616 = vunpack.c.h.b16 %v297
        %v617 = vunpack.c.l.b16 %v298
        %v618 = vunpack.c.h.b16 %v298
        %v619 = vunpack.c.l.b16 %v299
        %v620 = vunpack.c.h.b16 %v299
        %v621 = vunpack.c.l.b16 %v300
        %v622 = vunpack.c.h.b16 %v300
        %v623 = vunpack.c.l.b16 %v301
        %v624 = vunpack.c.h.b16 %v301
        %v625 = vunpack.c.l.b16 %v302
        %v626 = vunpack.c.h.b16 %v302
        %v627 = vunpack.c.l.b16 %v303
        %v628 = vunpack.c.h.b16 %v303
        %v629 = vunpack.c.l.b16 %v304
        %v630 = vunpack.c.h.b16 %v304
        %v631 = vunpack.c.l.b16 %v305
        %v632 = vunpack.c.h.b16 %v305
        %v633 = vunpack.c.l.b16 %v306
        %v634 = vunpack.c.h.b16 %v306
        %v635 = vunpack.c.l.b16 %v307
        %v636 = vunpack.c.h.b16 %v307
        %v637 = vunpack.c.l.b16 %v308
        %v638 = vunpack.c.h.b16 %v308
        %v639 = vunpack.c.l.b16 %v309
        %v640 = vunpack.c.h.b16 %v309
        %v641 = vunpack.c.l.b16 %v310
        %v642 = vunpack.c.h.b16 %v310
        %v643 = vunpack.c.l.b16 %v311
        %v644 = vunpack.c.h.b16 %v311
        %v645 = vunpack.c.l.b16 %v312
        %v646 = vunpack.c.h.b16 %v312
        %v647 = vunpack.c.l.b16 %v313
        %v648 = vunpack.c.h.b16 %v313
        %v649 = vunpack.c.l.b16 %v314
        %v650 = vunpack.c.h.b16 %v314
        %v651 = vunpack.c.l.b16 %v315
        %v652 = vunpack.c.h.b16 %v315
        %v653 = vunpack.c.l.b16 %v316
        %v654 = vunpack.c.h.b16 %v316
        %v655 = vunpack.c.l.b16 %v317
        %v656 = vunpack.c.h.b16 %v317
        %v657 = vunpack.c.l.b16 %v318
        %v658 = vunpack.c.h.b16 %v318
        %v659 = vunpack.c.l.b16 %v319
        %v660 = vunpack.c.h.b16 %v319
        %v661 = vunpack.c.l.b16 %v320
        %v662 = vunpack.c.h.b16 %v320
        %v663 = vunpack.c.l.b16 %v321
        %v664 = vunpack.c.h.b16 %v321
        %v665 = vunpack.c.l.b16 %v322
        %v666 = vunpack.c.h.b16 %v322
        %v667 = vunpack.c.l.b16 %v323
        %v668 = vunpack.c.h.b16 %v323
        %v669 = vunpack.c.l.b16 %v324
        %v670 = vunpack.c.h.b16 %v324
        %v671 = vunpack.c.l.b16 %v325
        %v672 = vunpack.c.h.b16 %v325
        %v673 = vunpack.c.l.b16 %v326
        %v674 = vunpack.c.h.b16 %v326
        %v675 = vunpack.c.l.b16 %v327
        %v676 = vunpack.c.h.b16 %v327
        %v677 = vunpack.c.l.b16 %v328
        %v678 = vunpack.c.h.b16 %v328
        %v679 = vunpack.c.l.b16 %v329
        %v680 = vunpack.c.h.b16 %v329
        %v681 = vunpack.c.l.b16 %v330
        %v682 = vunpack.c.h.b16 %v330
        %v683 = vunpack.c.l.b16 %v331
        %v684 = vunpack.c.h.b16 %v331
        %v685 = vunpack.c.l.b16 %v332
        %v686 = vunpack.c.h.b16 %v332
        %v687 = vunpack.c.l.b16 %v333
        %v688 = vunpack.c.h.b16 %v333
        %v689 = vunpack.c.l.b16 %v334
        %v690 = vunpack.c.h.b16 %v334
        %v691 = vunpack.c.l.b16 %v335
        %v692 = vunpack.c.h.b16 %v335
        %v693 = vunpack.c.l.b16 %v336
        %v694 = vunpack.c.h.b16 %v336
        %v695 = vunpack.c.l.b16 %v337
        %v696 = vunpack.c.h.b16 %v337
        %v697 = vunpack.c.l.b16 %v338
        %v698 = vunpack.c.h.b16 %v338
        %v699 = vunpack.c.l.b16 %v339
        %v700 = vunpack.c.h.b16 %v339
        %v701 = vunpack.c.l.b16 %v340
        %v702 = vunpack.c.h.b16 %v340
        %v703 = vunpack.c.l.b16 %v341
        %v704 = vunpack.c.h.b16 %v341
        %v705 = vunpack.c.l.b16 %v342
        %v706 = vunpack.c.h.b16 %v342
        %v707 = vunpack.c.l.b16 %v343
        %v708 = vunpack.c.h.b16 %v343
        %v709 = vunpack.c.l.b16 %v344
        %v710 = vunpack.c.h.b16 %v344
        %v711 = vunpack.c.l.b16 %v345
        %v712 = vunpack.c.h.b16 %v345
        %v713 = vunpack.c.l.b16 %v346
        %v714 = vunpack.c.h.b16 %v346
        %v715 = vunpack.c.l.b16 %v347
        %v716 = vunpack.c.h.b16 %v347
        %v717 = vunpack.c.l.b16 %v348
        %v718 = vunpack.c.h.b16 %v348
        %v719 = vunpack.c.l.b16 %v349
        %v720 = vunpack.c.h.b16 %v349
        %v721 = vunpack.c.l.b16 %v350
        %v722 = vunpack.c.h.b16 %v350
        %v723 = vunpack.c.l.b16 %v351
        %v724 = vunpack.c.h.b16 %v351
        %v725 = vunpack.c.l.b16 %v352
        %v726 = vunpack.c.h.b16 %v352
        %v727 = vunpack.c.l.b16 %v353
        %v728 = vunpack.c.h.b16 %v353
        %v729 = vunpack.c.l.b16 %v354
        %v730 = vunpack.c.h.b16 %v354
        %v731 = vunpack.c.l.b16 %v355
        %v732 = vunpack.c.h.b16 %v355
        %v733 = vunpack.c.l.b16 %v356
        %v734 = vunpack.c.h.b16 %v356
        %v735 = vunpack.c.l.b16 %v357
        %v736 = vunpack.c.h.b16 %v357
        %v737 = vunpack.c.l.b16 %v358
        %v738 = vunpack.c.h.b16 %v358
        %v739 = vunpack.c.l.b16 %v359
        %v740 = vunpack.c.h.b16 %v359
        %v741 = vunpack.c.l.b16 %v360
        %v742 = vunpack.c.h.b16 %v360
        %v743 = vunpack.c.l.b16 %v361
        %v744 = vunpack.c.h.b16 %v361
        %v745 = vunpack.c.l.b16 %v362
        %v746 = vunpack.c.h.b16 %v362
        %v747 = vunpack.c.l.b16 %v363
        %v748 = vunpack.c.h.b16 %v363
        %v749 = vunpack.c.l.b16 %v364
        %v750 = vunpack.c.h.b16 %v364
        %v751 = vunpack.c.l.b16 %v365
        %v752 = vunpack.c.h.b16 %v365
        %v753 = vunpack.c.l.b16 %v366
        %v754 = vunpack.c.h.b16 %v366
        %v755 = vunpack.c.l.b16 %v367
        %v756 = vunpack.c.h.b16 %v367
        %v757 = vunpack.c.l.b16 %v368
        %v758 = vunpack.c.h.b16 %v368
        %v759 = vunpack.c.l.b16 %v369
        %v760 = vunpack.c.h.b16 %v369
        %v761 = vunpack.c.l.b16 %v370
        %v762 = vunpack.c.h.b16 %v370
        %v763 = vunpack.c.l.b16 %v371
        %v764 = vunpack.c.h.b16 %v371
        %v765 = vunpack.c.l.b16 %v372
        %v766 = vunpack.c.h.b16 %v372
        %v767 = vunpack.c.l.b16 %v373
        %v768 = vunpack.c.h.b16 %v373
        %v769 = vunpack.c.l.b16 %v374
        %v770 = vunpack.c.h.b16 %v374
        %v771 = vunpack.c.l.b16 %v375
        %v772 = vunpack.c.h.b16 %v375
        %v773 = vunpack.c.l.b16 %v376
        %v774 = vunpack.c.h.b16 %v376
        %v775 = vunpack.c.l.b16 %v377
        %v776 = vunpack.c.h.b16 %v377
        %v777 = vunpack.c.l.b16 %v378
        %v778 = vunpack.c.h.b16 %v378
        %v779 = vunpack.c.l.b16 %v379
        %v780 = vunpack.c.h.b16 %v379
        %v781 = vunpack.c.l.b16 %v380
        %v782 = vunpack.c.h.b16 %v380
        %v783 = vunpack.c.l.b16 %v381
        %v784 = vunpack.c.h.b16 %v381
        %v785 = vunpack.c.l.b16 %v382
        %v786 = vunpack.c.h.b16 %v382
        %v787 = vunpack.c.l.b16 %v383
        %v788 = vunpack.c.h.b16 %v383
        %v789 = vunpack.c.l.b16 %v384
        %v790 = vunpack.c.h.b16 %v384
        %v791 = vunpack.c.l.b16 %v385
        %v792 = vunpack.c.h.b16 %v385
        %v793 = vunpack.c.l.b16 %v386
        %v794 = vunpack.c.h.b16 %v386
        %v795 = vunpack.c.l.b16 %v387
        %v796 = vunpack.c.h.b16 %v387
        %v797 = vunpack.c.l.b16 %v388
        %v798 = vunpack.c.h.b16 %v388
        %v799 = vunpack.c.l.b16 %v389
        %v800 = vunpack.c.h.b16 %v389
        %v801 = vunpack.c.l.b16 %v390
        %v802 = vunpack.c.h.b16 %v390
        %v803 = vunpack.c.l.b16 %v391
        %v804 = vunpack.c.h.b16 %v391
        %v805 = vunpack.c.l.b16 %v392
        %v806 = vunpack.c.h.b16 %v392
        %v807 = vunpack.c.l.b16 %v393
        %v808 = vunpack.c.h.b16 %v393
        %v809 = vunpack.c.l.b16 %v394
        %v810 = vunpack.c.h.b16 %v394
        %v811 = vunpack.c.l.b16 %v395
        %v812 = vunpack.c.h.b16 %v395
        %v813 = vunpack.c.l.b16 %v396
        %v814 = vunpack.c.h.b16 %v396
        %v815 = vunpack.c.l.b16 %v397
        %v816 = vunpack.c.h.b16 %v397
        %v817 = vunpack.c.l.b16 %v398
        %v818 = vunpack.c.h.b16 %v398
        %v819 = vunpack.c.l.b16 %v399
        %v820 = vunpack.c.h.b16 %v399
        %v821 = vunpack.c.l.b16 %v400
        %v822 = vunpack.c.h.b16 %v400
        %v823 = vunpack.c.l.b16 %v401
        %v824 = vunpack.c.h.b16 %v401
        %v825 = vunpack.c.l.b16 %v402
        %v826 = vunpack.c.h.b16 %v402
        %v827 = vunpack.c.l.b16 %v403
        %v828 = vunpack.c.h.b16 %v403
        %v829 = vunpack.c.l.b16 %v404
        %v830 = vunpack.c.h.b16 %v404
        %v831 = vunpack.c.l.b16 %v405
        %v832 = vunpack.c.h.b16 %v405
        %v833 = vunpack.c.l.b16 %v406
        %v834 = vunpack.c.h.b16 %v406
        %v835 = vunpack.c.l.b16 %v407
        %v836 = vunpack.c.h.b16 %v407
        %v837 = vunpack.c.l.b16 %v408
        %v838 = vunpack.c.h.b16 %v408
        %v839 = vunpack.c.l.b16 %v409
        %v840 = vunpack.c.h.b16 %v409
        %v841 = vunpack.c.l.b16 %v410
        %v842 = vunpack.c.h.b16 %v410
        %v843 = vpack.c.b16 %v567, %v555
        %v844 = vpack.c.b16 %v568, %v556
        %v845 = vpack.c.b16 %v569, %v557
        %v846 = vpack.c.b16 %v570, %v558
        %v847 = vpack.c.b16 %v571, %v559
        %v848 = vpack.c.b16 %v572, %v560
        %v849 = vpack.c.b16 %v573, %v561
        %v850 = vpack.c.b16 %v574, %v562
        %v851 = vpack.c.b16 %v575, %v563
        %v852 = vpack.c.b16 %v576, %v564
        %v853 = vpack.c.b16 %v577, %v565
        %v854 = vpack.c.b16 %v578, %v566
        %v855 = vpack.c.b16 %v591, %v579
        %v856 = vpack.c.b16 %v592, %v580
        %v857 = vpack.c.b16 %v593, %v581
        %v858 = vpack.c.b16 %v594, %v582
        %v859 = vpack.c.b16 %v595, %v583
        %v860 = vpack.c.b16 %v596, %v584
        %v861 = vpack.c.b16 %v597, %v585
        %v862 = vpack.c.b16 %v598, %v586
        %v863 = vpack.c.b16 %v599, %v587
        %v864 = vpack.c.b16 %v600, %v588
        %v865 = vpack.c.b16 %v601, %v589
        %v866 = vpack.c.b16 %v602, %v590
        %v867 = vpack.c.b16 %v615, %v603
        %v868 = vpack.c.b16 %v616, %v604
        %v869 = vpack.c.b16 %v617, %v605
        %v870 = vpack.c.b16 %v618, %v606
        %v871 = vpack.c.b16 %v619, %v607
        %v872 = vpack.c.b16 %v620, %v608
        %v873 = vpack.c.b16 %v621, %v609
        %v874 = vpack.c.b16 %v622, %v610
        %v875 = vpack.c.b16 %v623, %v611
        %v876 = vpack.c.b16 %v624, %v612
        %v877 = vpack.c.b16 %v625, %v613
        %v878 = vpack.c.b16 %v626, %v614
        %v879 = vpack.c.b16 %v639, %v627
        %v880 = vpack.c.b16 %v640, %v628
        %v881 = vpack.c.b16 %v641, %v629
        %v882 = vpack.c.b16 %v642, %v630
        %v883 = vpack.c.b16 %v643, %v631
        %v884 = vpack.c.b16 %v644, %v632
        %v885 = vpack.c.b16 %v645, %v633
        %v886 = vpack.c.b16 %v646, %v634
        %v887 = vpack.c.b16 %v647, %v635
        %v888 = vpack.c.b16 %v648, %v636
        %v889 = vpack.c.b16 %v649, %v637
        %v890 = vpack.c.b16 %v650, %v638
        %v891 = vpack.c.b16 %v663, %v651
        %v892 = vpack.c.b16 %v664, %v652
        %v893 = vpack.c.b16 %v665, %v653
        %v894 = vpack.c.b16 %v666, %v654
        %v895 = vpack.c.b16 %v667, %v655
        %v896 = vpack.c.b16 %v668, %v656
        %v897 = vpack.c.b16 %v669, %v657
        %v898 = vpack.c.b16 %v670, %v658
        %v899 = vpack.c.b16 %v671, %v659
        %v900 = vpack.c.b16 %v672, %v660
        %v901 = vpack.c.b16 %v673, %v661
        %v902 = vpack.c.b16 %v674, %v662
        %v903 = vpack.c.b16 %v687, %v675
        %v904 = vpack.c.b16 %v688, %v676
        %v905 = vpack.c.b16 %v689, %v677
        %v906 = vpack.c.b16 %v690, %v678
        %v907 = vpack.c.b16 %v691, %v679
        %v908 = vpack.c.b16 %v692, %v680
        %v909 = vpack.c.b16 %v693, %v681
        %v910 = vpack.c.b16 %v694, %v682
        %v911 = vpack.c.b16 %v695, %v683
        %v912 = vpack.c.b16 %v696, %v684
        %v913 = vpack.c.b16 %v697, %v685
        %v914 = vpack.c.b16 %v698, %v686
        %v915 = vpack.c.b16 %v711, %v699
        %v916 = vpack.c.b16 %v712, %v700
        %v917 = vpack.c.b16 %v713, %v701
        %v918 = vpack.c.b16 %v714, %v702
        %v919 = vpack.c.b16 %v715, %v703
        %v920 = vpack.c.b16 %v716, %v704
        %v921 = vpack.c.b16 %v717, %v705
        %v922 = vpack.c.b16 %v718, %v706
        %v923 = vpack.c.b16 %v719, %v707
        %v924 = vpack.c.b16 %v720, %v708
        %v925 = vpack.c.b16 %v721, %v709
        %v926 = vpack.c.b16 %v722, %v710
        %v927 = vpack.c.b16 %v735, %v723
        %v928 = vpack.c.b16 %v736, %v724
        %v929 = vpack.c.b16 %v737, %v725
        %v930 = vpack.c.b16 %v738, %v726
        %v931 = vpack.c.b16 %v739, %v727
        %v932 = vpack.c.b16 %v740, %v728
        %v933 = vpack.c.b16 %v741, %v729
        %v934 = vpack.c.b16 %v742, %v730
        %v935 = vpack.c.b16 %v743, %v731
        %v936 = vpack.c.b16 %v744, %v732
        %v937 = vpack.c.b16 %v745, %v733
        %v938 = vpack.c.b16 %v746, %v734
        %v939 = vpack.c.b16 %v759, %v747
        %v940 = vpack.c.b16 %v760, %v748
        %v941 = vpack.c.b16 %v761, %v749
        %v942 = vpack.c.b16 %v762, %v750
        %v943 = vpack.c.b16 %v763, %v751
        %v944 = vpack.c.b16 %v764, %v752
        %v945 = vpack.c.b16 %v765, %v753
        %v946 = vpack.c.b16 %v766, %v754
        %v947 = vpack.c.b16 %v767, %v755
        %v948 = vpack.c.b16 %v768, %v756
        %v949 = vpack.c.b16 %v769, %v757
        %v950 = vpack.c.b16 %v770, %v758
        %v951 = vpack.c.b16 %v783, %v771
        %v952 = vpack.c.b16 %v784, %v772
        %v953 = vpack.c.b16 %v785, %v773
        %v954 = vpack.c.b16 %v786, %v774
        %v955 = vpack.c.b16 %v787, %v775
        %v956 = vpack.c.b16 %v788, %v776
        %v957 = vpack.c.b16 %v789, %v777
        %v958 = vpack.c.b16 %v790, %v778
        %v959 = vpack.c.b16 %v791, %v779
        %v960 = vpack.c.b16 %v792, %v780
        %v961 = vpack.c.b16 %v793, %v781
        %v962 = vpack.c.b16 %v794, %v782
        %v963 = vpack.c.b16 %v807, %v795
        %v964 = vpack.c.b16 %v808, %v796
        %v965 = vpack.c.b16 %v809, %v797
        %v966 = vpack.c.b16 %v810, %v798
        %v967 = vpack.c.b16 %v811, %v799
        %v968 = vpack.c.b16 %v812, %v800
        %v969 = vpack.c.b16 %v813, %v801
        %v970 = vpack.c.b16 %v814, %v802
        %v971 = vpack.c.b16 %v815, %v803
        %v972 = vpack.c.b16 %v816, %v804
        %v973 = vpack.c.b16 %v817, %v805
        %v974 = vpack.c.b16 %v818, %v806
        %v975 = vpack.c.b16 %v831, %v819
        %v976 = vpack.c.b16 %v832, %v820
        %v977 = vpack.c.b16 %v833, %v821
        %v978 = vpack.c.b16 %v834, %v822
        %v979 = vpack.c.b16 %v835, %v823
        %v980 = vpack.c.b16 %v836, %v824
        %v981 = vpack.c.b16 %v837, %v825
        %v982 = vpack.c.b16 %v838, %v826
        %v983 = vpack.c.b16 %v839, %v827
        %v984 = vpack.c.b16 %v840, %v828
        %v985 = vpack.c.b16 %v841, %v829
        %v986 = vpack.c.b16 %v842, %v830
        %vm1131 = vcmask 523264
        %v1133 = vsel %vm1131, %v264, 0
        %1135 = vmatprep.subr.bf16.mxu0 %v928
        %1136 = vmatpush1.bf16.msra.mxu0 %v927
        %1137 = vmatprep.subr.bf16.mxu0 %v916
        %1138 = vmatpush1.bf16.msra.mxu0 %v915
        %1139 = vmatprep.subr.bf16.mxu0 %v904
        %1140 = vmatpush1.bf16.msra.mxu0 %v903
        %1141 = vmatprep.subr.bf16.mxu0 %v892
        %1142 = vmatpush1.bf16.msra.mxu0 %v891
        %1143 = vmatprep.subr.bf16.mxu0 %v880
        %1144 = vmatpush1.bf16.msra.mxu0 %v879
        %1145 = vmatprep.subr.bf16.mxu0 %v868
        %1146 = vmatpush1.bf16.msra.mxu0 %v867
        %1147 = vmatprep.subr.bf16.mxu0 %v856
        %1148 = vmatpush1.bf16.msra.mxu0 %v855
        %1149 = vmatprep.subr.bf16.mxu0 %v844
        %1150 = vmatpush1.bf16.msra.mxu0 %v843
        %1151 = vmatprep.subr.bf16.mxu0 0
        %1152 = vmatpush2.bf16.msra.mxu0 0
        %1153 = vmatprep.subr.bf16.mxu0 0
        %1154 = vmatpush2.bf16.msra.mxu0 0
        %1155 = vmatprep.subr.bf16.mxu0 0
        %1156 = vmatpush2.bf16.msra.mxu0 0
        %1157 = vmatprep.subr.bf16.mxu0 0
        %1158 = vmatpush2.bf16.msra.mxu0 0
        %1159 = vmatprep.subr.bf16.mxu0 %v976
        %1160 = vmatpush2.bf16.msra.mxu0 %v975
        %1161 = vmatprep.subr.bf16.mxu0 %v964
        %1162 = vmatpush2.bf16.msra.mxu0 %v963
        %1163 = vmatprep.subr.bf16.mxu0 %v952
        %1164 = vmatpush2.bf16.msra.mxu0 %v951
        %1165 = vmatprep.subr.bf16.mxu0 %v940
        %1166 = vmatpush2.bf16.msra.mxu0 %v939
        %1167 = vmatprep.mubr.bf16.mxu0 %v1133
        %1168 = vmatmul.mubr.bf16.gmra.mxu0 %v263
        %v1169 = vpop.f32.mrf.mxu0
        %v1170 = vadd.f32 0.0, %v1169
        %v1171 = vpop.f32.mrf.mxu0
        %v1172 = vadd.f32 0.0, %v1171
        %v1173 = vpop.f32.mrf.mxu0
        %v1174 = vadd.f32 0.0, %v1173
        %v1175 = vpop.f32.mrf.mxu0
        %v1176 = vadd.f32 0.0, %v1175
        %1177 = vdwg.mxu0
        %1178 = vmatprep.subr.bf16.mxu0 %v930
        %1179 = vmatpush1.bf16.msra.mxu0 %v929
        %1180 = vmatprep.subr.bf16.mxu0 %v918
        %1181 = vmatpush1.bf16.msra.mxu0 %v917
        %1182 = vmatprep.subr.bf16.mxu0 %v906
        %1183 = vmatpush1.bf16.msra.mxu0 %v905
        %1184 = vmatprep.subr.bf16.mxu0 %v894
        %1185 = vmatpush1.bf16.msra.mxu0 %v893
        %1186 = vmatprep.subr.bf16.mxu0 %v882
        %1187 = vmatpush1.bf16.msra.mxu0 %v881
        %1188 = vmatprep.subr.bf16.mxu0 %v870
        %1189 = vmatpush1.bf16.msra.mxu0 %v869
        %1190 = vmatprep.subr.bf16.mxu0 %v858
        %1191 = vmatpush1.bf16.msra.mxu0 %v857
        %1192 = vmatprep.subr.bf16.mxu0 %v846
        %1193 = vmatpush1.bf16.msra.mxu0 %v845
        %1194 = vmatprep.subr.bf16.mxu0 0
        %1195 = vmatpush2.bf16.msra.mxu0 0
        %1196 = vmatprep.subr.bf16.mxu0 0
        %1197 = vmatpush2.bf16.msra.mxu0 0
        %1198 = vmatprep.subr.bf16.mxu0 0
        %1199 = vmatpush2.bf16.msra.mxu0 0
        %1200 = vmatprep.subr.bf16.mxu0 0
        %1201 = vmatpush2.bf16.msra.mxu0 0
        %1202 = vmatprep.subr.bf16.mxu0 %v978
        %1203 = vmatpush2.bf16.msra.mxu0 %v977
        %1204 = vmatprep.subr.bf16.mxu0 %v966
        %1205 = vmatpush2.bf16.msra.mxu0 %v965
        %1206 = vmatprep.subr.bf16.mxu0 %v954
        %1207 = vmatpush2.bf16.msra.mxu0 %v953
        %1208 = vmatprep.subr.bf16.mxu0 %v942
        %1209 = vmatpush2.bf16.msra.mxu0 %v941
        %1210 = vmatprep.mubr.bf16.mxu0 %v1133
        %1211 = vmatmul.mubr.bf16.gmra.mxu0 %v263
        %v1212 = vpop.f32.mrf.mxu0
        %v1213 = vadd.f32 0.0, %v1212
        %v1214 = vpop.f32.mrf.mxu0
        %v1215 = vadd.f32 0.0, %v1214
        %v1216 = vpop.f32.mrf.mxu0
        %v1217 = vadd.f32 0.0, %v1216
        %v1218 = vpop.f32.mrf.mxu0
        %v1219 = vadd.f32 0.0, %v1218
        %1220 = vdwg.mxu0
        %1221 = vmatprep.subr.bf16.mxu0 %v932
        %1222 = vmatpush1.bf16.msra.mxu0 %v931
        %1223 = vmatprep.subr.bf16.mxu0 %v920
        %1224 = vmatpush1.bf16.msra.mxu0 %v919
        %1225 = vmatprep.subr.bf16.mxu0 %v908
        %1226 = vmatpush1.bf16.msra.mxu0 %v907
        %1227 = vmatprep.subr.bf16.mxu0 %v896
        %1228 = vmatpush1.bf16.msra.mxu0 %v895
        %1229 = vmatprep.subr.bf16.mxu0 %v884
        %1230 = vmatpush1.bf16.msra.mxu0 %v883
        %1231 = vmatprep.subr.bf16.mxu0 %v872
        %1232 = vmatpush1.bf16.msra.mxu0 %v871
        %1233 = vmatprep.subr.bf16.mxu0 %v860
        %1234 = vmatpush1.bf16.msra.mxu0 %v859
        %1235 = vmatprep.subr.bf16.mxu0 %v848
        %1236 = vmatpush1.bf16.msra.mxu0 %v847
        %1237 = vmatprep.subr.bf16.mxu0 0
        %1238 = vmatpush2.bf16.msra.mxu0 0
        %1239 = vmatprep.subr.bf16.mxu0 0
        %1240 = vmatpush2.bf16.msra.mxu0 0
        %1241 = vmatprep.subr.bf16.mxu0 0
        %1242 = vmatpush2.bf16.msra.mxu0 0
        %1243 = vmatprep.subr.bf16.mxu0 0
        %1244 = vmatpush2.bf16.msra.mxu0 0
        %1245 = vmatprep.subr.bf16.mxu0 %v980
        %1246 = vmatpush2.bf16.msra.mxu0 %v979
        %1247 = vmatprep.subr.bf16.mxu0 %v968
        %1248 = vmatpush2.bf16.msra.mxu0 %v967
        %1249 = vmatprep.subr.bf16.mxu0 %v956
        %1250 = vmatpush2.bf16.msra.mxu0 %v955
        %1251 = vmatprep.subr.bf16.mxu0 %v944
        %1252 = vmatpush2.bf16.msra.mxu0 %v943
        %1253 = vmatprep.mubr.bf16.mxu0 %v1133
        %1254 = vmatmul.mubr.bf16.gmra.mxu0 %v263
        %v1255 = vpop.f32.mrf.mxu0
        %v1256 = vadd.f32 0.0, %v1255
        %v1257 = vpop.f32.mrf.mxu0
        %v1258 = vadd.f32 0.0, %v1257
        %v1259 = vpop.f32.mrf.mxu0
        %v1260 = vadd.f32 0.0, %v1259
        %v1261 = vpop.f32.mrf.mxu0
        %v1262 = vadd.f32 0.0, %v1261
        %1263 = vdwg.mxu0
        %1264 = vmatprep.subr.bf16.mxu0 %v934
        %1265 = vmatpush1.bf16.msra.mxu0 %v933
        %1266 = vmatprep.subr.bf16.mxu0 %v922
        %1267 = vmatpush1.bf16.msra.mxu0 %v921
        %1268 = vmatprep.subr.bf16.mxu0 %v910
        %1269 = vmatpush1.bf16.msra.mxu0 %v909
        %1270 = vmatprep.subr.bf16.mxu0 %v898
        %1271 = vmatpush1.bf16.msra.mxu0 %v897
        %1272 = vmatprep.subr.bf16.mxu0 %v886
        %1273 = vmatpush1.bf16.msra.mxu0 %v885
        %1274 = vmatprep.subr.bf16.mxu0 %v874
        %1275 = vmatpush1.bf16.msra.mxu0 %v873
        %1276 = vmatprep.subr.bf16.mxu0 %v862
        %1277 = vmatpush1.bf16.msra.mxu0 %v861
        %1278 = vmatprep.subr.bf16.mxu0 %v850
        %1279 = vmatpush1.bf16.msra.mxu0 %v849
        %1280 = vmatprep.subr.bf16.mxu0 0
        %1281 = vmatpush2.bf16.msra.mxu0 0
        %1282 = vmatprep.subr.bf16.mxu0 0
        %1283 = vmatpush2.bf16.msra.mxu0 0
        %1284 = vmatprep.subr.bf16.mxu0 0
        %1285 = vmatpush2.bf16.msra.mxu0 0
        %1286 = vmatprep.subr.bf16.mxu0 0
        %1287 = vmatpush2.bf16.msra.mxu0 0
        %1288 = vmatprep.subr.bf16.mxu0 %v982
        %1289 = vmatpush2.bf16.msra.mxu0 %v981
        %1290 = vmatprep.subr.bf16.mxu0 %v970
        %1291 = vmatpush2.bf16.msra.mxu0 %v969
        %1292 = vmatprep.subr.bf16.mxu0 %v958
        %1293 = vmatpush2.bf16.msra.mxu0 %v957
        %1294 = vmatprep.subr.bf16.mxu0 %v946
        %1295 = vmatpush2.bf16.msra.mxu0 %v945
        %1296 = vmatprep.mubr.bf16.mxu0 %v1133
        %1297 = vmatmul.mubr.bf16.gmra.mxu0 %v263
        %v1298 = vpop.f32.mrf.mxu0
        %v1299 = vadd.f32 0.0, %v1298
        %v1300 = vpop.f32.mrf.mxu0
        %v1301 = vadd.f32 0.0, %v1300
        %v1302 = vpop.f32.mrf.mxu0
        %v1303 = vadd.f32 0.0, %v1302
        %v1304 = vpop.f32.mrf.mxu0
        %v1305 = vadd.f32 0.0, %v1304
        %1306 = vdwg.mxu0
        %1307 = vmatprep.subr.bf16.mxu0 %v936
        %1308 = vmatpush1.bf16.msra.mxu0 %v935
        %1309 = vmatprep.subr.bf16.mxu0 %v924
        %1310 = vmatpush1.bf16.msra.mxu0 %v923
        %1311 = vmatprep.subr.bf16.mxu0 %v912
        %1312 = vmatpush1.bf16.msra.mxu0 %v911
        %1313 = vmatprep.subr.bf16.mxu0 %v900
        %1314 = vmatpush1.bf16.msra.mxu0 %v899
        %1315 = vmatprep.subr.bf16.mxu0 %v888
        %1316 = vmatpush1.bf16.msra.mxu0 %v887
        %1317 = vmatprep.subr.bf16.mxu0 %v876
        %1318 = vmatpush1.bf16.msra.mxu0 %v875
        %1319 = vmatprep.subr.bf16.mxu0 %v864
        %1320 = vmatpush1.bf16.msra.mxu0 %v863
        %1321 = vmatprep.subr.bf16.mxu0 %v852
        %1322 = vmatpush1.bf16.msra.mxu0 %v851
        %1323 = vmatprep.subr.bf16.mxu0 0
        %1324 = vmatpush2.bf16.msra.mxu0 0
        %1325 = vmatprep.subr.bf16.mxu0 0
        %1326 = vmatpush2.bf16.msra.mxu0 0
        %1327 = vmatprep.subr.bf16.mxu0 0
        %1328 = vmatpush2.bf16.msra.mxu0 0
        %1329 = vmatprep.subr.bf16.mxu0 0
        %1330 = vmatpush2.bf16.msra.mxu0 0
        %1331 = vmatprep.subr.bf16.mxu0 %v984
        %1332 = vmatpush2.bf16.msra.mxu0 %v983
        %1333 = vmatprep.subr.bf16.mxu0 %v972
        %1334 = vmatpush2.bf16.msra.mxu0 %v971
        %1335 = vmatprep.subr.bf16.mxu0 %v960
        %1336 = vmatpush2.bf16.msra.mxu0 %v959
        %1337 = vmatprep.subr.bf16.mxu0 %v948
        %1338 = vmatpush2.bf16.msra.mxu0 %v947
        %1339 = vmatprep.mubr.bf16.mxu0 %v1133
        %1340 = vmatmul.mubr.bf16.gmra.mxu0 %v263
        %v1341 = vpop.f32.mrf.mxu0
        %v1342 = vadd.f32 0.0, %v1341
        %v1343 = vpop.f32.mrf.mxu0
        %v1344 = vadd.f32 0.0, %v1343
        %v1345 = vpop.f32.mrf.mxu0
        %v1346 = vadd.f32 0.0, %v1345
        %v1347 = vpop.f32.mrf.mxu0
        %v1348 = vadd.f32 0.0, %v1347
        %1349 = vdwg.mxu0
        %1350 = vmatprep.subr.bf16.mxu0 %v938
        %1351 = vmatpush1.bf16.msra.mxu0 %v937
        %1352 = vmatprep.subr.bf16.mxu0 %v926
        %1353 = vmatpush1.bf16.msra.mxu0 %v925
        %1354 = vmatprep.subr.bf16.mxu0 %v914
        %1355 = vmatpush1.bf16.msra.mxu0 %v913
        %1356 = vmatprep.subr.bf16.mxu0 %v902
        %1357 = vmatpush1.bf16.msra.mxu0 %v901
        %1358 = vmatprep.subr.bf16.mxu0 %v890
        %1359 = vmatpush1.bf16.msra.mxu0 %v889
        %1360 = vmatprep.subr.bf16.mxu0 %v878
        %1361 = vmatpush1.bf16.msra.mxu0 %v877
        %1362 = vmatprep.subr.bf16.mxu0 %v866
        %1363 = vmatpush1.bf16.msra.mxu0 %v865
        %1364 = vmatprep.subr.bf16.mxu0 %v854
        %1365 = vmatpush1.bf16.msra.mxu0 %v853
        %1366 = vmatprep.subr.bf16.mxu0 0
        %1367 = vmatpush2.bf16.msra.mxu0 0
        %1368 = vmatprep.subr.bf16.mxu0 0
        %1369 = vmatpush2.bf16.msra.mxu0 0
        %1370 = vmatprep.subr.bf16.mxu0 0
        %1371 = vmatpush2.bf16.msra.mxu0 0
        %1372 = vmatprep.subr.bf16.mxu0 0
        %1373 = vmatpush2.bf16.msra.mxu0 0
        %1374 = vmatprep.subr.bf16.mxu0 %v986
        %1375 = vmatpush2.bf16.msra.mxu0 %v985
        %1376 = vmatprep.subr.bf16.mxu0 %v974
        %1377 = vmatpush2.bf16.msra.mxu0 %v973
        %1378 = vmatprep.subr.bf16.mxu0 %v962
        %1379 = vmatpush2.bf16.msra.mxu0 %v961
        %1380 = vmatprep.subr.bf16.mxu0 %v950
        %1381 = vmatpush2.bf16.msra.mxu0 %v949
        %1382 = vmatprep.mubr.bf16.mxu0 %v1133
        %1383 = vmatmul.mubr.bf16.gmra.mxu0 %v263
        %v1384 = vpop.f32.mrf.mxu0
        %v1385 = vadd.f32 0.0, %v1384
        %v1386 = vpop.f32.mrf.mxu0
        %v1387 = vadd.f32 0.0, %v1386
        %v1388 = vpop.f32.mrf.mxu0
        %v1389 = vadd.f32 0.0, %v1388
        %v1390 = vpop.f32.mrf.mxu0
        %v1391 = vadd.f32 0.0, %v1390
        %1392 = vdwg.mxu0
        %v1393 = vld [vmem:[%s3] sm:$0xff]
        %v1394 = vld [vmem:[%s3 + $0x8] sm:$0xff]
        %v1396 = vsel %vm1131, %v1170, 0
        %v1399 = vsel %vm1131, %v1174, 0
        %v1402 = vsel %vm1131, %v1256, 0
        %v1405 = vsel %vm1131, %v1260, 0
        %1407 = vmatprep.subr.mxu0 0.0
        %1408 = vmatpush1.xpose.msra.mxu0 0.0
        %1409 = vmatprep.subr.mxu0 0.0
        %1410 = vmatpush1.xpose.msra.mxu0 0.0
        %1411 = vmatprep.subr.mxu0 0.0
        %1412 = vmatpush1.xpose.msra.mxu0 0.0
        %1413 = vmatprep.subr.mxu0 0.0
        %1414 = vmatpush1.xpose.msra.mxu0 0.0
        %1415 = vmatprep.subr.mxu0 0.0
        %1416 = vmatpush1.xpose.msra.mxu0 0.0
        %1417 = vmatprep.subr.mxu0 0.0
        %1418 = vmatpush1.xpose.msra.mxu0 0.0
        %1419 = vmatprep.subr.mxu0 0.0
        %1420 = vmatpush1.xpose.msra.mxu0 0.0
        %1421 = vmatprep.subr.mxu0 0.0
        %1422 = vmatpush1.xpose.msra.mxu0 0.0
        %1423 = vmatprep.subr.mxu0 0.0
        %1424 = vmatpush1.xpose.msra.mxu0 0.0
        %1425 = vmatprep.subr.mxu0 0.0
        %1426 = vmatpush1.xpose.msra.mxu0 0.0
        %1427 = vmatprep.subr.mxu0 0.0
        %1428 = vmatpush1.xpose.msra.mxu0 0.0
        %1429 = vmatprep.subr.mxu0 0.0
        %1430 = vmatpush1.xpose.msra.mxu0 0.0
        %1431 = vmatprep.subr.mxu0 0.0
        %1432 = vmatpush1.xpose.msra.mxu0 0.0
        %1433 = vmatprep.subr.mxu0 0.0
        %1434 = vmatpush1.xpose.msra.mxu0 0.0
        %1435 = vmatprep.subr.mxu0 0.0
        %1436 = vmatpush1.xpose.msra.mxu0 %v1405
        %1437 = vmatprep.subr.mxu0 0.0
        %1438 = vmatpush1.xpose.msra.mxu0 %v1402
        %1439 = vmatprep.subr.mxu0 0.0
        %1440 = vmatpush2.xpose.msra.mxu0 0.0
        %1441 = vmatprep.subr.mxu0 0.0
        %1442 = vmatpush2.xpose.msra.mxu0 0.0
        %1443 = vmatprep.subr.mxu0 0.0
        %1444 = vmatpush2.xpose.msra.mxu0 0.0
        %1445 = vmatprep.subr.mxu0 0.0
        %1446 = vmatpush2.xpose.msra.mxu0 0.0
        %1447 = vmatprep.subr.mxu0 0.0
        %1448 = vmatpush2.xpose.msra.mxu0 0.0
        %1449 = vmatprep.subr.mxu0 0.0
        %1450 = vmatpush2.xpose.msra.mxu0 0.0
        %1451 = vmatprep.subr.mxu0 0.0
        %1452 = vmatpush2.xpose.msra.mxu0 0.0
        %1453 = vmatprep.subr.mxu0 0.0
        %1454 = vmatpush2.xpose.msra.mxu0 0.0
        %1455 = vmatprep.subr.mxu0 0.0
        %1456 = vmatpush2.xpose.msra.mxu0 0.0
        %1457 = vmatprep.subr.mxu0 0.0
        %1458 = vmatpush2.xpose.msra.mxu0 0.0
        %1459 = vmatprep.subr.mxu0 0.0
        %1460 = vmatpush2.xpose.msra.mxu0 0.0
        %1461 = vmatprep.subr.mxu0 0.0
        %1462 = vmatpush2.xpose.msra.mxu0 0.0
        %1463 = vmatprep.subr.mxu0 0.0
        %1464 = vmatpush2.xpose.msra.mxu0 0.0
        %1465 = vmatprep.subr.mxu0 0.0
        %1466 = vmatpush2.xpose.msra.mxu0 0.0
        %1467 = vmatprep.subr.mxu0 0.0
        %1468 = vmatpush2.xpose.msra.mxu0 0.0
        %1469 = vmatprep.subr.mxu0 0.0
        %1470 = vmatpush2.xpose.msra.mxu0 0.0
        %1471 = vmatprep.mubr.f32.mxu0 0.0
        %1472 = vmatmul.mubr.f32.gmra.mxu0 %v1396
        %v1473 = vpop.f32.mrf.mxu0
        %v1474 = vadd.f32 %v1393, %v1473
        %v1475 = vpop.f32.mrf.mxu0
        %1476 = vmatprep.mubr.f32.mxu0 0.0
        %1477 = vmatmul.mubr.f32.gmra.mxu0 %v1399
        %v1478 = vpop.f32.mrf.mxu0
        %v1479 = vadd.f32 %v1394, %v1478
        %v1480 = vpop.f32.mrf.mxu0
        %1481 = vdwg.mxu0
        %v1482 = vadd.f32 %v1474, %v265
        %v1483 = vadd.f32 %v1479, %v266
        %vm1484 = vcmask 130048
        %v1485 = vsel %vm1484, %v1482, -inf
        %1486 = vmax.xlane.f32.xlu0 %v1485
        %v1487 = vpop.xlane.xlu0 %1486
        %v1488 = vsel %vm1484, %v1483, -inf
        %1489 = vmax.xlane.f32.xlu0 %v1488
        %v1490 = vpop.xlane.xlu0 %1489
        %v1491 = vsub.f32 %v1482, %v1487
        %v1492 = vsub.f32 %v1483, %v1490
        %v1493 = vmul.f32 %v1491, 1.442695
        %v1494 = vpow.pop %v1493
        %v1495 = vmul.f32 %v1492, 1.442695
        %v1496 = vpow.pop %v1495
        %v1497 = vsel %vm1484, %v1494, 0.0
        %1498 = vadd.xlane.f32.xlu0 %v1497
        %v1499 = vpop.xlane.xlu0 %1498
        %v1500 = vsel %vm1484, %v1496, 0.0
        %1501 = vadd.xlane.f32.xlu0 %v1500
        %v1502 = vpop.xlane.xlu0 %1501
        %v1503 = vrcp.pop %v1499
        %v1504 = vmul.f32 %v1494, %v1503
        %v1505 = vrcp.pop %v1502
        %v1506 = vmul.f32 %v1496, %v1505
        %v1508 = vsel %vm1484, %v1504, 0
        %v1511 = vsel %vm1484, %v1506, 0
        %1513 = vmatprep.subr.mxu0 0.0
        %1514 = vmatpush1.msra.mxu0 0.0
        %1515 = vmatprep.subr.mxu0 0.0
        %1516 = vmatpush1.msra.mxu0 0.0
        %1517 = vmatprep.subr.mxu0 0.0
        %1518 = vmatpush1.msra.mxu0 0.0
        %1519 = vmatprep.subr.mxu0 0.0
        %1520 = vmatpush1.msra.mxu0 0.0
        %1521 = vmatprep.subr.mxu0 0.0
        %1522 = vmatpush1.msra.mxu0 0.0
        %1523 = vmatprep.subr.mxu0 0.0
        %1524 = vmatpush1.msra.mxu0 0.0
        %1525 = vmatprep.subr.mxu0 0.0
        %1526 = vmatpush1.msra.mxu0 0.0
        %1527 = vmatprep.subr.mxu0 0.0
        %1528 = vmatpush1.msra.mxu0 0.0
        %1529 = vmatprep.subr.mxu0 0.0
        %1530 = vmatpush1.msra.mxu0 0.0
        %1531 = vmatprep.subr.mxu0 0.0
        %1532 = vmatpush1.msra.mxu0 0.0
        %1533 = vmatprep.subr.mxu0 0.0
        %1534 = vmatpush1.msra.mxu0 0.0
        %1535 = vmatprep.subr.mxu0 0.0
        %1536 = vmatpush1.msra.mxu0 0.0
        %1537 = vmatprep.subr.mxu0 0.0
        %1538 = vmatpush1.msra.mxu0 0.0
        %1539 = vmatprep.subr.mxu0 0.0
        %1540 = vmatpush1.msra.mxu0 0.0
        %1541 = vmatprep.subr.mxu0 0.0
        %1542 = vmatpush1.msra.mxu0 %v1346
        %1543 = vmatprep.subr.mxu0 0.0
        %1544 = vmatpush1.msra.mxu0 %v1342
        %1545 = vmatprep.subr.mxu0 0.0
        %1546 = vmatpush2.msra.mxu0 0.0
        %1547 = vmatprep.subr.mxu0 0.0
        %1548 = vmatpush2.msra.mxu0 0.0
        %1549 = vmatprep.subr.mxu0 0.0
        %1550 = vmatpush2.msra.mxu0 0.0
        %1551 = vmatprep.subr.mxu0 0.0
        %1552 = vmatpush2.msra.mxu0 0.0
        %1553 = vmatprep.subr.mxu0 0.0
        %1554 = vmatpush2.msra.mxu0 0.0
        %1555 = vmatprep.subr.mxu0 0.0
        %1556 = vmatpush2.msra.mxu0 0.0
        %1557 = vmatprep.subr.mxu0 0.0
        %1558 = vmatpush2.msra.mxu0 0.0
        %1559 = vmatprep.subr.mxu0 0.0
        %1560 = vmatpush2.msra.mxu0 0.0
        %1561 = vmatprep.subr.mxu0 0.0
        %1562 = vmatpush2.msra.mxu0 0.0
        %1563 = vmatprep.subr.mxu0 0.0
        %1564 = vmatpush2.msra.mxu0 0.0
        %1565 = vmatprep.subr.mxu0 0.0
        %1566 = vmatpush2.msra.mxu0 0.0
        %1567 = vmatprep.subr.mxu0 0.0
        %1568 = vmatpush2.msra.mxu0 0.0
        %1569 = vmatprep.subr.mxu0 0.0
        %1570 = vmatpush2.msra.mxu0 0.0
        %1571 = vmatprep.subr.mxu0 0.0
        %1572 = vmatpush2.msra.mxu0 0.0
        %1573 = vmatprep.subr.mxu0 0.0
        %1574 = vmatpush2.msra.mxu0 0.0
        %1575 = vmatprep.subr.mxu0 0.0
        %1576 = vmatpush2.msra.mxu0 0.0
        %1577 = vmatprep.mubr.f32.mxu0 0.0
        %1578 = vmatmul.mubr.f32.gmra.mxu0 %v1508
        %v1579 = vpop.f32.mrf.mxu0
        %v1580 = vadd.f32 0.0, %v1579
        %v1581 = vpop.f32.mrf.mxu0
        %1582 = vmatprep.mubr.f32.mxu0 0.0
        %1583 = vmatmul.mubr.f32.gmra.mxu0 %v1511
        %v1584 = vpop.f32.mrf.mxu0
        %v1585 = vadd.f32 0.0, %v1584
        %v1586 = vpop.f32.mrf.mxu0
        %1587 = vdwg.mxu0
        %1588 = vst.msk [vmem:[#allocation2] sm:$0xff] %vm1131, %v1580
        %1589 = vst.msk [vmem:[#allocation2 + $0x20] sm:$0xff] %vm1131, %v1585
        %s1590 = scalar_lea.vmem %s3, 16
        %v1591 = vld [vmem:[%s1590] sm:$0xff]
        %v1592 = vld [vmem:[%s1590 + $0x8] sm:$0xff]
        %1593 = vrot.lane.b32.xlu0 %v1170, 64
        %v1594 = vpop.permute.xlu0 %1593
        %1595 = vrot.lane.b32.xlu0 %v1174, 64
        %v1596 = vpop.permute.xlu0 %1595
        %1597 = vrot.lane.b32.xlu0 %v1256, 64
        %v1598 = vpop.permute.xlu0 %1597
        %1599 = vrot.lane.b32.xlu0 %v1260, 64
        %v1600 = vpop.permute.xlu0 %1599
        %v1601 = vsel %vm1131, %v1594, 0
        %v1603 = vsel %vm1131, %v1596, 0
        %v1605 = vsel %vm1131, %v1598, 0
        %v1607 = vsel %vm1131, %v1600, 0
        %1609 = vmatprep.subr.mxu0 0.0
        %1610 = vmatpush1.xpose.msra.mxu0 0.0
        %1611 = vmatprep.subr.mxu0 0.0
        %1612 = vmatpush1.xpose.msra.mxu0 0.0
        %1613 = vmatprep.subr.mxu0 0.0
        %1614 = vmatpush1.xpose.msra.mxu0 0.0
        %1615 = vmatprep.subr.mxu0 0.0
        %1616 = vmatpush1.xpose.msra.mxu0 0.0
        %1617 = vmatprep.subr.mxu0 0.0
        %1618 = vmatpush1.xpose.msra.mxu0 0.0
        %1619 = vmatprep.subr.mxu0 0.0
        %1620 = vmatpush1.xpose.msra.mxu0 0.0
        %1621 = vmatprep.subr.mxu0 0.0
        %1622 = vmatpush1.xpose.msra.mxu0 0.0
        %1623 = vmatprep.subr.mxu0 0.0
        %1624 = vmatpush1.xpose.msra.mxu0 0.0
        %1625 = vmatprep.subr.mxu0 0.0
        %1626 = vmatpush1.xpose.msra.mxu0 0.0
        %1627 = vmatprep.subr.mxu0 0.0
        %1628 = vmatpush1.xpose.msra.mxu0 0.0
        %1629 = vmatprep.subr.mxu0 0.0
        %1630 = vmatpush1.xpose.msra.mxu0 0.0
        %1631 = vmatprep.subr.mxu0 0.0
        %1632 = vmatpush1.xpose.msra.mxu0 0.0
        %1633 = vmatprep.subr.mxu0 0.0
        %1634 = vmatpush1.xpose.msra.mxu0 0.0
        %1635 = vmatprep.subr.mxu0 0.0
        %1636 = vmatpush1.xpose.msra.mxu0 0.0
        %1637 = vmatprep.subr.mxu0 0.0
        %1638 = vmatpush1.xpose.msra.mxu0 %v1607
        %1639 = vmatprep.subr.mxu0 0.0
        %1640 = vmatpush1.xpose.msra.mxu0 %v1605
        %1641 = vmatprep.subr.mxu0 0.0
        %1642 = vmatpush2.xpose.msra.mxu0 0.0
        %1643 = vmatprep.subr.mxu0 0.0
        %1644 = vmatpush2.xpose.msra.mxu0 0.0
        %1645 = vmatprep.subr.mxu0 0.0
        %1646 = vmatpush2.xpose.msra.mxu0 0.0
        %1647 = vmatprep.subr.mxu0 0.0
        %1648 = vmatpush2.xpose.msra.mxu0 0.0
        %1649 = vmatprep.subr.mxu0 0.0
        %1650 = vmatpush2.xpose.msra.mxu0 0.0
        %1651 = vmatprep.subr.mxu0 0.0
        %1652 = vmatpush2.xpose.msra.mxu0 0.0
        %1653 = vmatprep.subr.mxu0 0.0
        %1654 = vmatpush2.xpose.msra.mxu0 0.0
        %1655 = vmatprep.subr.mxu0 0.0
        %1656 = vmatpush2.xpose.msra.mxu0 0.0
        %1657 = vmatprep.subr.mxu0 0.0
        %1658 = vmatpush2.xpose.msra.mxu0 0.0
        %1659 = vmatprep.subr.mxu0 0.0
        %1660 = vmatpush2.xpose.msra.mxu0 0.0
        %1661 = vmatprep.subr.mxu0 0.0
        %1662 = vmatpush2.xpose.msra.mxu0 0.0
        %1663 = vmatprep.subr.mxu0 0.0
        %1664 = vmatpush2.xpose.msra.mxu0 0.0
        %1665 = vmatprep.subr.mxu0 0.0
        %1666 = vmatpush2.xpose.msra.mxu0 0.0
        %1667 = vmatprep.subr.mxu0 0.0
        %1668 = vmatpush2.xpose.msra.mxu0 0.0
        %1669 = vmatprep.subr.mxu0 0.0
        %1670 = vmatpush2.xpose.msra.mxu0 0.0
        %1671 = vmatprep.subr.mxu0 0.0
        %1672 = vmatpush2.xpose.msra.mxu0 0.0
        %1673 = vmatprep.mubr.f32.mxu0 0.0
        %1674 = vmatmul.mubr.f32.gmra.mxu0 %v1601
        %v1675 = vpop.f32.mrf.mxu0
        %v1676 = vadd.f32 %v1591, %v1675
        %v1677 = vpop.f32.mrf.mxu0
        %1678 = vmatprep.mubr.f32.mxu0 0.0
        %1679 = vmatmul.mubr.f32.gmra.mxu0 %v1603
        %v1680 = vpop.f32.mrf.mxu0
        %v1681 = vadd.f32 %v1592, %v1680
        %v1682 = vpop.f32.mrf.mxu0
        %1683 = vdwg.mxu0
        %v1684 = vadd.f32 %v1676, %v265
        %v1685 = vadd.f32 %v1681, %v266
        %v1686 = vsel %vm1484, %v1684, -inf
        %1687 = vmax.xlane.f32.xlu0 %v1686
        %v1688 = vpop.xlane.xlu0 %1687
        %v1689 = vsel %vm1484, %v1685, -inf
        %1690 = vmax.xlane.f32.xlu0 %v1689
        %v1691 = vpop.xlane.xlu0 %1690
        %v1692 = vsub.f32 %v1684, %v1688
        %v1693 = vsub.f32 %v1685, %v1691
        %v1694 = vmul.f32 %v1692, 1.442695
        %v1695 = vpow.pop %v1694
        %v1696 = vmul.f32 %v1693, 1.442695
        %v1697 = vpow.pop %v1696
        %v1698 = vsel %vm1484, %v1695, 0.0
        %1699 = vadd.xlane.f32.xlu0 %v1698
        %v1700 = vpop.xlane.xlu0 %1699
        %v1701 = vsel %vm1484, %v1697, 0.0
        %1702 = vadd.xlane.f32.xlu0 %v1701
        %v1703 = vpop.xlane.xlu0 %1702
        %v1704 = vrcp.pop %v1700
        %v1705 = vmul.f32 %v1695, %v1704
        %v1706 = vrcp.pop %v1703
        %v1707 = vmul.f32 %v1697, %v1706
        %1710 = vrot.lane.b32.xlu0 %v1342, 64
        %v1711 = vpop.permute.xlu0 %1710
        %1712 = vrot.lane.b32.xlu0 %v1346, 64
        %v1713 = vpop.permute.xlu0 %1712
        %v1717 = vsel %vm1484, %v1705, 0
        %v1720 = vsel %vm1484, %v1707, 0
        %1722 = vmatprep.subr.mxu0 0.0
        %1723 = vmatpush1.msra.mxu0 0.0
        %1724 = vmatprep.subr.mxu0 0.0
        %1725 = vmatpush1.msra.mxu0 0.0
        %1726 = vmatprep.subr.mxu0 0.0
        %1727 = vmatpush1.msra.mxu0 0.0
        %1728 = vmatprep.subr.mxu0 0.0
        %1729 = vmatpush1.msra.mxu0 0.0
        %1730 = vmatprep.subr.mxu0 0.0
        %1731 = vmatpush1.msra.mxu0 0.0
        %1732 = vmatprep.subr.mxu0 0.0
        %1733 = vmatpush1.msra.mxu0 0.0
        %1734 = vmatprep.subr.mxu0 0.0
        %1735 = vmatpush1.msra.mxu0 0.0
        %1736 = vmatprep.subr.mxu0 0.0
        %1737 = vmatpush1.msra.mxu0 0.0
        %1738 = vmatprep.subr.mxu0 0.0
        %1739 = vmatpush1.msra.mxu0 0.0
        %1740 = vmatprep.subr.mxu0 0.0
        %1741 = vmatpush1.msra.mxu0 0.0
        %1742 = vmatprep.subr.mxu0 0.0
        %1743 = vmatpush1.msra.mxu0 0.0
        %1744 = vmatprep.subr.mxu0 0.0
        %1745 = vmatpush1.msra.mxu0 0.0
        %1746 = vmatprep.subr.mxu0 0.0
        %1747 = vmatpush1.msra.mxu0 0.0
        %1748 = vmatprep.subr.mxu0 0.0
        %1749 = vmatpush1.msra.mxu0 0.0
        %1750 = vmatprep.subr.mxu0 0.0
        %1751 = vmatpush1.msra.mxu0 %v1713
        %1752 = vmatprep.subr.mxu0 0.0
        %1753 = vmatpush1.msra.mxu0 %v1711
        %1754 = vmatprep.subr.mxu0 0.0
        %1755 = vmatpush2.msra.mxu0 0.0
        %1756 = vmatprep.subr.mxu0 0.0
        %1757 = vmatpush2.msra.mxu0 0.0
        %1758 = vmatprep.subr.mxu0 0.0
        %1759 = vmatpush2.msra.mxu0 0.0
        %1760 = vmatprep.subr.mxu0 0.0
        %1761 = vmatpush2.msra.mxu0 0.0
        %1762 = vmatprep.subr.mxu0 0.0
        %1763 = vmatpush2.msra.mxu0 0.0
        %1764 = vmatprep.subr.mxu0 0.0
        %1765 = vmatpush2.msra.mxu0 0.0
        %1766 = vmatprep.subr.mxu0 0.0
        %1767 = vmatpush2.msra.mxu0 0.0
        %1768 = vmatprep.subr.mxu0 0.0
        %1769 = vmatpush2.msra.mxu0 0.0
        %1770 = vmatprep.subr.mxu0 0.0
        %1771 = vmatpush2.msra.mxu0 0.0
        %1772 = vmatprep.subr.mxu0 0.0
        %1773 = vmatpush2.msra.mxu0 0.0
        %1774 = vmatprep.subr.mxu0 0.0
        %1775 = vmatpush2.msra.mxu0 0.0
        %1776 = vmatprep.subr.mxu0 0.0
        %1777 = vmatpush2.msra.mxu0 0.0
        %1778 = vmatprep.subr.mxu0 0.0
        %1779 = vmatpush2.msra.mxu0 0.0
        %1780 = vmatprep.subr.mxu0 0.0
        %1781 = vmatpush2.msra.mxu0 0.0
        %1782 = vmatprep.subr.mxu0 0.0
        %1783 = vmatpush2.msra.mxu0 0.0
        %1784 = vmatprep.subr.mxu0 0.0
        %1785 = vmatpush2.msra.mxu0 0.0
        %1786 = vmatprep.mubr.f32.mxu0 0.0
        %1787 = vmatmul.mubr.f32.gmra.mxu0 %v1717
        %v1788 = vpop.f32.mrf.mxu0
        %v1789 = vadd.f32 0.0, %v1788
        %v1790 = vpop.f32.mrf.mxu0
        %1791 = vmatprep.mubr.f32.mxu0 0.0
        %1792 = vmatmul.mubr.f32.gmra.mxu0 %v1720
        %v1793 = vpop.f32.mrf.mxu0
        %v1794 = vadd.f32 0.0, %v1793
        %v1795 = vpop.f32.mrf.mxu0
        %1796 = vdwg.mxu0
        %1799 = vrot.lane.b32.xlu0 %v1789, 64
        %v1800 = vpop.permute.xlu0 %1799
        %1801 = vrot.lane.b32.xlu0 %v1794, 64
        %v1802 = vpop.permute.xlu0 %1801
        %vm1805 = vcmask 1048064
        %1806 = vst.msk [vmem:[#allocation2] sm:$0xff] %vm1805, %v1800
        %1807 = vst.msk [vmem:[#allocation2 + $0x20] sm:$0xff] %vm1805, %v1802
        %s1808 = scalar_lea.vmem %s3, 32
        %v1809 = vld [vmem:[%s1808] sm:$0xff]
        %v1810 = vld [vmem:[%s1808 + $0x8] sm:$0xff]
        %v1812 = vsel %vm1131, %v1172, 0
        %v1815 = vsel %vm1131, %v1176, 0
        %v1818 = vsel %vm1131, %v1258, 0
        %v1821 = vsel %vm1131, %v1262, 0
        %1823 = vmatprep.subr.mxu0 0.0
        %1824 = vmatpush1.xpose.msra.mxu0 0.0
        %1825 = vmatprep.subr.mxu0 0.0
        %1826 = vmatpush1.xpose.msra.mxu0 0.0
        %1827 = vmatprep.subr.mxu0 0.0
        %1828 = vmatpush1.xpose.msra.mxu0 0.0
        %1829 = vmatprep.subr.mxu0 0.0
        %1830 = vmatpush1.xpose.msra.mxu0 0.0
        %1831 = vmatprep.subr.mxu0 0.0
        %1832 = vmatpush1.xpose.msra.mxu0 0.0
        %1833 = vmatprep.subr.mxu0 0.0
        %1834 = vmatpush1.xpose.msra.mxu0 0.0
        %1835 = vmatprep.subr.mxu0 0.0
        %1836 = vmatpush1.xpose.msra.mxu0 0.0
        %1837 = vmatprep.subr.mxu0 0.0
        %1838 = vmatpush1.xpose.msra.mxu0 0.0
        %1839 = vmatprep.subr.mxu0 0.0
        %1840 = vmatpush1.xpose.msra.mxu0 0.0
        %1841 = vmatprep.subr.mxu0 0.0
        %1842 = vmatpush1.xpose.msra.mxu0 0.0
        %1843 = vmatprep.subr.mxu0 0.0
        %1844 = vmatpush1.xpose.msra.mxu0 0.0
        %1845 = vmatprep.subr.mxu0 0.0
        %1846 = vmatpush1.xpose.msra.mxu0 0.0
        %1847 = vmatprep.subr.mxu0 0.0
        %1848 = vmatpush1.xpose.msra.mxu0 0.0
        %1849 = vmatprep.subr.mxu0 0.0
        %1850 = vmatpush1.xpose.msra.mxu0 0.0
        %1851 = vmatprep.subr.mxu0 0.0
        %1852 = vmatpush1.xpose.msra.mxu0 %v1821
        %1853 = vmatprep.subr.mxu0 0.0
        %1854 = vmatpush1.xpose.msra.mxu0 %v1818
        %1855 = vmatprep.subr.mxu0 0.0
        %1856 = vmatpush2.xpose.msra.mxu0 0.0
        %1857 = vmatprep.subr.mxu0 0.0
        %1858 = vmatpush2.xpose.msra.mxu0 0.0
        %1859 = vmatprep.subr.mxu0 0.0
        %1860 = vmatpush2.xpose.msra.mxu0 0.0
        %1861 = vmatprep.subr.mxu0 0.0
        %1862 = vmatpush2.xpose.msra.mxu0 0.0
        %1863 = vmatprep.subr.mxu0 0.0
        %1864 = vmatpush2.xpose.msra.mxu0 0.0
        %1865 = vmatprep.subr.mxu0 0.0
        %1866 = vmatpush2.xpose.msra.mxu0 0.0
        %1867 = vmatprep.subr.mxu0 0.0
        %1868 = vmatpush2.xpose.msra.mxu0 0.0
        %1869 = vmatprep.subr.mxu0 0.0
        %1870 = vmatpush2.xpose.msra.mxu0 0.0
        %1871 = vmatprep.subr.mxu0 0.0
        %1872 = vmatpush2.xpose.msra.mxu0 0.0
        %1873 = vmatprep.subr.mxu0 0.0
        %1874 = vmatpush2.xpose.msra.mxu0 0.0
        %1875 = vmatprep.subr.mxu0 0.0
        %1876 = vmatpush2.xpose.msra.mxu0 0.0
        %1877 = vmatprep.subr.mxu0 0.0
        %1878 = vmatpush2.xpose.msra.mxu0 0.0
        %1879 = vmatprep.subr.mxu0 0.0
        %1880 = vmatpush2.xpose.msra.mxu0 0.0
        %1881 = vmatprep.subr.mxu0 0.0
        %1882 = vmatpush2.xpose.msra.mxu0 0.0
        %1883 = vmatprep.subr.mxu0 0.0
        %1884 = vmatpush2.xpose.msra.mxu0 0.0
        %1885 = vmatprep.subr.mxu0 0.0
        %1886 = vmatpush2.xpose.msra.mxu0 0.0
        %1887 = vmatprep.mubr.f32.mxu0 0.0
        %1888 = vmatmul.mubr.f32.gmra.mxu0 %v1812
        %v1889 = vpop.f32.mrf.mxu0
        %v1890 = vadd.f32 %v1809, %v1889
        %v1891 = vpop.f32.mrf.mxu0
        %1892 = vmatprep.mubr.f32.mxu0 0.0
        %1893 = vmatmul.mubr.f32.gmra.mxu0 %v1815
        %v1894 = vpop.f32.mrf.mxu0
        %v1895 = vadd.f32 %v1810, %v1894
        %v1896 = vpop.f32.mrf.mxu0
        %1897 = vdwg.mxu0
        %v1898 = vadd.f32 %v1890, %v265
        %v1899 = vadd.f32 %v1895, %v266
        %v1900 = vsel %vm1484, %v1898, -inf
        %1901 = vmax.xlane.f32.xlu0 %v1900
        %v1902 = vpop.xlane.xlu0 %1901
        %v1903 = vsel %vm1484, %v1899, -inf
        %1904 = vmax.xlane.f32.xlu0 %v1903
        %v1905 = vpop.xlane.xlu0 %1904
        %v1906 = vsub.f32 %v1898, %v1902
        %v1907 = vsub.f32 %v1899, %v1905
        %v1908 = vmul.f32 %v1906, 1.442695
        %v1909 = vpow.pop %v1908
        %v1910 = vmul.f32 %v1907, 1.442695
        %v1911 = vpow.pop %v1910
        %v1912 = vsel %vm1484, %v1909, 0.0
        %1913 = vadd.xlane.f32.xlu0 %v1912
        %v1914 = vpop.xlane.xlu0 %1913
        %v1915 = vsel %vm1484, %v1911, 0.0
        %1916 = vadd.xlane.f32.xlu0 %v1915
        %v1917 = vpop.xlane.xlu0 %1916
        %v1918 = vrcp.pop %v1914
        %v1919 = vmul.f32 %v1909, %v1918
        %v1920 = vrcp.pop %v1917
        %v1921 = vmul.f32 %v1911, %v1920
        %v1923 = vsel %vm1484, %v1919, 0
        %v1926 = vsel %vm1484, %v1921, 0
        %1928 = vmatprep.subr.mxu0 0.0
        %1929 = vmatpush1.msra.mxu0 0.0
        %1930 = vmatprep.subr.mxu0 0.0
        %1931 = vmatpush1.msra.mxu0 0.0
        %1932 = vmatprep.subr.mxu0 0.0
        %1933 = vmatpush1.msra.mxu0 0.0
        %1934 = vmatprep.subr.mxu0 0.0
        %1935 = vmatpush1.msra.mxu0 0.0
        %1936 = vmatprep.subr.mxu0 0.0
        %1937 = vmatpush1.msra.mxu0 0.0
        %1938 = vmatprep.subr.mxu0 0.0
        %1939 = vmatpush1.msra.mxu0 0.0
        %1940 = vmatprep.subr.mxu0 0.0
        %1941 = vmatpush1.msra.mxu0 0.0
        %1942 = vmatprep.subr.mxu0 0.0
        %1943 = vmatpush1.msra.mxu0 0.0
        %1944 = vmatprep.subr.mxu0 0.0
        %1945 = vmatpush1.msra.mxu0 0.0
        %1946 = vmatprep.subr.mxu0 0.0
        %1947 = vmatpush1.msra.mxu0 0.0
        %1948 = vmatprep.subr.mxu0 0.0
        %1949 = vmatpush1.msra.mxu0 0.0
        %1950 = vmatprep.subr.mxu0 0.0
        %1951 = vmatpush1.msra.mxu0 0.0
        %1952 = vmatprep.subr.mxu0 0.0
        %1953 = vmatpush1.msra.mxu0 0.0
        %1954 = vmatprep.subr.mxu0 0.0
        %1955 = vmatpush1.msra.mxu0 0.0
        %1956 = vmatprep.subr.mxu0 0.0
        %1957 = vmatpush1.msra.mxu0 %v1348
        %1958 = vmatprep.subr.mxu0 0.0
        %1959 = vmatpush1.msra.mxu0 %v1344
        %1960 = vmatprep.subr.mxu0 0.0
        %1961 = vmatpush2.msra.mxu0 0.0
        %1962 = vmatprep.subr.mxu0 0.0
        %1963 = vmatpush2.msra.mxu0 0.0
        %1964 = vmatprep.subr.mxu0 0.0
        %1965 = vmatpush2.msra.mxu0 0.0
        %1966 = vmatprep.subr.mxu0 0.0
        %1967 = vmatpush2.msra.mxu0 0.0
        %1968 = vmatprep.subr.mxu0 0.0
        %1969 = vmatpush2.msra.mxu0 0.0
        %1970 = vmatprep.subr.mxu0 0.0
        %1971 = vmatpush2.msra.mxu0 0.0
        %1972 = vmatprep.subr.mxu0 0.0
        %1973 = vmatpush2.msra.mxu0 0.0
        %1974 = vmatprep.subr.mxu0 0.0
        %1975 = vmatpush2.msra.mxu0 0.0
        %1976 = vmatprep.subr.mxu0 0.0
        %1977 = vmatpush2.msra.mxu0 0.0
        %1978 = vmatprep.subr.mxu0 0.0
        %1979 = vmatpush2.msra.mxu0 0.0
        %1980 = vmatprep.subr.mxu0 0.0
        %1981 = vmatpush2.msra.mxu0 0.0
        %1982 = vmatprep.subr.mxu0 0.0
        %1983 = vmatpush2.msra.mxu0 0.0
        %1984 = vmatprep.subr.mxu0 0.0
        %1985 = vmatpush2.msra.mxu0 0.0
        %1986 = vmatprep.subr.mxu0 0.0
        %1987 = vmatpush2.msra.mxu0 0.0
        %1988 = vmatprep.subr.mxu0 0.0
        %1989 = vmatpush2.msra.mxu0 0.0
        %1990 = vmatprep.subr.mxu0 0.0
        %1991 = vmatpush2.msra.mxu0 0.0
        %1992 = vmatprep.mubr.f32.mxu0 0.0
        %1993 = vmatmul.mubr.f32.gmra.mxu0 %v1923
        %v1994 = vpop.f32.mrf.mxu0
        %v1995 = vadd.f32 0.0, %v1994
        %v1996 = vpop.f32.mrf.mxu0
        %1997 = vmatprep.mubr.f32.mxu0 0.0
        %1998 = vmatmul.mubr.f32.gmra.mxu0 %v1926
        %v1999 = vpop.f32.mrf.mxu0
        %v2000 = vadd.f32 0.0, %v1999
        %v2001 = vpop.f32.mrf.mxu0
        %2002 = vdwg.mxu0
        %2003 = vst.msk [vmem:[#allocation2 + $0x8] sm:$0xff] %vm1131, %v1995
        %2004 = vst.msk [vmem:[#allocation2 + $0x28] sm:$0xff] %vm1131, %v2000
        %s2005 = scalar_lea.vmem %s3, 48
        %v2006 = vld [vmem:[%s2005] sm:$0xff]
        %v2007 = vld [vmem:[%s2005 + $0x8] sm:$0xff]
        %2008 = vrot.lane.b32.xlu0 %v1172, 64
        %v2009 = vpop.permute.xlu0 %2008
        %2010 = vrot.lane.b32.xlu0 %v1176, 64
        %v2011 = vpop.permute.xlu0 %2010
        %2012 = vrot.lane.b32.xlu0 %v1258, 64
        %v2013 = vpop.permute.xlu0 %2012
        %2014 = vrot.lane.b32.xlu0 %v1262, 64
        %v2015 = vpop.permute.xlu0 %2014
        %v2016 = vsel %vm1131, %v2009, 0
        %v2018 = vsel %vm1131, %v2011, 0
        %v2020 = vsel %vm1131, %v2013, 0
        %v2022 = vsel %vm1131, %v2015, 0
        %2024 = vmatprep.subr.mxu0 0.0
        %2025 = vmatpush1.xpose.msra.mxu0 0.0
        %2026 = vmatprep.subr.mxu0 0.0
        %2027 = vmatpush1.xpose.msra.mxu0 0.0
        %2028 = vmatprep.subr.mxu0 0.0
        %2029 = vmatpush1.xpose.msra.mxu0 0.0
        %2030 = vmatprep.subr.mxu0 0.0
        %2031 = vmatpush1.xpose.msra.mxu0 0.0
        %2032 = vmatprep.subr.mxu0 0.0
        %2033 = vmatpush1.xpose.msra.mxu0 0.0
        %2034 = vmatprep.subr.mxu0 0.0
        %2035 = vmatpush1.xpose.msra.mxu0 0.0
        %2036 = vmatprep.subr.mxu0 0.0
        %2037 = vmatpush1.xpose.msra.mxu0 0.0
        %2038 = vmatprep.subr.mxu0 0.0
        %2039 = vmatpush1.xpose.msra.mxu0 0.0
        %2040 = vmatprep.subr.mxu0 0.0
        %2041 = vmatpush1.xpose.msra.mxu0 0.0
        %2042 = vmatprep.subr.mxu0 0.0
        %2043 = vmatpush1.xpose.msra.mxu0 0.0
        %2044 = vmatprep.subr.mxu0 0.0
        %2045 = vmatpush1.xpose.msra.mxu0 0.0
        %2046 = vmatprep.subr.mxu0 0.0
        %2047 = vmatpush1.xpose.msra.mxu0 0.0
        %2048 = vmatprep.subr.mxu0 0.0
        %2049 = vmatpush1.xpose.msra.mxu0 0.0
        %2050 = vmatprep.subr.mxu0 0.0
        %2051 = vmatpush1.xpose.msra.mxu0 0.0
        %2052 = vmatprep.subr.mxu0 0.0
        %2053 = vmatpush1.xpose.msra.mxu0 %v2022
        %2054 = vmatprep.subr.mxu0 0.0
        %2055 = vmatpush1.xpose.msra.mxu0 %v2020
        %2056 = vmatprep.subr.mxu0 0.0
        %2057 = vmatpush2.xpose.msra.mxu0 0.0
        %2058 = vmatprep.subr.mxu0 0.0
        %2059 = vmatpush2.xpose.msra.mxu0 0.0
        %2060 = vmatprep.subr.mxu0 0.0
        %2061 = vmatpush2.xpose.msra.mxu0 0.0
        %2062 = vmatprep.subr.mxu0 0.0
        %2063 = vmatpush2.xpose.msra.mxu0 0.0
        %2064 = vmatprep.subr.mxu0 0.0
        %2065 = vmatpush2.xpose.msra.mxu0 0.0
        %2066 = vmatprep.subr.mxu0 0.0
        %2067 = vmatpush2.xpose.msra.mxu0 0.0
        %2068 = vmatprep.subr.mxu0 0.0
        %2069 = vmatpush2.xpose.msra.mxu0 0.0
        %2070 = vmatprep.subr.mxu0 0.0
        %2071 = vmatpush2.xpose.msra.mxu0 0.0
        %2072 = vmatprep.subr.mxu0 0.0
        %2073 = vmatpush2.xpose.msra.mxu0 0.0
        %2074 = vmatprep.subr.mxu0 0.0
        %2075 = vmatpush2.xpose.msra.mxu0 0.0
        %2076 = vmatprep.subr.mxu0 0.0
        %2077 = vmatpush2.xpose.msra.mxu0 0.0
        %2078 = vmatprep.subr.mxu0 0.0
        %2079 = vmatpush2.xpose.msra.mxu0 0.0
        %2080 = vmatprep.subr.mxu0 0.0
        %2081 = vmatpush2.xpose.msra.mxu0 0.0
        %2082 = vmatprep.subr.mxu0 0.0
        %2083 = vmatpush2.xpose.msra.mxu0 0.0
        %2084 = vmatprep.subr.mxu0 0.0
        %2085 = vmatpush2.xpose.msra.mxu0 0.0
        %2086 = vmatprep.subr.mxu0 0.0
        %2087 = vmatpush2.xpose.msra.mxu0 0.0
        %2088 = vmatprep.mubr.f32.mxu0 0.0
        %2089 = vmatmul.mubr.f32.gmra.mxu0 %v2016
        %v2090 = vpop.f32.mrf.mxu0
        %v2091 = vadd.f32 %v2006, %v2090
        %v2092 = vpop.f32.mrf.mxu0
        %2093 = vmatprep.mubr.f32.mxu0 0.0
        %2094 = vmatmul.mubr.f32.gmra.mxu0 %v2018
        %v2095 = vpop.f32.mrf.mxu0
        %v2096 = vadd.f32 %v2007, %v2095
        %v2097 = vpop.f32.mrf.mxu0
        %2098 = vdwg.mxu0
        %v2099 = vadd.f32 %v2091, %v265
        %v2100 = vadd.f32 %v2096, %v266
        %v2101 = vsel %vm1484, %v2099, -inf
        %2102 = vmax.xlane.f32.xlu0 %v2101
        %v2103 = vpop.xlane.xlu0 %2102
        %v2104 = vsel %vm1484, %v2100, -inf
        %2105 = vmax.xlane.f32.xlu0 %v2104
        %v2106 = vpop.xlane.xlu0 %2105
        %v2107 = vsub.f32 %v2099, %v2103
        %v2108 = vsub.f32 %v2100, %v2106
        %v2109 = vmul.f32 %v2107, 1.442695
        %v2110 = vpow.pop %v2109
        %v2111 = vmul.f32 %v2108, 1.442695
        %v2112 = vpow.pop %v2111
        %v2113 = vsel %vm1484, %v2110, 0.0
        %2114 = vadd.xlane.f32.xlu0 %v2113
        %v2115 = vpop.xlane.xlu0 %2114
        %v2116 = vsel %vm1484, %v2112, 0.0
        %2117 = vadd.xlane.f32.xlu0 %v2116
        %v2118 = vpop.xlane.xlu0 %2117
        %v2119 = vrcp.pop %v2115
        %v2120 = vmul.f32 %v2110, %v2119
        %v2121 = vrcp.pop %v2118
        %v2122 = vmul.f32 %v2112, %v2121
        %2125 = vrot.lane.b32.xlu0 %v1344, 64
        %v2126 = vpop.permute.xlu0 %2125
        %2127 = vrot.lane.b32.xlu0 %v1348, 64
        %v2128 = vpop.permute.xlu0 %2127
        %v2132 = vsel %vm1484, %v2120, 0
        %v2135 = vsel %vm1484, %v2122, 0
        %2137 = vmatprep.subr.mxu0 0.0
        %2138 = vmatpush1.msra.mxu0 0.0
        %2139 = vmatprep.subr.mxu0 0.0
        %2140 = vmatpush1.msra.mxu0 0.0
        %2141 = vmatprep.subr.mxu0 0.0
        %2142 = vmatpush1.msra.mxu0 0.0
        %2143 = vmatprep.subr.mxu0 0.0
        %2144 = vmatpush1.msra.mxu0 0.0
        %2145 = vmatprep.subr.mxu0 0.0
        %2146 = vmatpush1.msra.mxu0 0.0
        %2147 = vmatprep.subr.mxu0 0.0
        %2148 = vmatpush1.msra.mxu0 0.0
        %2149 = vmatprep.subr.mxu0 0.0
        %2150 = vmatpush1.msra.mxu0 0.0
        %2151 = vmatprep.subr.mxu0 0.0
        %2152 = vmatpush1.msra.mxu0 0.0
        %2153 = vmatprep.subr.mxu0 0.0
        %2154 = vmatpush1.msra.mxu0 0.0
        %2155 = vmatprep.subr.mxu0 0.0
        %2156 = vmatpush1.msra.mxu0 0.0
        %2157 = vmatprep.subr.mxu0 0.0
        %2158 = vmatpush1.msra.mxu0 0.0
        %2159 = vmatprep.subr.mxu0 0.0
        %2160 = vmatpush1.msra.mxu0 0.0
        %2161 = vmatprep.subr.mxu0 0.0
        %2162 = vmatpush1.msra.mxu0 0.0
        %2163 = vmatprep.subr.mxu0 0.0
        %2164 = vmatpush1.msra.mxu0 0.0
        %2165 = vmatprep.subr.mxu0 0.0
        %2166 = vmatpush1.msra.mxu0 %v2128
        %2167 = vmatprep.subr.mxu0 0.0
        %2168 = vmatpush1.msra.mxu0 %v2126
        %2169 = vmatprep.subr.mxu0 0.0
        %2170 = vmatpush2.msra.mxu0 0.0
        %2171 = vmatprep.subr.mxu0 0.0
        %2172 = vmatpush2.msra.mxu0 0.0
        %2173 = vmatprep.subr.mxu0 0.0
        %2174 = vmatpush2.msra.mxu0 0.0
        %2175 = vmatprep.subr.mxu0 0.0
        %2176 = vmatpush2.msra.mxu0 0.0
        %2177 = vmatprep.subr.mxu0 0.0
        %2178 = vmatpush2.msra.mxu0 0.0
        %2179 = vmatprep.subr.mxu0 0.0
        %2180 = vmatpush2.msra.mxu0 0.0
        %2181 = vmatprep.subr.mxu0 0.0
        %2182 = vmatpush2.msra.mxu0 0.0
        %2183 = vmatprep.subr.mxu0 0.0
        %2184 = vmatpush2.msra.mxu0 0.0
        %2185 = vmatprep.subr.mxu0 0.0
        %2186 = vmatpush2.msra.mxu0 0.0
        %2187 = vmatprep.subr.mxu0 0.0
        %2188 = vmatpush2.msra.mxu0 0.0
        %2189 = vmatprep.subr.mxu0 0.0
        %2190 = vmatpush2.msra.mxu0 0.0
        %2191 = vmatprep.subr.mxu0 0.0
        %2192 = vmatpush2.msra.mxu0 0.0
        %2193 = vmatprep.subr.mxu0 0.0
        %2194 = vmatpush2.msra.mxu0 0.0
        %2195 = vmatprep.subr.mxu0 0.0
        %2196 = vmatpush2.msra.mxu0 0.0
        %2197 = vmatprep.subr.mxu0 0.0
        %2198 = vmatpush2.msra.mxu0 0.0
        %2199 = vmatprep.subr.mxu0 0.0
        %2200 = vmatpush2.msra.mxu0 0.0
        %2201 = vmatprep.mubr.f32.mxu0 0.0
        %2202 = vmatmul.mubr.f32.gmra.mxu0 %v2132
        %v2203 = vpop.f32.mrf.mxu0
        %v2204 = vadd.f32 0.0, %v2203
        %v2205 = vpop.f32.mrf.mxu0
        %2206 = vmatprep.mubr.f32.mxu0 0.0
        %2207 = vmatmul.mubr.f32.gmra.mxu0 %v2135
        %v2208 = vpop.f32.mrf.mxu0
        %v2209 = vadd.f32 0.0, %v2208
        %v2210 = vpop.f32.mrf.mxu0
        %2211 = vdwg.mxu0
        %2214 = vrot.lane.b32.xlu0 %v2204, 64
        %v2215 = vpop.permute.xlu0 %2214
        %2216 = vrot.lane.b32.xlu0 %v2209, 64
        %v2217 = vpop.permute.xlu0 %2216
        %2220 = vst.msk [vmem:[#allocation2 + $0x8] sm:$0xff] %vm1805, %v2215
        %2221 = vst.msk [vmem:[#allocation2 + $0x28] sm:$0xff] %vm1805, %v2217
        %s2222 = scalar_lea.vmem %s3, 64
        %v2223 = vld [vmem:[%s2222] sm:$0xff]
        %v2224 = vld [vmem:[%s2222 + $0x8] sm:$0xff]
        %v2226 = vsel %vm1131, %v1213, 0
        %v2229 = vsel %vm1131, %v1217, 0
        %v2232 = vsel %vm1131, %v1299, 0
        %v2235 = vsel %vm1131, %v1303, 0
        %2237 = vmatprep.subr.mxu0 0.0
        %2238 = vmatpush1.xpose.msra.mxu0 0.0
        %2239 = vmatprep.subr.mxu0 0.0
        %2240 = vmatpush1.xpose.msra.mxu0 0.0
        %2241 = vmatprep.subr.mxu0 0.0
        %2242 = vmatpush1.xpose.msra.mxu0 0.0
        %2243 = vmatprep.subr.mxu0 0.0
        %2244 = vmatpush1.xpose.msra.mxu0 0.0
        %2245 = vmatprep.subr.mxu0 0.0
        %2246 = vmatpush1.xpose.msra.mxu0 0.0
        %2247 = vmatprep.subr.mxu0 0.0
        %2248 = vmatpush1.xpose.msra.mxu0 0.0
        %2249 = vmatprep.subr.mxu0 0.0
        %2250 = vmatpush1.xpose.msra.mxu0 0.0
        %2251 = vmatprep.subr.mxu0 0.0
        %2252 = vmatpush1.xpose.msra.mxu0 0.0
        %2253 = vmatprep.subr.mxu0 0.0
        %2254 = vmatpush1.xpose.msra.mxu0 0.0
        %2255 = vmatprep.subr.mxu0 0.0
        %2256 = vmatpush1.xpose.msra.mxu0 0.0
        %2257 = vmatprep.subr.mxu0 0.0
        %2258 = vmatpush1.xpose.msra.mxu0 0.0
        %2259 = vmatprep.subr.mxu0 0.0
        %2260 = vmatpush1.xpose.msra.mxu0 0.0
        %2261 = vmatprep.subr.mxu0 0.0
        %2262 = vmatpush1.xpose.msra.mxu0 0.0
        %2263 = vmatprep.subr.mxu0 0.0
        %2264 = vmatpush1.xpose.msra.mxu0 0.0
        %2265 = vmatprep.subr.mxu0 0.0
        %2266 = vmatpush1.xpose.msra.mxu0 %v2235
        %2267 = vmatprep.subr.mxu0 0.0
        %2268 = vmatpush1.xpose.msra.mxu0 %v2232
        %2269 = vmatprep.subr.mxu0 0.0
        %2270 = vmatpush2.xpose.msra.mxu0 0.0
        %2271 = vmatprep.subr.mxu0 0.0
        %2272 = vmatpush2.xpose.msra.mxu0 0.0
        %2273 = vmatprep.subr.mxu0 0.0
        %2274 = vmatpush2.xpose.msra.mxu0 0.0
        %2275 = vmatprep.subr.mxu0 0.0
        %2276 = vmatpush2.xpose.msra.mxu0 0.0
        %2277 = vmatprep.subr.mxu0 0.0
        %2278 = vmatpush2.xpose.msra.mxu0 0.0
        %2279 = vmatprep.subr.mxu0 0.0
        %2280 = vmatpush2.xpose.msra.mxu0 0.0
        %2281 = vmatprep.subr.mxu0 0.0
        %2282 = vmatpush2.xpose.msra.mxu0 0.0
        %2283 = vmatprep.subr.mxu0 0.0
        %2284 = vmatpush2.xpose.msra.mxu0 0.0
        %2285 = vmatprep.subr.mxu0 0.0
        %2286 = vmatpush2.xpose.msra.mxu0 0.0
        %2287 = vmatprep.subr.mxu0 0.0
        %2288 = vmatpush2.xpose.msra.mxu0 0.0
        %2289 = vmatprep.subr.mxu0 0.0
        %2290 = vmatpush2.xpose.msra.mxu0 0.0
        %2291 = vmatprep.subr.mxu0 0.0
        %2292 = vmatpush2.xpose.msra.mxu0 0.0
        %2293 = vmatprep.subr.mxu0 0.0
        %2294 = vmatpush2.xpose.msra.mxu0 0.0
        %2295 = vmatprep.subr.mxu0 0.0
        %2296 = vmatpush2.xpose.msra.mxu0 0.0
        %2297 = vmatprep.subr.mxu0 0.0
        %2298 = vmatpush2.xpose.msra.mxu0 0.0
        %2299 = vmatprep.subr.mxu0 0.0
        %2300 = vmatpush2.xpose.msra.mxu0 0.0
        %2301 = vmatprep.mubr.f32.mxu0 0.0
        %2302 = vmatmul.mubr.f32.gmra.mxu0 %v2226
        %v2303 = vpop.f32.mrf.mxu0
        %v2304 = vadd.f32 %v2223, %v2303
        %v2305 = vpop.f32.mrf.mxu0
        %2306 = vmatprep.mubr.f32.mxu0 0.0
        %2307 = vmatmul.mubr.f32.gmra.mxu0 %v2229
        %v2308 = vpop.f32.mrf.mxu0
        %v2309 = vadd.f32 %v2224, %v2308
        %v2310 = vpop.f32.mrf.mxu0
        %2311 = vdwg.mxu0
        %v2312 = vadd.f32 %v2304, %v265
        %v2313 = vadd.f32 %v2309, %v266
        %v2314 = vsel %vm1484, %v2312, -inf
        %2315 = vmax.xlane.f32.xlu0 %v2314
        %v2316 = vpop.xlane.xlu0 %2315
        %v2317 = vsel %vm1484, %v2313, -inf
        %2318 = vmax.xlane.f32.xlu0 %v2317
        %v2319 = vpop.xlane.xlu0 %2318
        %v2320 = vsub.f32 %v2312, %v2316
        %v2321 = vsub.f32 %v2313, %v2319
        %v2322 = vmul.f32 %v2320, 1.442695
        %v2323 = vpow.pop %v2322
        %v2324 = vmul.f32 %v2321, 1.442695
        %v2325 = vpow.pop %v2324
        %v2326 = vsel %vm1484, %v2323, 0.0
        %2327 = vadd.xlane.f32.xlu0 %v2326
        %v2328 = vpop.xlane.xlu0 %2327
        %v2329 = vsel %vm1484, %v2325, 0.0
        %2330 = vadd.xlane.f32.xlu0 %v2329
        %v2331 = vpop.xlane.xlu0 %2330
        %v2332 = vrcp.pop %v2328
        %v2333 = vmul.f32 %v2323, %v2332
        %v2334 = vrcp.pop %v2331
        %v2335 = vmul.f32 %v2325, %v2334
        %v2337 = vsel %vm1484, %v2333, 0
        %v2340 = vsel %vm1484, %v2335, 0
        %2342 = vmatprep.subr.mxu0 0.0
        %2343 = vmatpush1.msra.mxu0 0.0
        %2344 = vmatprep.subr.mxu0 0.0
        %2345 = vmatpush1.msra.mxu0 0.0
        %2346 = vmatprep.subr.mxu0 0.0
        %2347 = vmatpush1.msra.mxu0 0.0
        %2348 = vmatprep.subr.mxu0 0.0
        %2349 = vmatpush1.msra.mxu0 0.0
        %2350 = vmatprep.subr.mxu0 0.0
        %2351 = vmatpush1.msra.mxu0 0.0
        %2352 = vmatprep.subr.mxu0 0.0
        %2353 = vmatpush1.msra.mxu0 0.0
        %2354 = vmatprep.subr.mxu0 0.0
        %2355 = vmatpush1.msra.mxu0 0.0
        %2356 = vmatprep.subr.mxu0 0.0
        %2357 = vmatpush1.msra.mxu0 0.0
        %2358 = vmatprep.subr.mxu0 0.0
        %2359 = vmatpush1.msra.mxu0 0.0
        %2360 = vmatprep.subr.mxu0 0.0
        %2361 = vmatpush1.msra.mxu0 0.0
        %2362 = vmatprep.subr.mxu0 0.0
        %2363 = vmatpush1.msra.mxu0 0.0
        %2364 = vmatprep.subr.mxu0 0.0
        %2365 = vmatpush1.msra.mxu0 0.0
        %2366 = vmatprep.subr.mxu0 0.0
        %2367 = vmatpush1.msra.mxu0 0.0
        %2368 = vmatprep.subr.mxu0 0.0
        %2369 = vmatpush1.msra.mxu0 0.0
        %2370 = vmatprep.subr.mxu0 0.0
        %2371 = vmatpush1.msra.mxu0 %v1389
        %2372 = vmatprep.subr.mxu0 0.0
        %2373 = vmatpush1.msra.mxu0 %v1385
        %2374 = vmatprep.subr.mxu0 0.0
        %2375 = vmatpush2.msra.mxu0 0.0
        %2376 = vmatprep.subr.mxu0 0.0
        %2377 = vmatpush2.msra.mxu0 0.0
        %2378 = vmatprep.subr.mxu0 0.0
        %2379 = vmatpush2.msra.mxu0 0.0
        %2380 = vmatprep.subr.mxu0 0.0
        %2381 = vmatpush2.msra.mxu0 0.0
        %2382 = vmatprep.subr.mxu0 0.0
        %2383 = vmatpush2.msra.mxu0 0.0
        %2384 = vmatprep.subr.mxu0 0.0
        %2385 = vmatpush2.msra.mxu0 0.0
        %2386 = vmatprep.subr.mxu0 0.0
        %2387 = vmatpush2.msra.mxu0 0.0
        %2388 = vmatprep.subr.mxu0 0.0
        %2389 = vmatpush2.msra.mxu0 0.0
        %2390 = vmatprep.subr.mxu0 0.0
        %2391 = vmatpush2.msra.mxu0 0.0
        %2392 = vmatprep.subr.mxu0 0.0
        %2393 = vmatpush2.msra.mxu0 0.0
        %2394 = vmatprep.subr.mxu0 0.0
        %2395 = vmatpush2.msra.mxu0 0.0
        %2396 = vmatprep.subr.mxu0 0.0
        %2397 = vmatpush2.msra.mxu0 0.0
        %2398 = vmatprep.subr.mxu0 0.0
        %2399 = vmatpush2.msra.mxu0 0.0
        %2400 = vmatprep.subr.mxu0 0.0
        %2401 = vmatpush2.msra.mxu0 0.0
        %2402 = vmatprep.subr.mxu0 0.0
        %2403 = vmatpush2.msra.mxu0 0.0
        %2404 = vmatprep.subr.mxu0 0.0
        %2405 = vmatpush2.msra.mxu0 0.0
        %2406 = vmatprep.mubr.f32.mxu0 0.0
        %2407 = vmatmul.mubr.f32.gmra.mxu0 %v2337
        %v2408 = vpop.f32.mrf.mxu0
        %v2409 = vadd.f32 0.0, %v2408
        %v2410 = vpop.f32.mrf.mxu0
        %2411 = vmatprep.mubr.f32.mxu0 0.0
        %2412 = vmatmul.mubr.f32.gmra.mxu0 %v2340
        %v2413 = vpop.f32.mrf.mxu0
        %v2414 = vadd.f32 0.0, %v2413
        %v2415 = vpop.f32.mrf.mxu0
        %2416 = vdwg.mxu0
        %2417 = vst.msk [vmem:[#allocation2 + $0x10] sm:$0xff] %vm1131, %v2409
        %2418 = vst.msk [vmem:[#allocation2 + $0x30] sm:$0xff] %vm1131, %v2414
        %s2419 = scalar_lea.vmem %s3, 80
        %v2420 = vld [vmem:[%s2419] sm:$0xff]
        %v2421 = vld [vmem:[%s2419 + $0x8] sm:$0xff]
        %2422 = vrot.lane.b32.xlu0 %v1213, 64
        %v2423 = vpop.permute.xlu0 %2422
        %2424 = vrot.lane.b32.xlu0 %v1217, 64
        %v2425 = vpop.permute.xlu0 %2424
        %2426 = vrot.lane.b32.xlu0 %v1299, 64
        %v2427 = vpop.permute.xlu0 %2426
        %2428 = vrot.lane.b32.xlu0 %v1303, 64
        %v2429 = vpop.permute.xlu0 %2428
        %v2430 = vsel %vm1131, %v2423, 0
        %v2432 = vsel %vm1131, %v2425, 0
        %v2434 = vsel %vm1131, %v2427, 0
        %v2436 = vsel %vm1131, %v2429, 0
        %2438 = vmatprep.subr.mxu0 0.0
        %2439 = vmatpush1.xpose.msra.mxu0 0.0
        %2440 = vmatprep.subr.mxu0 0.0
        %2441 = vmatpush1.xpose.msra.mxu0 0.0
        %2442 = vmatprep.subr.mxu0 0.0
        %2443 = vmatpush1.xpose.msra.mxu0 0.0
        %2444 = vmatprep.subr.mxu0 0.0
        %2445 = vmatpush1.xpose.msra.mxu0 0.0
        %2446 = vmatprep.subr.mxu0 0.0
        %2447 = vmatpush1.xpose.msra.mxu0 0.0
        %2448 = vmatprep.subr.mxu0 0.0
        %2449 = vmatpush1.xpose.msra.mxu0 0.0
        %2450 = vmatprep.subr.mxu0 0.0
        %2451 = vmatpush1.xpose.msra.mxu0 0.0
        %2452 = vmatprep.subr.mxu0 0.0
        %2453 = vmatpush1.xpose.msra.mxu0 0.0
        %2454 = vmatprep.subr.mxu0 0.0
        %2455 = vmatpush1.xpose.msra.mxu0 0.0
        %2456 = vmatprep.subr.mxu0 0.0
        %2457 = vmatpush1.xpose.msra.mxu0 0.0
        %2458 = vmatprep.subr.mxu0 0.0
        %2459 = vmatpush1.xpose.msra.mxu0 0.0
        %2460 = vmatprep.subr.mxu0 0.0
        %2461 = vmatpush1.xpose.msra.mxu0 0.0
        %2462 = vmatprep.subr.mxu0 0.0
        %2463 = vmatpush1.xpose.msra.mxu0 0.0
        %2464 = vmatprep.subr.mxu0 0.0
        %2465 = vmatpush1.xpose.msra.mxu0 0.0
        %2466 = vmatprep.subr.mxu0 0.0
        %2467 = vmatpush1.xpose.msra.mxu0 %v2436
        %2468 = vmatprep.subr.mxu0 0.0
        %2469 = vmatpush1.xpose.msra.mxu0 %v2434
        %2470 = vmatprep.subr.mxu0 0.0
        %2471 = vmatpush2.xpose.msra.mxu0 0.0
        %2472 = vmatprep.subr.mxu0 0.0
        %2473 = vmatpush2.xpose.msra.mxu0 0.0
        %2474 = vmatprep.subr.mxu0 0.0
        %2475 = vmatpush2.xpose.msra.mxu0 0.0
        %2476 = vmatprep.subr.mxu0 0.0
        %2477 = vmatpush2.xpose.msra.mxu0 0.0
        %2478 = vmatprep.subr.mxu0 0.0
        %2479 = vmatpush2.xpose.msra.mxu0 0.0
        %2480 = vmatprep.subr.mxu0 0.0
        %2481 = vmatpush2.xpose.msra.mxu0 0.0
        %2482 = vmatprep.subr.mxu0 0.0
        %2483 = vmatpush2.xpose.msra.mxu0 0.0
        %2484 = vmatprep.subr.mxu0 0.0
        %2485 = vmatpush2.xpose.msra.mxu0 0.0
        %2486 = vmatprep.subr.mxu0 0.0
        %2487 = vmatpush2.xpose.msra.mxu0 0.0
        %2488 = vmatprep.subr.mxu0 0.0
        %2489 = vmatpush2.xpose.msra.mxu0 0.0
        %2490 = vmatprep.subr.mxu0 0.0
        %2491 = vmatpush2.xpose.msra.mxu0 0.0
        %2492 = vmatprep.subr.mxu0 0.0
        %2493 = vmatpush2.xpose.msra.mxu0 0.0
        %2494 = vmatprep.subr.mxu0 0.0
        %2495 = vmatpush2.xpose.msra.mxu0 0.0
        %2496 = vmatprep.subr.mxu0 0.0
        %2497 = vmatpush2.xpose.msra.mxu0 0.0
        %2498 = vmatprep.subr.mxu0 0.0
        %2499 = vmatpush2.xpose.msra.mxu0 0.0
        %2500 = vmatprep.subr.mxu0 0.0
        %2501 = vmatpush2.xpose.msra.mxu0 0.0
        %2502 = vmatprep.mubr.f32.mxu0 0.0
        %2503 = vmatmul.mubr.f32.gmra.mxu0 %v2430
        %v2504 = vpop.f32.mrf.mxu0
        %v2505 = vadd.f32 %v2420, %v2504
        %v2506 = vpop.f32.mrf.mxu0
        %2507 = vmatprep.mubr.f32.mxu0 0.0
        %2508 = vmatmul.mubr.f32.gmra.mxu0 %v2432
        %v2509 = vpop.f32.mrf.mxu0
        %v2510 = vadd.f32 %v2421, %v2509
        %v2511 = vpop.f32.mrf.mxu0
        %2512 = vdwg.mxu0
        %v2513 = vadd.f32 %v2505, %v265
        %v2514 = vadd.f32 %v2510, %v266
        %v2515 = vsel %vm1484, %v2513, -inf
        %2516 = vmax.xlane.f32.xlu0 %v2515
        %v2517 = vpop.xlane.xlu0 %2516
        %v2518 = vsel %vm1484, %v2514, -inf
        %2519 = vmax.xlane.f32.xlu0 %v2518
        %v2520 = vpop.xlane.xlu0 %2519
        %v2521 = vsub.f32 %v2513, %v2517
        %v2522 = vsub.f32 %v2514, %v2520
        %v2523 = vmul.f32 %v2521, 1.442695
        %v2524 = vpow.pop %v2523
        %v2525 = vmul.f32 %v2522, 1.442695
        %v2526 = vpow.pop %v2525
        %v2527 = vsel %vm1484, %v2524, 0.0
        %2528 = vadd.xlane.f32.xlu0 %v2527
        %v2529 = vpop.xlane.xlu0 %2528
        %v2530 = vsel %vm1484, %v2526, 0.0
        %2531 = vadd.xlane.f32.xlu0 %v2530
        %v2532 = vpop.xlane.xlu0 %2531
        %v2533 = vrcp.pop %v2529
        %v2534 = vmul.f32 %v2524, %v2533
        %v2535 = vrcp.pop %v2532
        %v2536 = vmul.f32 %v2526, %v2535
        %2539 = vrot.lane.b32.xlu0 %v1385, 64
        %v2540 = vpop.permute.xlu0 %2539
        %2541 = vrot.lane.b32.xlu0 %v1389, 64
        %v2542 = vpop.permute.xlu0 %2541
        %v2546 = vsel %vm1484, %v2534, 0
        %v2549 = vsel %vm1484, %v2536, 0
        %2551 = vmatprep.subr.mxu0 0.0
        %2552 = vmatpush1.msra.mxu0 0.0
        %2553 = vmatprep.subr.mxu0 0.0
        %2554 = vmatpush1.msra.mxu0 0.0
        %2555 = vmatprep.subr.mxu0 0.0
        %2556 = vmatpush1.msra.mxu0 0.0
        %2557 = vmatprep.subr.mxu0 0.0
        %2558 = vmatpush1.msra.mxu0 0.0
        %2559 = vmatprep.subr.mxu0 0.0
        %2560 = vmatpush1.msra.mxu0 0.0
        %2561 = vmatprep.subr.mxu0 0.0
        %2562 = vmatpush1.msra.mxu0 0.0
        %2563 = vmatprep.subr.mxu0 0.0
        %2564 = vmatpush1.msra.mxu0 0.0
        %2565 = vmatprep.subr.mxu0 0.0
        %2566 = vmatpush1.msra.mxu0 0.0
        %2567 = vmatprep.subr.mxu0 0.0
        %2568 = vmatpush1.msra.mxu0 0.0
        %2569 = vmatprep.subr.mxu0 0.0
        %2570 = vmatpush1.msra.mxu0 0.0
        %2571 = vmatprep.subr.mxu0 0.0
        %2572 = vmatpush1.msra.mxu0 0.0
        %2573 = vmatprep.subr.mxu0 0.0
        %2574 = vmatpush1.msra.mxu0 0.0
        %2575 = vmatprep.subr.mxu0 0.0
        %2576 = vmatpush1.msra.mxu0 0.0
        %2577 = vmatprep.subr.mxu0 0.0
        %2578 = vmatpush1.msra.mxu0 0.0
        %2579 = vmatprep.subr.mxu0 0.0
        %2580 = vmatpush1.msra.mxu0 %v2542
        %2581 = vmatprep.subr.mxu0 0.0
        %2582 = vmatpush1.msra.mxu0 %v2540
        %2583 = vmatprep.subr.mxu0 0.0
        %2584 = vmatpush2.msra.mxu0 0.0
        %2585 = vmatprep.subr.mxu0 0.0
        %2586 = vmatpush2.msra.mxu0 0.0
        %2587 = vmatprep.subr.mxu0 0.0
        %2588 = vmatpush2.msra.mxu0 0.0
        %2589 = vmatprep.subr.mxu0 0.0
        %2590 = vmatpush2.msra.mxu0 0.0
        %2591 = vmatprep.subr.mxu0 0.0
        %2592 = vmatpush2.msra.mxu0 0.0
        %2593 = vmatprep.subr.mxu0 0.0
        %2594 = vmatpush2.msra.mxu0 0.0
        %2595 = vmatprep.subr.mxu0 0.0
        %2596 = vmatpush2.msra.mxu0 0.0
        %2597 = vmatprep.subr.mxu0 0.0
        %2598 = vmatpush2.msra.mxu0 0.0
        %2599 = vmatprep.subr.mxu0 0.0
        %2600 = vmatpush2.msra.mxu0 0.0
        %2601 = vmatprep.subr.mxu0 0.0
        %2602 = vmatpush2.msra.mxu0 0.0
        %2603 = vmatprep.subr.mxu0 0.0
        %2604 = vmatpush2.msra.mxu0 0.0
        %2605 = vmatprep.subr.mxu0 0.0
        %2606 = vmatpush2.msra.mxu0 0.0
        %2607 = vmatprep.subr.mxu0 0.0
        %2608 = vmatpush2.msra.mxu0 0.0
        %2609 = vmatprep.subr.mxu0 0.0
        %2610 = vmatpush2.msra.mxu0 0.0
        %2611 = vmatprep.subr.mxu0 0.0
        %2612 = vmatpush2.msra.mxu0 0.0
        %2613 = vmatprep.subr.mxu0 0.0
        %2614 = vmatpush2.msra.mxu0 0.0
        %2615 = vmatprep.mubr.f32.mxu0 0.0
        %2616 = vmatmul.mubr.f32.gmra.mxu0 %v2546
        %v2617 = vpop.f32.mrf.mxu0
        %v2618 = vadd.f32 0.0, %v2617
        %v2619 = vpop.f32.mrf.mxu0
        %2620 = vmatprep.mubr.f32.mxu0 0.0
        %2621 = vmatmul.mubr.f32.gmra.mxu0 %v2549
        %v2622 = vpop.f32.mrf.mxu0
        %v2623 = vadd.f32 0.0, %v2622
        %v2624 = vpop.f32.mrf.mxu0
        %2625 = vdwg.mxu0
        %2628 = vrot.lane.b32.xlu0 %v2618, 64
        %v2629 = vpop.permute.xlu0 %2628
        %2630 = vrot.lane.b32.xlu0 %v2623, 64
        %v2631 = vpop.permute.xlu0 %2630
        %2634 = vst.msk [vmem:[#allocation2 + $0x10] sm:$0xff] %vm1805, %v2629
        %2635 = vst.msk [vmem:[#allocation2 + $0x30] sm:$0xff] %vm1805, %v2631
        %s2636 = scalar_lea.vmem %s3, 96
        %v2637 = vld [vmem:[%s2636] sm:$0xff]
        %v2638 = vld [vmem:[%s2636 + $0x8] sm:$0xff]
        %v2640 = vsel %vm1131, %v1215, 0
        %v2643 = vsel %vm1131, %v1219, 0
        %v2646 = vsel %vm1131, %v1301, 0
        %v2649 = vsel %vm1131, %v1305, 0
        %2651 = vmatprep.subr.mxu0 0.0
        %2652 = vmatpush1.xpose.msra.mxu0 0.0
        %2653 = vmatprep.subr.mxu0 0.0
        %2654 = vmatpush1.xpose.msra.mxu0 0.0
        %2655 = vmatprep.subr.mxu0 0.0
        %2656 = vmatpush1.xpose.msra.mxu0 0.0
        %2657 = vmatprep.subr.mxu0 0.0
        %2658 = vmatpush1.xpose.msra.mxu0 0.0
        %2659 = vmatprep.subr.mxu0 0.0
        %2660 = vmatpush1.xpose.msra.mxu0 0.0
        %2661 = vmatprep.subr.mxu0 0.0
        %2662 = vmatpush1.xpose.msra.mxu0 0.0
        %2663 = vmatprep.subr.mxu0 0.0
        %2664 = vmatpush1.xpose.msra.mxu0 0.0
        %2665 = vmatprep.subr.mxu0 0.0
        %2666 = vmatpush1.xpose.msra.mxu0 0.0
        %2667 = vmatprep.subr.mxu0 0.0
        %2668 = vmatpush1.xpose.msra.mxu0 0.0
        %2669 = vmatprep.subr.mxu0 0.0
        %2670 = vmatpush1.xpose.msra.mxu0 0.0
        %2671 = vmatprep.subr.mxu0 0.0
        %2672 = vmatpush1.xpose.msra.mxu0 0.0
        %2673 = vmatprep.subr.mxu0 0.0
        %2674 = vmatpush1.xpose.msra.mxu0 0.0
        %2675 = vmatprep.subr.mxu0 0.0
        %2676 = vmatpush1.xpose.msra.mxu0 0.0
        %2677 = vmatprep.subr.mxu0 0.0
        %2678 = vmatpush1.xpose.msra.mxu0 0.0
        %2679 = vmatprep.subr.mxu0 0.0
        %2680 = vmatpush1.xpose.msra.mxu0 %v2649
        %2681 = vmatprep.subr.mxu0 0.0
        %2682 = vmatpush1.xpose.msra.mxu0 %v2646
        %2683 = vmatprep.subr.mxu0 0.0
        %2684 = vmatpush2.xpose.msra.mxu0 0.0
        %2685 = vmatprep.subr.mxu0 0.0
        %2686 = vmatpush2.xpose.msra.mxu0 0.0
        %2687 = vmatprep.subr.mxu0 0.0
        %2688 = vmatpush2.xpose.msra.mxu0 0.0
        %2689 = vmatprep.subr.mxu0 0.0
        %2690 = vmatpush2.xpose.msra.mxu0 0.0
        %2691 = vmatprep.subr.mxu0 0.0
        %2692 = vmatpush2.xpose.msra.mxu0 0.0
        %2693 = vmatprep.subr.mxu0 0.0
        %2694 = vmatpush2.xpose.msra.mxu0 0.0
        %2695 = vmatprep.subr.mxu0 0.0
        %2696 = vmatpush2.xpose.msra.mxu0 0.0
        %2697 = vmatprep.subr.mxu0 0.0
        %2698 = vmatpush2.xpose.msra.mxu0 0.0
        %2699 = vmatprep.subr.mxu0 0.0
        %2700 = vmatpush2.xpose.msra.mxu0 0.0
        %2701 = vmatprep.subr.mxu0 0.0
        %2702 = vmatpush2.xpose.msra.mxu0 0.0
        %2703 = vmatprep.subr.mxu0 0.0
        %2704 = vmatpush2.xpose.msra.mxu0 0.0
        %2705 = vmatprep.subr.mxu0 0.0
        %2706 = vmatpush2.xpose.msra.mxu0 0.0
        %2707 = vmatprep.subr.mxu0 0.0
        %2708 = vmatpush2.xpose.msra.mxu0 0.0
        %2709 = vmatprep.subr.mxu0 0.0
        %2710 = vmatpush2.xpose.msra.mxu0 0.0
        %2711 = vmatprep.subr.mxu0 0.0
        %2712 = vmatpush2.xpose.msra.mxu0 0.0
        %2713 = vmatprep.subr.mxu0 0.0
        %2714 = vmatpush2.xpose.msra.mxu0 0.0
        %2715 = vmatprep.mubr.f32.mxu0 0.0
        %2716 = vmatmul.mubr.f32.gmra.mxu0 %v2640
        %v2717 = vpop.f32.mrf.mxu0
        %v2718 = vadd.f32 %v2637, %v2717
        %v2719 = vpop.f32.mrf.mxu0
        %2720 = vmatprep.mubr.f32.mxu0 0.0
        %2721 = vmatmul.mubr.f32.gmra.mxu0 %v2643
        %v2722 = vpop.f32.mrf.mxu0
        %v2723 = vadd.f32 %v2638, %v2722
        %v2724 = vpop.f32.mrf.mxu0
        %2725 = vdwg.mxu0
        %v2726 = vadd.f32 %v2718, %v265
        %v2727 = vadd.f32 %v2723, %v266
        %v2728 = vsel %vm1484, %v2726, -inf
        %2729 = vmax.xlane.f32.xlu0 %v2728
        %v2730 = vpop.xlane.xlu0 %2729
        %v2731 = vsel %vm1484, %v2727, -inf
        %2732 = vmax.xlane.f32.xlu0 %v2731
        %v2733 = vpop.xlane.xlu0 %2732
        %v2734 = vsub.f32 %v2726, %v2730
        %v2735 = vsub.f32 %v2727, %v2733
        %v2736 = vmul.f32 %v2734, 1.442695
        %v2737 = vpow.pop %v2736
        %v2738 = vmul.f32 %v2735, 1.442695
        %v2739 = vpow.pop %v2738
        %v2740 = vsel %vm1484, %v2737, 0.0
        %2741 = vadd.xlane.f32.xlu0 %v2740
        %v2742 = vpop.xlane.xlu0 %2741
        %v2743 = vsel %vm1484, %v2739, 0.0
        %2744 = vadd.xlane.f32.xlu0 %v2743
        %v2745 = vpop.xlane.xlu0 %2744
        %v2746 = vrcp.pop %v2742
        %v2747 = vmul.f32 %v2737, %v2746
        %v2748 = vrcp.pop %v2745
        %v2749 = vmul.f32 %v2739, %v2748
        %v2751 = vsel %vm1484, %v2747, 0
        %v2754 = vsel %vm1484, %v2749, 0
        %2756 = vmatprep.subr.mxu0 0.0
        %2757 = vmatpush1.msra.mxu0 0.0
        %2758 = vmatprep.subr.mxu0 0.0
        %2759 = vmatpush1.msra.mxu0 0.0
        %2760 = vmatprep.subr.mxu0 0.0
        %2761 = vmatpush1.msra.mxu0 0.0
        %2762 = vmatprep.subr.mxu0 0.0
        %2763 = vmatpush1.msra.mxu0 0.0
        %2764 = vmatprep.subr.mxu0 0.0
        %2765 = vmatpush1.msra.mxu0 0.0
        %2766 = vmatprep.subr.mxu0 0.0
        %2767 = vmatpush1.msra.mxu0 0.0
        %2768 = vmatprep.subr.mxu0 0.0
        %2769 = vmatpush1.msra.mxu0 0.0
        %2770 = vmatprep.subr.mxu0 0.0
        %2771 = vmatpush1.msra.mxu0 0.0
        %2772 = vmatprep.subr.mxu0 0.0
        %2773 = vmatpush1.msra.mxu0 0.0
        %2774 = vmatprep.subr.mxu0 0.0
        %2775 = vmatpush1.msra.mxu0 0.0
        %2776 = vmatprep.subr.mxu0 0.0
        %2777 = vmatpush1.msra.mxu0 0.0
        %2778 = vmatprep.subr.mxu0 0.0
        %2779 = vmatpush1.msra.mxu0 0.0
        %2780 = vmatprep.subr.mxu0 0.0
        %2781 = vmatpush1.msra.mxu0 0.0
        %2782 = vmatprep.subr.mxu0 0.0
        %2783 = vmatpush1.msra.mxu0 0.0
        %2784 = vmatprep.subr.mxu0 0.0
        %2785 = vmatpush1.msra.mxu0 %v1391
        %2786 = vmatprep.subr.mxu0 0.0
        %2787 = vmatpush1.msra.mxu0 %v1387
        %2788 = vmatprep.subr.mxu0 0.0
        %2789 = vmatpush2.msra.mxu0 0.0
        %2790 = vmatprep.subr.mxu0 0.0
        %2791 = vmatpush2.msra.mxu0 0.0
        %2792 = vmatprep.subr.mxu0 0.0
        %2793 = vmatpush2.msra.mxu0 0.0
        %2794 = vmatprep.subr.mxu0 0.0
        %2795 = vmatpush2.msra.mxu0 0.0
        %2796 = vmatprep.subr.mxu0 0.0
        %2797 = vmatpush2.msra.mxu0 0.0
        %2798 = vmatprep.subr.mxu0 0.0
        %2799 = vmatpush2.msra.mxu0 0.0
        %2800 = vmatprep.subr.mxu0 0.0
        %2801 = vmatpush2.msra.mxu0 0.0
        %2802 = vmatprep.subr.mxu0 0.0
        %2803 = vmatpush2.msra.mxu0 0.0
        %2804 = vmatprep.subr.mxu0 0.0
        %2805 = vmatpush2.msra.mxu0 0.0
        %2806 = vmatprep.subr.mxu0 0.0
        %2807 = vmatpush2.msra.mxu0 0.0
        %2808 = vmatprep.subr.mxu0 0.0
        %2809 = vmatpush2.msra.mxu0 0.0
        %2810 = vmatprep.subr.mxu0 0.0
        %2811 = vmatpush2.msra.mxu0 0.0
        %2812 = vmatprep.subr.mxu0 0.0
        %2813 = vmatpush2.msra.mxu0 0.0
        %2814 = vmatprep.subr.mxu0 0.0
        %2815 = vmatpush2.msra.mxu0 0.0
        %2816 = vmatprep.subr.mxu0 0.0
        %2817 = vmatpush2.msra.mxu0 0.0
        %2818 = vmatprep.subr.mxu0 0.0
        %2819 = vmatpush2.msra.mxu0 0.0
        %2820 = vmatprep.mubr.f32.mxu0 0.0
        %2821 = vmatmul.mubr.f32.gmra.mxu0 %v2751
        %v2822 = vpop.f32.mrf.mxu0
        %v2823 = vadd.f32 0.0, %v2822
        %v2824 = vpop.f32.mrf.mxu0
        %2825 = vmatprep.mubr.f32.mxu0 0.0
        %2826 = vmatmul.mubr.f32.gmra.mxu0 %v2754
        %v2827 = vpop.f32.mrf.mxu0
        %v2828 = vadd.f32 0.0, %v2827
        %v2829 = vpop.f32.mrf.mxu0
        %2830 = vdwg.mxu0
        %2831 = vst.msk [vmem:[#allocation2 + $0x18] sm:$0xff] %vm1131, %v2823
        %2832 = vst.msk [vmem:[#allocation2 + $0x38] sm:$0xff] %vm1131, %v2828
        %s2833 = scalar_lea.vmem %s3, 112
        %v2834 = vld [vmem:[%s2833] sm:$0xff]
        %v2835 = vld [vmem:[%s2833 + $0x8] sm:$0xff]
        %2836 = vrot.lane.b32.xlu0 %v1215, 64
        %v2837 = vpop.permute.xlu0 %2836
        %2838 = vrot.lane.b32.xlu0 %v1219, 64
        %v2839 = vpop.permute.xlu0 %2838
        %2840 = vrot.lane.b32.xlu0 %v1301, 64
        %v2841 = vpop.permute.xlu0 %2840
        %2842 = vrot.lane.b32.xlu0 %v1305, 64
        %v2843 = vpop.permute.xlu0 %2842
        %v2844 = vsel %vm1131, %v2837, 0
        %v2846 = vsel %vm1131, %v2839, 0
        %v2848 = vsel %vm1131, %v2841, 0
        %v2850 = vsel %vm1131, %v2843, 0
        %2852 = vmatprep.subr.mxu0 0.0
        %2853 = vmatpush1.xpose.msra.mxu0 0.0
        %2854 = vmatprep.subr.mxu0 0.0
        %2855 = vmatpush1.xpose.msra.mxu0 0.0
        %2856 = vmatprep.subr.mxu0 0.0
        %2857 = vmatpush1.xpose.msra.mxu0 0.0
        %2858 = vmatprep.subr.mxu0 0.0
        %2859 = vmatpush1.xpose.msra.mxu0 0.0
        %2860 = vmatprep.subr.mxu0 0.0
        %2861 = vmatpush1.xpose.msra.mxu0 0.0
        %2862 = vmatprep.subr.mxu0 0.0
        %2863 = vmatpush1.xpose.msra.mxu0 0.0
        %2864 = vmatprep.subr.mxu0 0.0
        %2865 = vmatpush1.xpose.msra.mxu0 0.0
        %2866 = vmatprep.subr.mxu0 0.0
        %2867 = vmatpush1.xpose.msra.mxu0 0.0
        %2868 = vmatprep.subr.mxu0 0.0
        %2869 = vmatpush1.xpose.msra.mxu0 0.0
        %2870 = vmatprep.subr.mxu0 0.0
        %2871 = vmatpush1.xpose.msra.mxu0 0.0
        %2872 = vmatprep.subr.mxu0 0.0
        %2873 = vmatpush1.xpose.msra.mxu0 0.0
        %2874 = vmatprep.subr.mxu0 0.0
        %2875 = vmatpush1.xpose.msra.mxu0 0.0
        %2876 = vmatprep.subr.mxu0 0.0
        %2877 = vmatpush1.xpose.msra.mxu0 0.0
        %2878 = vmatprep.subr.mxu0 0.0
        %2879 = vmatpush1.xpose.msra.mxu0 0.0
        %2880 = vmatprep.subr.mxu0 0.0
        %2881 = vmatpush1.xpose.msra.mxu0 %v2850
        %2882 = vmatprep.subr.mxu0 0.0
        %2883 = vmatpush1.xpose.msra.mxu0 %v2848
        %2884 = vmatprep.subr.mxu0 0.0
        %2885 = vmatpush2.xpose.msra.mxu0 0.0
        %2886 = vmatprep.subr.mxu0 0.0
        %2887 = vmatpush2.xpose.msra.mxu0 0.0
        %2888 = vmatprep.subr.mxu0 0.0
        %2889 = vmatpush2.xpose.msra.mxu0 0.0
        %2890 = vmatprep.subr.mxu0 0.0
        %2891 = vmatpush2.xpose.msra.mxu0 0.0
        %2892 = vmatprep.subr.mxu0 0.0
        %2893 = vmatpush2.xpose.msra.mxu0 0.0
        %2894 = vmatprep.subr.mxu0 0.0
        %2895 = vmatpush2.xpose.msra.mxu0 0.0
        %2896 = vmatprep.subr.mxu0 0.0
        %2897 = vmatpush2.xpose.msra.mxu0 0.0
        %2898 = vmatprep.subr.mxu0 0.0
        %2899 = vmatpush2.xpose.msra.mxu0 0.0
        %2900 = vmatprep.subr.mxu0 0.0
        %2901 = vmatpush2.xpose.msra.mxu0 0.0
        %2902 = vmatprep.subr.mxu0 0.0
        %2903 = vmatpush2.xpose.msra.mxu0 0.0
        %2904 = vmatprep.subr.mxu0 0.0
        %2905 = vmatpush2.xpose.msra.mxu0 0.0
        %2906 = vmatprep.subr.mxu0 0.0
        %2907 = vmatpush2.xpose.msra.mxu0 0.0
        %2908 = vmatprep.subr.mxu0 0.0
        %2909 = vmatpush2.xpose.msra.mxu0 0.0
        %2910 = vmatprep.subr.mxu0 0.0
        %2911 = vmatpush2.xpose.msra.mxu0 0.0
        %2912 = vmatprep.subr.mxu0 0.0
        %2913 = vmatpush2.xpose.msra.mxu0 0.0
        %2914 = vmatprep.subr.mxu0 0.0
        %2915 = vmatpush2.xpose.msra.mxu0 0.0
        %2916 = vmatprep.mubr.f32.mxu0 0.0
        %2917 = vmatmul.mubr.f32.gmra.mxu0 %v2844
        %v2918 = vpop.f32.mrf.mxu0
        %v2919 = vadd.f32 %v2834, %v2918
        %v2920 = vpop.f32.mrf.mxu0
        %2921 = vmatprep.mubr.f32.mxu0 0.0
        %2922 = vmatmul.mubr.f32.gmra.mxu0 %v2846
        %v2923 = vpop.f32.mrf.mxu0
        %v2924 = vadd.f32 %v2835, %v2923
        %v2925 = vpop.f32.mrf.mxu0
        %2926 = vdwg.mxu0
        %v2927 = vadd.f32 %v2919, %v265
        %v2928 = vadd.f32 %v2924, %v266
        %v2929 = vsel %vm1484, %v2927, -inf
        %2930 = vmax.xlane.f32.xlu0 %v2929
        %v2931 = vpop.xlane.xlu0 %2930
        %v2932 = vsel %vm1484, %v2928, -inf
        %2933 = vmax.xlane.f32.xlu0 %v2932
        %v2934 = vpop.xlane.xlu0 %2933
        %v2935 = vsub.f32 %v2927, %v2931
        %v2936 = vsub.f32 %v2928, %v2934
        %v2937 = vmul.f32 %v2935, 1.442695
        %v2938 = vpow.pop %v2937
        %v2939 = vmul.f32 %v2936, 1.442695
        %v2940 = vpow.pop %v2939
        %v2941 = vsel %vm1484, %v2938, 0.0
        %2942 = vadd.xlane.f32.xlu0 %v2941
        %v2943 = vpop.xlane.xlu0 %2942
        %v2944 = vsel %vm1484, %v2940, 0.0
        %2945 = vadd.xlane.f32.xlu0 %v2944
        %v2946 = vpop.xlane.xlu0 %2945
        %v2947 = vrcp.pop %v2943
        %v2948 = vmul.f32 %v2938, %v2947
        %v2949 = vrcp.pop %v2946
        %v2950 = vmul.f32 %v2940, %v2949
        %2953 = vrot.lane.b32.xlu0 %v1387, 64
        %v2954 = vpop.permute.xlu0 %2953
        %2955 = vrot.lane.b32.xlu0 %v1391, 64
        %v2956 = vpop.permute.xlu0 %2955
        %v2960 = vsel %vm1484, %v2948, 0
        %v2963 = vsel %vm1484, %v2950, 0
        %2965 = vmatprep.subr.mxu0 0.0
        %2966 = vmatpush1.msra.mxu0 0.0
        %2967 = vmatprep.subr.mxu0 0.0
        %2968 = vmatpush1.msra.mxu0 0.0
        %2969 = vmatprep.subr.mxu0 0.0
        %2970 = vmatpush1.msra.mxu0 0.0
        %2971 = vmatprep.subr.mxu0 0.0
        %2972 = vmatpush1.msra.mxu0 0.0
        %2973 = vmatprep.subr.mxu0 0.0
        %2974 = vmatpush1.msra.mxu0 0.0
        %2975 = vmatprep.subr.mxu0 0.0
        %2976 = vmatpush1.msra.mxu0 0.0
        %2977 = vmatprep.subr.mxu0 0.0
        %2978 = vmatpush1.msra.mxu0 0.0
        %2979 = vmatprep.subr.mxu0 0.0
        %2980 = vmatpush1.msra.mxu0 0.0
        %2981 = vmatprep.subr.mxu0 0.0
        %2982 = vmatpush1.msra.mxu0 0.0
        %2983 = vmatprep.subr.mxu0 0.0
        %2984 = vmatpush1.msra.mxu0 0.0
        %2985 = vmatprep.subr.mxu0 0.0
        %2986 = vmatpush1.msra.mxu0 0.0
        %2987 = vmatprep.subr.mxu0 0.0
        %2988 = vmatpush1.msra.mxu0 0.0
        %2989 = vmatprep.subr.mxu0 0.0
        %2990 = vmatpush1.msra.mxu0 0.0
        %2991 = vmatprep.subr.mxu0 0.0
        %2992 = vmatpush1.msra.mxu0 0.0
        %2993 = vmatprep.subr.mxu0 0.0
        %2994 = vmatpush1.msra.mxu0 %v2956
        %2995 = vmatprep.subr.mxu0 0.0
        %2996 = vmatpush1.msra.mxu0 %v2954
        %2997 = vmatprep.subr.mxu0 0.0
        %2998 = vmatpush2.msra.mxu0 0.0
        %2999 = vmatprep.subr.mxu0 0.0
        %3000 = vmatpush2.msra.mxu0 0.0
        %3001 = vmatprep.subr.mxu0 0.0
        %3002 = vmatpush2.msra.mxu0 0.0
        %3003 = vmatprep.subr.mxu0 0.0
        %3004 = vmatpush2.msra.mxu0 0.0
        %3005 = vmatprep.subr.mxu0 0.0
        %3006 = vmatpush2.msra.mxu0 0.0
        %3007 = vmatprep.subr.mxu0 0.0
        %3008 = vmatpush2.msra.mxu0 0.0
        %3009 = vmatprep.subr.mxu0 0.0
        %3010 = vmatpush2.msra.mxu0 0.0
        %3011 = vmatprep.subr.mxu0 0.0
        %3012 = vmatpush2.msra.mxu0 0.0
        %3013 = vmatprep.subr.mxu0 0.0
        %3014 = vmatpush2.msra.mxu0 0.0
        %3015 = vmatprep.subr.mxu0 0.0
        %3016 = vmatpush2.msra.mxu0 0.0
        %3017 = vmatprep.subr.mxu0 0.0
        %3018 = vmatpush2.msra.mxu0 0.0
        %3019 = vmatprep.subr.mxu0 0.0
        %3020 = vmatpush2.msra.mxu0 0.0
        %3021 = vmatprep.subr.mxu0 0.0
        %3022 = vmatpush2.msra.mxu0 0.0
        %3023 = vmatprep.subr.mxu0 0.0
        %3024 = vmatpush2.msra.mxu0 0.0
        %3025 = vmatprep.subr.mxu0 0.0
        %3026 = vmatpush2.msra.mxu0 0.0
        %3027 = vmatprep.subr.mxu0 0.0
        %3028 = vmatpush2.msra.mxu0 0.0
        %3029 = vmatprep.mubr.f32.mxu0 0.0
        %3030 = vmatmul.mubr.f32.gmra.mxu0 %v2960
        %v3031 = vpop.f32.mrf.mxu0
        %v3032 = vadd.f32 0.0, %v3031
        %v3033 = vpop.f32.mrf.mxu0
        %3034 = vmatprep.mubr.f32.mxu0 0.0
        %3035 = vmatmul.mubr.f32.gmra.mxu0 %v2963
        %v3036 = vpop.f32.mrf.mxu0
        %v3037 = vadd.f32 0.0, %v3036
        %v3038 = vpop.f32.mrf.mxu0
        %3039 = vdwg.mxu0
        %3042 = vrot.lane.b32.xlu0 %v3032, 64
        %v3043 = vpop.permute.xlu0 %3042
        %3044 = vrot.lane.b32.xlu0 %v3037, 64
        %v3045 = vpop.permute.xlu0 %3044
        %3048 = vst.msk [vmem:[#allocation2 + $0x18] sm:$0xff] %vm1805, %v3043
        %3049 = vst.msk [vmem:[#allocation2 + $0x38] sm:$0xff] %vm1805, %v3045
        %v3050 = vld [vmem:[#allocation2] sm:$0xff]
        %v3051 = vld [vmem:[#allocation2 + $0x8] sm:$0xff]
        %v3052 = vld [vmem:[#allocation2 + $0x10] sm:$0xff]
        %v3053 = vld [vmem:[#allocation2 + $0x18] sm:$0xff]
        %v3054 = vld [vmem:[#allocation2 + $0x20] sm:$0xff]
        %v3055 = vld [vmem:[#allocation2 + $0x28] sm:$0xff]
        %v3056 = vld [vmem:[#allocation2 + $0x30] sm:$0xff]
        %v3057 = vld [vmem:[#allocation2 + $0x38] sm:$0xff]
        %v3058 = vpack.c.bf16 %v3054, %v3050
        %v3059 = vpack.c.bf16 %v3055, %v3051
        %v3060 = vpack.c.bf16 %v3056, %v3052
        %v3061 = vpack.c.bf16 %v3057, %v3053
        %v3062 = vld [vmem:[%s2] sm:$0xff]
        %v3063 = vld [vmem:[%s2 + $0x8] sm:$0xff]
        %v3064 = vld [vmem:[%s2 + $0x10] sm:$0xff]
        %v3065 = vld [vmem:[%s2 + $0x18] sm:$0xff]
        %v3066 = vld [vmem:[%s2 + $0x20] sm:$0xff]
        %v3067 = vld [vmem:[%s2 + $0x28] sm:$0xff]
        %v3068 = vld [vmem:[%s2 + $0x30] sm:$0xff]
        %v3069 = vld [vmem:[%s2 + $0x38] sm:$0xff]
        %v3070 = vld [vmem:[%s2 + $0x40] sm:$0xff]
        %v3071 = vld [vmem:[%s2 + $0x48] sm:$0xff]
        %v3072 = vld [vmem:[%s2 + $0x50] sm:$0xff]
        %v3073 = vld [vmem:[%s2 + $0x58] sm:$0xff]
        %v3074 = vld [vmem:[%s2 + $0x60] sm:$0xff]
        %v3075 = vld [vmem:[%s2 + $0x68] sm:$0xff]
        %v3076 = vld [vmem:[%s2 + $0x70] sm:$0xff]
        %v3077 = vld [vmem:[%s2 + $0x78] sm:$0xff]
        %v3078 = vld [vmem:[%s2 + $0x80] sm:$0xff]
        %v3079 = vld [vmem:[%s2 + $0x88] sm:$0xff]
        %v3080 = vld [vmem:[%s2 + $0x90] sm:$0xff]
        %v3081 = vld [vmem:[%s2 + $0x98] sm:$0xff]
        %v3082 = vld [vmem:[%s2 + $0xa0] sm:$0xff]
        %v3083 = vld [vmem:[%s2 + $0xa8] sm:$0xff]
        %v3084 = vld [vmem:[%s2 + $0xb0] sm:$0xff]
        %v3085 = vld [vmem:[%s2 + $0xb8] sm:$0xff]
        %v3086 = vld [vmem:[%s2 + $0xc0] sm:$0xff]
        %v3087 = vld [vmem:[%s2 + $0xc8] sm:$0xff]
        %v3088 = vld [vmem:[%s2 + $0xd0] sm:$0xff]
        %v3089 = vld [vmem:[%s2 + $0xd8] sm:$0xff]
        %v3090 = vld [vmem:[%s2 + $0xe0] sm:$0xff]
        %v3091 = vld [vmem:[%s2 + $0xe8] sm:$0xff]
        %v3092 = vld [vmem:[%s2 + $0xf0] sm:$0xff]
        %v3093 = vld [vmem:[%s2 + $0xf8] sm:$0xff]
        %v3094 = vld [vmem:[%s2 + $0x100] sm:$0xff]
        %v3095 = vld [vmem:[%s2 + $0x108] sm:$0xff]
        %v3096 = vld [vmem:[%s2 + $0x110] sm:$0xff]
        %v3097 = vld [vmem:[%s2 + $0x118] sm:$0xff]
        %v3098 = vld [vmem:[%s2 + $0x120] sm:$0xff]
        %v3099 = vld [vmem:[%s2 + $0x128] sm:$0xff]
        %v3100 = vld [vmem:[%s2 + $0x130] sm:$0xff]
        %v3101 = vld [vmem:[%s2 + $0x138] sm:$0xff]
        %v3102 = vld [vmem:[%s2 + $0x140] sm:$0xff]
        %v3103 = vld [vmem:[%s2 + $0x148] sm:$0xff]
        %v3104 = vld [vmem:[%s2 + $0x150] sm:$0xff]
        %v3105 = vld [vmem:[%s2 + $0x158] sm:$0xff]
        %v3106 = vld [vmem:[%s2 + $0x160] sm:$0xff]
        %v3107 = vld [vmem:[%s2 + $0x168] sm:$0xff]
        %v3108 = vld [vmem:[%s2 + $0x170] sm:$0xff]
        %v3109 = vld [vmem:[%s2 + $0x178] sm:$0xff]
        %v3110 = vld [vmem:[%s2 + $0x180] sm:$0xff]
        %v3111 = vld [vmem:[%s2 + $0x188] sm:$0xff]
        %v3112 = vld [vmem:[%s2 + $0x190] sm:$0xff]
        %v3113 = vld [vmem:[%s2 + $0x198] sm:$0xff]
        %v3114 = vld [vmem:[%s2 + $0x1a0] sm:$0xff]
        %v3115 = vld [vmem:[%s2 + $0x1a8] sm:$0xff]
        %v3116 = vld [vmem:[%s2 + $0x1b0] sm:$0xff]
        %v3117 = vld [vmem:[%s2 + $0x1b8] sm:$0xff]
        %v3118 = vld [vmem:[%s2 + $0x1c0] sm:$0xff]
        %v3119 = vld [vmem:[%s2 + $0x1c8] sm:$0xff]
        %v3120 = vld [vmem:[%s2 + $0x1d0] sm:$0xff]
        %v3121 = vld [vmem:[%s2 + $0x1d8] sm:$0xff]
        %v3122 = vld [vmem:[%s2 + $0x1e0] sm:$0xff]
        %v3123 = vld [vmem:[%s2 + $0x1e8] sm:$0xff]
        %v3124 = vld [vmem:[%s2 + $0x1f0] sm:$0xff]
        %v3125 = vld [vmem:[%s2 + $0x1f8] sm:$0xff]
        %v3190 = vunpack.c.l.b16 %v3062
        %v3191 = vunpack.c.h.b16 %v3062
        %v3192 = vunpack.c.l.b16 %v3063
        %v3193 = vunpack.c.h.b16 %v3063
        %v3194 = vunpack.c.l.b16 %v3064
        %v3195 = vunpack.c.h.b16 %v3064
        %v3196 = vunpack.c.l.b16 %v3065
        %v3197 = vunpack.c.h.b16 %v3065
        %v3198 = vunpack.c.l.b16 %v3066
        %v3199 = vunpack.c.h.b16 %v3066
        %v3200 = vunpack.c.l.b16 %v3067
        %v3201 = vunpack.c.h.b16 %v3067
        %v3202 = vunpack.c.l.b16 %v3068
        %v3203 = vunpack.c.h.b16 %v3068
        %v3204 = vunpack.c.l.b16 %v3069
        %v3205 = vunpack.c.h.b16 %v3069
        %v3206 = vunpack.c.l.b16 %v3070
        %v3207 = vunpack.c.h.b16 %v3070
        %v3208 = vunpack.c.l.b16 %v3071
        %v3209 = vunpack.c.h.b16 %v3071
        %v3210 = vunpack.c.l.b16 %v3072
        %v3211 = vunpack.c.h.b16 %v3072
        %v3212 = vunpack.c.l.b16 %v3073
        %v3213 = vunpack.c.h.b16 %v3073
        %v3214 = vunpack.c.l.b16 %v3074
        %v3215 = vunpack.c.h.b16 %v3074
        %v3216 = vunpack.c.l.b16 %v3075
        %v3217 = vunpack.c.h.b16 %v3075
        %v3218 = vunpack.c.l.b16 %v3076
        %v3219 = vunpack.c.h.b16 %v3076
        %v3220 = vunpack.c.l.b16 %v3077
        %v3221 = vunpack.c.h.b16 %v3077
        %v3222 = vunpack.c.l.b16 %v3078
        %v3223 = vunpack.c.h.b16 %v3078
        %v3224 = vunpack.c.l.b16 %v3079
        %v3225 = vunpack.c.h.b16 %v3079
        %v3226 = vunpack.c.l.b16 %v3080
        %v3227 = vunpack.c.h.b16 %v3080
        %v3228 = vunpack.c.l.b16 %v3081
        %v3229 = vunpack.c.h.b16 %v3081
        %v3230 = vunpack.c.l.b16 %v3082
        %v3231 = vunpack.c.h.b16 %v3082
        %v3232 = vunpack.c.l.b16 %v3083
        %v3233 = vunpack.c.h.b16 %v3083
        %v3234 = vunpack.c.l.b16 %v3084
        %v3235 = vunpack.c.h.b16 %v3084
        %v3236 = vunpack.c.l.b16 %v3085
        %v3237 = vunpack.c.h.b16 %v3085
        %v3238 = vunpack.c.l.b16 %v3086
        %v3239 = vunpack.c.h.b16 %v3086
        %v3240 = vunpack.c.l.b16 %v3087
        %v3241 = vunpack.c.h.b16 %v3087
        %v3242 = vunpack.c.l.b16 %v3088
        %v3243 = vunpack.c.h.b16 %v3088
        %v3244 = vunpack.c.l.b16 %v3089
        %v3245 = vunpack.c.h.b16 %v3089
        %v3246 = vunpack.c.l.b16 %v3090
        %v3247 = vunpack.c.h.b16 %v3090
        %v3248 = vunpack.c.l.b16 %v3091
        %v3249 = vunpack.c.h.b16 %v3091
        %v3250 = vunpack.c.l.b16 %v3092
        %v3251 = vunpack.c.h.b16 %v3092
        %v3252 = vunpack.c.l.b16 %v3093
        %v3253 = vunpack.c.h.b16 %v3093
        %v3254 = vunpack.c.l.b16 %v3094
        %v3255 = vunpack.c.h.b16 %v3094
        %v3256 = vunpack.c.l.b16 %v3095
        %v3257 = vunpack.c.h.b16 %v3095
        %v3258 = vunpack.c.l.b16 %v3096
        %v3259 = vunpack.c.h.b16 %v3096
        %v3260 = vunpack.c.l.b16 %v3097
        %v3261 = vunpack.c.h.b16 %v3097
        %v3262 = vunpack.c.l.b16 %v3098
        %v3263 = vunpack.c.h.b16 %v3098
        %v3264 = vunpack.c.l.b16 %v3099
        %v3265 = vunpack.c.h.b16 %v3099
        %v3266 = vunpack.c.l.b16 %v3100
        %v3267 = vunpack.c.h.b16 %v3100
        %v3268 = vunpack.c.l.b16 %v3101
        %v3269 = vunpack.c.h.b16 %v3101
        %v3270 = vunpack.c.l.b16 %v3102
        %v3271 = vunpack.c.h.b16 %v3102
        %v3272 = vunpack.c.l.b16 %v3103
        %v3273 = vunpack.c.h.b16 %v3103
        %v3274 = vunpack.c.l.b16 %v3104
        %v3275 = vunpack.c.h.b16 %v3104
        %v3276 = vunpack.c.l.b16 %v3105
        %v3277 = vunpack.c.h.b16 %v3105
        %v3278 = vunpack.c.l.b16 %v3106
        %v3279 = vunpack.c.h.b16 %v3106
        %v3280 = vunpack.c.l.b16 %v3107
        %v3281 = vunpack.c.h.b16 %v3107
        %v3282 = vunpack.c.l.b16 %v3108
        %v3283 = vunpack.c.h.b16 %v3108
        %v3284 = vunpack.c.l.b16 %v3109
        %v3285 = vunpack.c.h.b16 %v3109
        %v3286 = vunpack.c.l.b16 %v3110
        %v3287 = vunpack.c.h.b16 %v3110
        %v3288 = vunpack.c.l.b16 %v3111
        %v3289 = vunpack.c.h.b16 %v3111
        %v3290 = vunpack.c.l.b16 %v3112
        %v3291 = vunpack.c.h.b16 %v3112
        %v3292 = vunpack.c.l.b16 %v3113
        %v3293 = vunpack.c.h.b16 %v3113
        %v3294 = vunpack.c.l.b16 %v3114
        %v3295 = vunpack.c.h.b16 %v3114
        %v3296 = vunpack.c.l.b16 %v3115
        %v3297 = vunpack.c.h.b16 %v3115
        %v3298 = vunpack.c.l.b16 %v3116
        %v3299 = vunpack.c.h.b16 %v3116
        %v3300 = vunpack.c.l.b16 %v3117
        %v3301 = vunpack.c.h.b16 %v3117
        %v3302 = vunpack.c.l.b16 %v3118
        %v3303 = vunpack.c.h.b16 %v3118
        %v3304 = vunpack.c.l.b16 %v3119
        %v3305 = vunpack.c.h.b16 %v3119
        %v3306 = vunpack.c.l.b16 %v3120
        %v3307 = vunpack.c.h.b16 %v3120
        %v3308 = vunpack.c.l.b16 %v3121
        %v3309 = vunpack.c.h.b16 %v3121
        %v3310 = vunpack.c.l.b16 %v3122
        %v3311 = vunpack.c.h.b16 %v3122
        %v3312 = vunpack.c.l.b16 %v3123
        %v3313 = vunpack.c.h.b16 %v3123
        %v3314 = vunpack.c.l.b16 %v3124
        %v3315 = vunpack.c.h.b16 %v3124
        %v3316 = vunpack.c.l.b16 %v3125
        %v3317 = vunpack.c.h.b16 %v3125
        %v3318 = vpack.c.b16 %v3192, %v3190
        %v3319 = vpack.c.b16 %v3193, %v3191
        %v3320 = vpack.c.b16 %v3196, %v3194
        %v3321 = vpack.c.b16 %v3197, %v3195
        %v3322 = vpack.c.b16 %v3200, %v3198
        %v3323 = vpack.c.b16 %v3201, %v3199
        %v3324 = vpack.c.b16 %v3204, %v3202
        %v3325 = vpack.c.b16 %v3205, %v3203
        %v3326 = vpack.c.b16 %v3208, %v3206
        %v3327 = vpack.c.b16 %v3209, %v3207
        %v3328 = vpack.c.b16 %v3212, %v3210
        %v3329 = vpack.c.b16 %v3213, %v3211
        %v3330 = vpack.c.b16 %v3216, %v3214
        %v3331 = vpack.c.b16 %v3217, %v3215
        %v3332 = vpack.c.b16 %v3220, %v3218
        %v3333 = vpack.c.b16 %v3221, %v3219
        %v3334 = vpack.c.b16 %v3224, %v3222
        %v3335 = vpack.c.b16 %v3225, %v3223
        %v3336 = vpack.c.b16 %v3228, %v3226
        %v3337 = vpack.c.b16 %v3229, %v3227
        %v3338 = vpack.c.b16 %v3232, %v3230
        %v3339 = vpack.c.b16 %v3233, %v3231
        %v3340 = vpack.c.b16 %v3236, %v3234
        %v3341 = vpack.c.b16 %v3237, %v3235
        %v3342 = vpack.c.b16 %v3240, %v3238
        %v3343 = vpack.c.b16 %v3241, %v3239
        %v3344 = vpack.c.b16 %v3244, %v3242
        %v3345 = vpack.c.b16 %v3245, %v3243
        %v3346 = vpack.c.b16 %v3248, %v3246
        %v3347 = vpack.c.b16 %v3249, %v3247
        %v3348 = vpack.c.b16 %v3252, %v3250
        %v3349 = vpack.c.b16 %v3253, %v3251
        %v3350 = vpack.c.b16 %v3256, %v3254
        %v3351 = vpack.c.b16 %v3257, %v3255
        %v3352 = vpack.c.b16 %v3260, %v3258
        %v3353 = vpack.c.b16 %v3261, %v3259
        %v3354 = vpack.c.b16 %v3264, %v3262
        %v3355 = vpack.c.b16 %v3265, %v3263
        %v3356 = vpack.c.b16 %v3268, %v3266
        %v3357 = vpack.c.b16 %v3269, %v3267
        %v3358 = vpack.c.b16 %v3272, %v3270
        %v3359 = vpack.c.b16 %v3273, %v3271
        %v3360 = vpack.c.b16 %v3276, %v3274
        %v3361 = vpack.c.b16 %v3277, %v3275
        %v3362 = vpack.c.b16 %v3280, %v3278
        %v3363 = vpack.c.b16 %v3281, %v3279
        %v3364 = vpack.c.b16 %v3284, %v3282
        %v3365 = vpack.c.b16 %v3285, %v3283
        %v3366 = vpack.c.b16 %v3288, %v3286
        %v3367 = vpack.c.b16 %v3289, %v3287
        %v3368 = vpack.c.b16 %v3292, %v3290
        %v3369 = vpack.c.b16 %v3293, %v3291
        %v3370 = vpack.c.b16 %v3296, %v3294
        %v3371 = vpack.c.b16 %v3297, %v3295
        %v3372 = vpack.c.b16 %v3300, %v3298
        %v3373 = vpack.c.b16 %v3301, %v3299
        %v3374 = vpack.c.b16 %v3304, %v3302
        %v3375 = vpack.c.b16 %v3305, %v3303
        %v3376 = vpack.c.b16 %v3308, %v3306
        %v3377 = vpack.c.b16 %v3309, %v3307
        %v3378 = vpack.c.b16 %v3312, %v3310
        %v3379 = vpack.c.b16 %v3313, %v3311
        %v3380 = vpack.c.b16 %v3316, %v3314
        %v3381 = vpack.c.b16 %v3317, %v3315
        %3446 = vmatprep.subr.bf16.mxu0 %v3333
        %3447 = vmatpush1.bf16.msra.mxu0 %v3332
        %3448 = vmatprep.subr.bf16.mxu0 %v3331
        %3449 = vmatpush1.bf16.msra.mxu0 %v3330
        %3450 = vmatprep.subr.bf16.mxu0 %v3329
        %3451 = vmatpush1.bf16.msra.mxu0 %v3328
        %3452 = vmatprep.subr.bf16.mxu0 %v3327
        %3453 = vmatpush1.bf16.msra.mxu0 %v3326
        %3454 = vmatprep.subr.bf16.mxu0 %v3325
        %3455 = vmatpush1.bf16.msra.mxu0 %v3324
        %3456 = vmatprep.subr.bf16.mxu0 %v3323
        %3457 = vmatpush1.bf16.msra.mxu0 %v3322
        %3458 = vmatprep.subr.bf16.mxu0 %v3321
        %3459 = vmatpush1.bf16.msra.mxu0 %v3320
        %3460 = vmatprep.subr.bf16.mxu0 %v3319
        %3461 = vmatpush1.bf16.msra.mxu0 %v3318
        %3462 = vmatprep.subr.bf16.mxu0 %v3349
        %3463 = vmatpush2.bf16.msra.mxu0 %v3348
        %3464 = vmatprep.subr.bf16.mxu0 %v3347
        %3465 = vmatpush2.bf16.msra.mxu0 %v3346
        %3466 = vmatprep.subr.bf16.mxu0 %v3345
        %3467 = vmatpush2.bf16.msra.mxu0 %v3344
        %3468 = vmatprep.subr.bf16.mxu0 %v3343
        %3469 = vmatpush2.bf16.msra.mxu0 %v3342
        %3470 = vmatprep.subr.bf16.mxu0 %v3341
        %3471 = vmatpush2.bf16.msra.mxu0 %v3340
        %3472 = vmatprep.subr.bf16.mxu0 %v3339
        %3473 = vmatpush2.bf16.msra.mxu0 %v3338
        %3474 = vmatprep.subr.bf16.mxu0 %v3337
        %3475 = vmatpush2.bf16.msra.mxu0 %v3336
        %3476 = vmatprep.subr.bf16.mxu0 %v3335
        %3477 = vmatpush2.bf16.msra.mxu0 %v3334
        %3478 = vmatprep.mubr.bf16.mxu0 %v3059
        %3479 = vmatmul.mubr.bf16.gmra.mxu0 %v3058
        %v3480 = vpop.f32.mrf.mxu0
        %v3481 = vadd.f32 0.0, %v3480
        %v3482 = vpop.f32.mrf.mxu0
        %v3483 = vadd.f32 0.0, %v3482
        %v3484 = vpop.f32.mrf.mxu0
        %v3485 = vadd.f32 0.0, %v3484
        %v3486 = vpop.f32.mrf.mxu0
        %v3487 = vadd.f32 0.0, %v3486
        %3488 = vdwg.mxu0
        %3489 = vmatprep.subr.bf16.mxu0 %v3365
        %3490 = vmatpush1.bf16.msra.mxu0 %v3364
        %3491 = vmatprep.subr.bf16.mxu0 %v3363
        %3492 = vmatpush1.bf16.msra.mxu0 %v3362
        %3493 = vmatprep.subr.bf16.mxu0 %v3361
        %3494 = vmatpush1.bf16.msra.mxu0 %v3360
        %3495 = vmatprep.subr.bf16.mxu0 %v3359
        %3496 = vmatpush1.bf16.msra.mxu0 %v3358
        %3497 = vmatprep.subr.bf16.mxu0 %v3357
        %3498 = vmatpush1.bf16.msra.mxu0 %v3356
        %3499 = vmatprep.subr.bf16.mxu0 %v3355
        %3500 = vmatpush1.bf16.msra.mxu0 %v3354
        %3501 = vmatprep.subr.bf16.mxu0 %v3353
        %3502 = vmatpush1.bf16.msra.mxu0 %v3352
        %3503 = vmatprep.subr.bf16.mxu0 %v3351
        %3504 = vmatpush1.bf16.msra.mxu0 %v3350
        %3505 = vmatprep.subr.bf16.mxu0 %v3381
        %3506 = vmatpush2.bf16.msra.mxu0 %v3380
        %3507 = vmatprep.subr.bf16.mxu0 %v3379
        %3508 = vmatpush2.bf16.msra.mxu0 %v3378
        %3509 = vmatprep.subr.bf16.mxu0 %v3377
        %3510 = vmatpush2.bf16.msra.mxu0 %v3376
        %3511 = vmatprep.subr.bf16.mxu0 %v3375
        %3512 = vmatpush2.bf16.msra.mxu0 %v3374
        %3513 = vmatprep.subr.bf16.mxu0 %v3373
        %3514 = vmatpush2.bf16.msra.mxu0 %v3372
        %3515 = vmatprep.subr.bf16.mxu0 %v3371
        %3516 = vmatpush2.bf16.msra.mxu0 %v3370
        %3517 = vmatprep.subr.bf16.mxu0 %v3369
        %3518 = vmatpush2.bf16.msra.mxu0 %v3368
        %3519 = vmatprep.subr.bf16.mxu0 %v3367
        %3520 = vmatpush2.bf16.msra.mxu0 %v3366
        %3521 = vmatprep.mubr.bf16.mxu0 %v3061
        %3522 = vmatmul.mubr.bf16.gmra.mxu0 %v3060
        %v3523 = vpop.f32.mrf.mxu0
        %v3524 = vadd.f32 %v3481, %v3523
        %v3525 = vpop.f32.mrf.mxu0
        %v3526 = vadd.f32 %v3483, %v3525
        %v3527 = vpop.f32.mrf.mxu0
        %v3528 = vadd.f32 %v3485, %v3527
        %v3529 = vpop.f32.mrf.mxu0
        %v3530 = vadd.f32 %v3487, %v3529
        %3531 = vdwg.mxu0
        %3532 = vst [vmem:[%s247] sm:$0xff] %v3524
        %3533 = vst.msk [vmem:[%s247 + $0x8] sm:$0xff] %vm1131, %v3526
        %3534 = vst [vmem:[%s247 + $0x10] sm:$0xff] %v3528
        %3535 = vst.msk [vmem:[%s247 + $0x18] sm:$0xff] %vm1131, %v3530
        %s3536 = sand.u32 %s143, 1
        %s3537 = scalar_lea.sflag [#allocation5], %s3536
        %s3538 = sand.u32 %s143, 1
        %s3539 = smul.addr %s3538, 32
        %s3540 = scalar_lea.vmem [#allocation6], %s3539
        // Predicated region
        $region45: #{tpu_custom_call.1} parent=39 // pred_check
          %p3541 = pneg %p153
        $region46: #{tpu_custom_call.1} parent=39 // pred_check_branch
          %3543 = sbr.rel (%p3541) target = $region48
        $region47: #{tpu_custom_call.1} parent=39 // pred_region
          %s3545 = ssub.s32 512, 512
          %3546 = vsyncadd %s3537, %s3545
          %s3547 = smul.addr %s20, 4
          %s3548 = smul.addr %s3547, 128
          %s3549 = scalar_lea.hbm %s5, %s3548
          %s3550 = sshll.u32 %s3540, 4
          %s3551 = int_to_ptr.vmem [resolvable:$true] %s3550
          %3556 = dma.vmem_to_hbm [thread:$0]  %s3551, 512, %s3549, %s3537, 256, 256, 16
        $region48: #{tpu_custom_call.1} parent=39 // pred_fallthru
          _
      $region40: #{tpu_custom_call.1} parent=5 // pred_fallthru
        _
      %p3557 = scmp.le.s32.totalorder 2, %s15
      // Predicated region
      $region49: #{tpu_custom_call.1} parent=5 // pred_check
        %p3558 = pneg %p3557
      $region50: #{tpu_custom_call.1} parent=5 // pred_check_branch
        %3560 = sbr.rel (%p3558) target = $region52
      $region51: #{tpu_custom_call.1} parent=5 // pred_region
        %s3561 = ssub.s32 %s15, 2
        // Predicated region
        $region53: #{tpu_custom_call.1} parent=51 // pred_check
          %p3562 = pneg %p159
        $region54: #{tpu_custom_call.1} parent=51 // pred_check_branch
          %3564 = sbr.rel (%p3562) target = $region56
        $region55: #{tpu_custom_call.1} parent=51 // pred_region
          %s3565 = sand.u32 %s144, 1
          %s3566 = scalar_lea.sflag [#allocation5], %s3565
          %s3567 = sand.u32 %s144, 1
          %s3568 = smul.addr %s3567, 32
          %s3569 = scalar_lea.vmem [#allocation6], %s3568
          %3570 = dma.done %s3566, 512
        $region56: #{tpu_custom_call.1} parent=51 // pred_fallthru
          _
      $region52: #{tpu_custom_call.1} parent=5 // pred_fallthru
        _
    $region6: #{tpu_custom_call.1} parent=1 // loop_footer
      %s19 = sadd.s32 1, %s15
    $region7: #{tpu_custom_call.1} parent=1 // loop_footer_branch
      %14 = sbr.rel target = $region3
    $region8: #{tpu_custom_call.1} parent=1 // loop_exit
      _
    %3571 = vsyncpa [#allocation4], 1
    %s3572 = scalar_lea.sflag [#allocation4], 1
    %3573 = vsyncpa %s3572, 1
    %3574 = vsyncpa [#allocation5], 1
    %s3575 = scalar_lea.sflag [#allocation5], 1
    %3576 = vsyncpa %s3575, 1

</llo_original>
